<compile_context>
chip_gen: v7x
topology: tpu7x:2x2x1
jax: 0.10.0
libtpu: 0.0.40
codegen_flags: <defaults>
</compile_context>

<pallas_src>
import jax
import jax.numpy as jnp
from jax.experimental import pallas as pl
from jax.experimental.pallas import tpu as pltpu


# ----------------------------------------------------------------------------
# Fused kernel: CrossAttention + 2x BiRNN + batched matmul
# ----------------------------------------------------------------------------
def _fused_kernel(xag_ref, xab_ref,
                  ws1_ref, bs1_ref, ws2_ref, bs2_ref, wo_ref, bo_ref,
                  wih1_ref, b1_ref, whh1_ref,
                  wih2_ref, b2_ref, whh2_ref,
                  out_ref, scr1_ref, scr2_ref):
    bt, S1, D = xag_ref.shape
    S2 = xab_ref.shape[1]
    scale = 1.0 / (float(D) ** 0.5)

    # ---------------- cross attention ----------------
    s1 = xag_ref[...].reshape(bt * S1, D)
    s2 = xab_ref[...].reshape(bt * S2, D)

    # Fused QKV projections: one matmul per source sequence (weights pre-transposed,
    # pre-concatenated on the host -> MXU-friendly N=3D, no in-kernel transposes).
    p1 = jnp.dot(s1, ws1_ref[...], preferred_element_type=jnp.float32) + bs1_ref[...]
    p2 = jnp.dot(s2, ws2_ref[...], preferred_element_type=jnp.float32) + bs2_ref[...]
    q1 = p1[:, :D].reshape(bt, S1, D)           # query_proj_1(seq1)
    k1 = p1[:, D:2 * D].reshape(bt, S1, D)      # key_proj_2(seq1)
    v1 = p1[:, 2 * D:].reshape(bt, S1, D)       # value_proj_2(seq1)
    q2 = p2[:, :D].reshape(bt, S2, D)           # query_proj_2(seq2)
    k2 = p2[:, D:2 * D].reshape(bt, S2, D)      # key_proj_1(seq2)
    v2 = p2[:, 2 * D:].reshape(bt, S2, D)       # value_proj_1(seq2)

    def softmax_last(x):
        m = jnp.max(x, axis=-1, keepdims=True)
        e = jnp.exp(x - m)
        # EUP approximate reciprocal instead of a VALU divide.
        return e * pl.reciprocal(jnp.sum(e, axis=-1, keepdims=True), approx=True)

    # direction 1: query from seq1, key/value from seq2 (dropout == identity in eval)
    sc1 = jnp.einsum('bqd,bkd->bqk', q1, k2,
                     preferred_element_type=jnp.float32) * scale
    att1 = jnp.einsum('bqk,bkd->bqd', softmax_last(sc1), v2,
                      preferred_element_type=jnp.float32)
    # direction 2: query from seq2, key/value from seq1
    sc2 = jnp.einsum('bqd,bkd->bqk', q2, k1,
                     preferred_element_type=jnp.float32) * scale
    att2 = jnp.einsum('bqk,bkd->bqd', softmax_last(sc2), v1,
                      preferred_element_type=jnp.float32)

    # shared output projection
    ag = jnp.dot(att1.reshape(bt * S1, D), wo_ref[...],
                 preferred_element_type=jnp.float32) + bo_ref[...]   # (bt*S1, O)
    ab = jnp.dot(att2.reshape(bt * S2, D), wo_ref[...],
                 preferred_element_type=jnp.float32) + bo_ref[...]   # (bt*S2, O)

    # -------- bidirectional tanh-RNN (directions fused, batched over bt) --------
    def birnn(x_flat, wih_ref, b_ref, whh_ref, scr_ref):
        S = scr_ref.shape[1]
        H2 = whh_ref.shape[0]
        H = H2 // 2
        # Hoisted input projection for BOTH directions: one (bt*S, O)@(O, 2H) matmul.
        xp = (jnp.dot(x_flat, wih_ref[...], preferred_element_type=jnp.float32)
              + b_ref[...]).reshape(bt, S, H2)
        whh = whh_ref[...]                       # block-diag [Whh_f^T, 0; 0, Whh_b^T]
        h = jnp.zeros((bt, H2), jnp.float32)
        for i in range(S):                       # static unroll: S is small & fixed
            # fwd uses timestep i, bwd uses timestep S-1-i -> one 128-lane carry.
            xc = jnp.concatenate([xp[:, i, :H], xp[:, S - 1 - i, H:]], axis=-1)
            h = jnp.tanh(xc + jnp.dot(h, whh, preferred_element_type=jnp.float32))
            # per-step stores go to VMEM scratch (never to HBM)
            scr_ref[:, pl.ds(i, 1), pl.ds(0, H)] = h[:, :H].reshape(bt, 1, H)
            scr_ref[:, pl.ds(S - 1 - i, 1), pl.ds(H, H)] = h[:, H:].reshape(bt, 1, H)
        return scr_ref[...]                      # (bt, S, 2H)

    out1 = birnn(ag, wih1_ref, b1_ref, whh1_ref, scr1_ref)   # (bt, S1, 2H)
    out2 = birnn(ab, wih2_ref, b2_ref, whh2_ref, scr2_ref)   # (bt, S2, 2H)

    # -------- final batched matmul: result[b] = out1[b] @ out2[b]^T --------
    out_ref[...] = jnp.einsum('bsf,btf->bst', out1, out2,
                              preferred_element_type=jnp.float32
                              ).astype(out_ref.dtype)


def _fused_forward(X_ag, X_ab, w, *, batch_tile=None):
    B, S1, D = X_ag.shape
    S2 = X_ab.shape[1]
    H2 = w["whh1"].shape[0]
    bt = B if batch_tile is None else batch_tile
    assert B % bt == 0, (B, bt)

    weights = [w["ws1"], w["bs1"], w["ws2"], w["bs2"], w["wo"], w["bo"],
               w["wih1"], w["b1"], w["whh1"], w["wih2"], w["b2"], w["whh2"]]

    in_specs = ([pl.BlockSpec((bt, S1, D), lambda g: (g, 0, 0)),
                 pl.BlockSpec((bt, S2, D), lambda g: (g, 0, 0))]
                + [pl.BlockSpec(x.shape, lambda g: (0, 0)) for x in weights])

    return pl.pallas_call(
        _fused_kernel,
        out_shape=jax.ShapeDtypeStruct((B, S1, S2), jnp.float32),
        grid=(B // bt,),
        in_specs=in_specs,
        out_specs=pl.BlockSpec((bt, S1, S2), lambda g: (g, 0, 0)),
        scratch_shapes=[pltpu.VMEM((bt, S1, H2), jnp.float32),
                        pltpu.VMEM((bt, S2, H2), jnp.float32)],
        compiler_params=pltpu.CompilerParams(
            dimension_semantics=("parallel",)),
    )(X_ag, X_ab, *weights)


# ----------------------------------------------------------------------------
# Host-side weight preparation (done once): transpose to (in, out) layout,
# concatenate QKV per source sequence, fuse RNN biases and build block-diag whh.
# ----------------------------------------------------------------------------
def prepare_params(params):
    c = params["cat"]
    H = params["rnn1"]["whh_f"].shape[0]

    def rnn_pack(r):
        z = jnp.zeros((H, H), jnp.float32)
        wih = jnp.concatenate([r["wih_f"].T, r["wih_b"].T], axis=1)            # (O, 2H)
        b = jnp.concatenate([(r["bih_f"] + r["bhh_f"]).reshape(1, H),
                             (r["bih_b"] + r["bhh_b"]).reshape(1, H)], axis=1)  # (1, 2H)
        whh = jnp.concatenate(
            [jnp.concatenate([r["whh_f"].T, z], axis=1),
             jnp.concatenate([z, r["whh_b"].T], axis=1)], axis=0)              # (2H, 2H)
        return wih, b, whh

    wih1, b1, whh1 = rnn_pack(params["rnn1"])
    wih2, b2, whh2 = rnn_pack(params["rnn2"])
    return {
        # applied to seq1: [query_proj_1 | key_proj_2 | value_proj_2]
        "ws1": jnp.concatenate([c["wq1"].T, c["wk2"].T, c["wv2"].T], axis=1),  # (D, 3D)
        "bs1": jnp.concatenate([c["bq1"], c["bk2"], c["bv2"]], axis=1),
        # applied to seq2: [query_proj_2 | key_proj_1 | value_proj_1]
        "ws2": jnp.concatenate([c["wq2"].T, c["wk1"].T, c["wv1"].T], axis=1),
        "bs2": jnp.concatenate([c["bq2"], c["bk1"], c["bv1"]], axis=1),
        "wo": c["wo"].T, "bo": c["bo"],
        "wih1": wih1, "b1": b1, "whh1": whh1,
        "wih2": wih2, "b2": b2, "whh2": whh2,
    }


@jax.jit
def cat_birnn_forward(X_ag, X_ab, fused_w):
    return _fused_forward(X_ag, X_ab, fused_w)


# ----------------------------------------------------------------------------
# Deterministic parameter initialization (PyTorch-style shapes)
# ----------------------------------------------------------------------------
def init_params(key, input_size, hidden_size, output_size):
    def lin(k, out_f, in_f):
        kw, kb = jax.random.split(k)
        bnd = 1.0 / (in_f ** 0.5)
        return (jax.random.uniform(kw, (out_f, in_f), jnp.float32, -bnd, bnd),
                jax.random.uniform(kb, (1, out_f), jnp.float32, -bnd, bnd))

    ks = jax.random.split(key, 16)
    cat = {}
    names = ["q1", "k1", "v1", "q2", "k2", "v2"]
    for i, n in enumerate(names):
        w, b = lin(ks[i], input_size, input_size)
        cat["w" + n], cat["b" + n] = w, b
    cat["wo"], cat["bo"] = lin(ks[6], output_size, input_size)

    def rnn(k, in_f, H):
        kk = jax.random.split(k, 8)
        bnd = 1.0 / (H ** 0.5)
        u = lambda kk_, shape: jax.random.uniform(kk_, shape, jnp.float32, -bnd, bnd)
        return {"wih_f": u(kk[0], (H, in_f)), "whh_f": u(kk[1], (H, H)),
                "bih_f": u(kk[2], (H,)),      "bhh_f": u(kk[3], (H,)),
                "wih_b": u(kk[4], (H, in_f)), "whh_b": u(kk[5], (H, H)),
                "bih_b": u(kk[6], (H,)),      "bhh_b": u(kk[7], (H,))}

    return {"cat": cat,
            "rnn1": rnn(ks[7], output_size, hidden_size),
            "rnn2": rnn(ks[8], output_size, hidden_size)}


# ----------------------------------------------------------------------------
# Pure-JAX reference (for correctness check)
# ----------------------------------------------------------------------------
def ref_forward(X_ag, X_ab, params):
    p = params["cat"]
    D = X_ag.shape[-1]

    def lin(x, w, b):
        return x @ w.T + b

    q1 = lin(X_ag, p["wq1"], p["bq1"])
    k2 = lin(X_ab, p["wk1"], p["bk1"])
    v2 = lin(X_ab, p["wv1"], p["bv1"])
    a1 = jax.nn.softmax(q1 @ jnp.swapaxes(k2, -1, -2) / (D ** 0.5), axis=-1) @ v2
    q2 = lin(X_ab, p["wq2"], p["bq2"])
    k1 = lin(X_ag, p["wk2"], p["bk2"])
    v1 = lin(X_ag, p["wv2"], p["bv2"])
    a2 = jax.nn.softmax(q2 @ jnp.swapaxes(k1, -1, -2) / (D ** 0.5), axis=-1) @ v1
    o1 = lin(a1, p["wo"], p["bo"])
    o2 = lin(a2, p["wo"], p["bo"])

    def ref_rnn(x, r):
        B, S, _ = x.shape
        H = r["wih_f"].shape[0]
        h = jnp.zeros((B, H))
        fwd = []
        for t in range(S):
            h = jnp.tanh(x[:, t] @ r["wih_f"].T + h @ r["whh_f"].T
                         + r["bih_f"] + r["bhh_f"])
            fwd.append(h)
        h = jnp.zeros((B, H))
        bwd = [None] * S
        for t in range(S - 1, -1, -1):
            h = jnp.tanh(x[:, t] @ r["wih_b"].T + h @ r["whh_b"].T
                         + r["bih_b"] + r["bhh_b"])
            bwd[t] = h
        return jnp.concatenate([jnp.stack(fwd, 1), jnp.stack(bwd, 1)], axis=-1)

    out1 = ref_rnn(o1, params["rnn1"])
    out2 = ref_rnn(o2, params["rnn2"])
    return out1 @ jnp.swapaxes(out2, 1, 2)


# ----------------------------------------------------------------------------
if __name__ == "__main__":
    # small shapes consistent with the module's forward
    B, S1, S2 = 2, 8, 16
    INPUT_SIZE, HIDDEN_SIZE, OUTPUT_SIZE = 128, 64, 128

    key = jax.random.PRNGKey(0)
    kx, ky, kp = jax.random.split(key, 3)
    X_ag = jax.random.normal(kx, (B, S1, INPUT_SIZE), jnp.float32)
    X_ab = jax.random.normal(ky, (B, S2, INPUT_SIZE), jnp.float32)
    params = init_params(kp, INPUT_SIZE, HIDDEN_SIZE, OUTPUT_SIZE)

    fused_w = prepare_params(params)            # host-side, once
    result = cat_birnn_forward(X_ag, X_ab, fused_w)
    result = jax.block_until_ready(result)

    expected = ref_forward(X_ag, X_ab, params)
    assert result.shape == (B, S1, S2), result.shape
    # Tolerance slightly relaxed vs the exact-division reference because the kernel
    # uses the EUP approximate reciprocal for the softmax normalization.
    assert jnp.allclose(result, expected, rtol=1e-2, atol=1e-2), (
        float(jnp.max(jnp.abs(result - expected))))

    print("KERNEL_OK")
</pallas_src>

<mosaic_0001>
module attributes {stable_mosaic.version = 11 : i64} {
  func.func @_fused_kernel(%arg0: i32, %arg1: memref<2x8x128xf32, #tpu.memory_space<vmem>>, %arg2: memref<2x16x128xf32, #tpu.memory_space<vmem>>, %arg3: memref<128x384xf32, #tpu.memory_space<vmem>>, %arg4: memref<1x384xf32, #tpu.memory_space<vmem>>, %arg5: memref<128x384xf32, #tpu.memory_space<vmem>>, %arg6: memref<1x384xf32, #tpu.memory_space<vmem>>, %arg7: memref<128x128xf32, #tpu.memory_space<vmem>>, %arg8: memref<1x128xf32, #tpu.memory_space<vmem>>, %arg9: memref<128x128xf32, #tpu.memory_space<vmem>>, %arg10: memref<1x128xf32, #tpu.memory_space<vmem>>, %arg11: memref<128x128xf32, #tpu.memory_space<vmem>>, %arg12: memref<128x128xf32, #tpu.memory_space<vmem>>, %arg13: memref<1x128xf32, #tpu.memory_space<vmem>>, %arg14: memref<128x128xf32, #tpu.memory_space<vmem>>, %arg15: memref<2x8x16xf32, #tpu.memory_space<vmem>>, %arg16: memref<2x8x128xf32, #tpu.memory_space<vmem>>, %arg17: memref<2x16x128xf32, #tpu.memory_space<vmem>>) attributes {dimension_semantics = [#tpu.dimension_semantics<parallel>], iteration_bounds = array<i64: 1>, scalar_prefetch = 0 : i64, scratch_operands = 2 : i64, tpu.core_type = #tpu.core_type<tc>, window_params = [{transform_indices = @transform_0, window_bounds = array<i64: 2, 8, 128>}, {transform_indices = @transform_1, window_bounds = array<i64: 2, 16, 128>}, {pipeline_mode = #tpu.pipeline_mode<synchronous>, transform_indices = @transform_2, window_bounds = array<i64: 128, 384>}, {pipeline_mode = #tpu.pipeline_mode<synchronous>, transform_indices = @transform_3, window_bounds = array<i64: 1, 384>}, {pipeline_mode = #tpu.pipeline_mode<synchronous>, transform_indices = @transform_4, window_bounds = array<i64: 128, 384>}, {pipeline_mode = #tpu.pipeline_mode<synchronous>, transform_indices = @transform_5, window_bounds = array<i64: 1, 384>}, {pipeline_mode = #tpu.pipeline_mode<synchronous>, transform_indices = @transform_6, window_bounds = array<i64: 128, 128>}, {pipeline_mode = #tpu.pipeline_mode<synchronous>, transform_indices = @transform_7, window_bounds = array<i64: 1, 128>}, {pipeline_mode = #tpu.pipeline_mode<synchronous>, transform_indices = @transform_8, window_bounds = array<i64: 128, 128>}, {pipeline_mode = #tpu.pipeline_mode<synchronous>, transform_indices = @transform_9, window_bounds = array<i64: 1, 128>}, {pipeline_mode = #tpu.pipeline_mode<synchronous>, transform_indices = @transform_10, window_bounds = array<i64: 128, 128>}, {pipeline_mode = #tpu.pipeline_mode<synchronous>, transform_indices = @transform_11, window_bounds = array<i64: 128, 128>}, {pipeline_mode = #tpu.pipeline_mode<synchronous>, transform_indices = @transform_12, window_bounds = array<i64: 1, 128>}, {pipeline_mode = #tpu.pipeline_mode<synchronous>, transform_indices = @transform_13, window_bounds = array<i64: 128, 128>}, {transform_indices = @transform_14, window_bounds = array<i64: 2, 8, 16>}]} {
    %c0 = arith.constant 0 : index
    %c0_0 = arith.constant 0 : index
    %c0_1 = arith.constant 0 : index
    %0 = vector.load %arg1[%c0, %c0_0, %c0_1] : memref<2x8x128xf32, #tpu.memory_space<vmem>>, vector<2x8x128xf32>
    %1 = vector.shape_cast %0 : vector<2x8x128xf32> to vector<16x128xf32>
    %c0_2 = arith.constant 0 : index
    %c0_3 = arith.constant 0 : index
    %c0_4 = arith.constant 0 : index
    %2 = vector.load %arg2[%c0_2, %c0_3, %c0_4] : memref<2x16x128xf32, #tpu.memory_space<vmem>>, vector<2x16x128xf32>
    %3 = vector.shape_cast %2 : vector<2x16x128xf32> to vector<32x128xf32>
    %c0_5 = arith.constant 0 : index
    %c0_6 = arith.constant 0 : index
    %4 = vector.load %arg3[%c0_5, %c0_6] : memref<128x384xf32, #tpu.memory_space<vmem>>, vector<128x384xf32>
    %cst = arith.constant dense<0.000000e+00> : vector<16x384xf32>
    %5 = tpu.matmul %1, %4, %cst {dimension_numbers = #tpu.dot_dimension_numbers<[1], [0], [0], [1], [0, 0, 1, 1], [], []>} : vector<16x128xf32>, vector<128x384xf32>, vector<16x384xf32> -> vector<16x384xf32>
    %c0_7 = arith.constant 0 : index
    %c0_8 = arith.constant 0 : index
    %6 = vector.load %arg4[%c0_7, %c0_8] : memref<1x384xf32, #tpu.memory_space<vmem>>, vector<1x384xf32>
    %7 = vector.broadcast %6 : vector<1x384xf32> to vector<16x384xf32>
    %8 = arith.addf %5, %7 : vector<16x384xf32>
    %c0_9 = arith.constant 0 : index
    %c0_10 = arith.constant 0 : index
    %9 = vector.load %arg5[%c0_9, %c0_10] : memref<128x384xf32, #tpu.memory_space<vmem>>, vector<128x384xf32>
    %cst_11 = arith.constant dense<0.000000e+00> : vector<32x384xf32>
    %10 = tpu.matmul %3, %9, %cst_11 {dimension_numbers = #tpu.dot_dimension_numbers<[1], [0], [0], [1], [0, 0, 1, 1], [], []>} : vector<32x128xf32>, vector<128x384xf32>, vector<32x384xf32> -> vector<32x384xf32>
    %c0_12 = arith.constant 0 : index
    %c0_13 = arith.constant 0 : index
    %11 = vector.load %arg6[%c0_12, %c0_13] : memref<1x384xf32, #tpu.memory_space<vmem>>, vector<1x384xf32>
    %12 = vector.broadcast %11 : vector<1x384xf32> to vector<32x384xf32>
    %13 = arith.addf %10, %12 : vector<32x384xf32>
    %14 = vector.extract_strided_slice %8 {offsets = [0, 0], sizes = [16, 128], strides = [1, 1]} : vector<16x384xf32> to vector<16x128xf32>
    %15 = vector.shape_cast %14 : vector<16x128xf32> to vector<2x8x128xf32>
    %16 = vector.extract_strided_slice %8 {offsets = [0, 128], sizes = [16, 128], strides = [1, 1]} : vector<16x384xf32> to vector<16x128xf32>
    %17 = vector.shape_cast %16 : vector<16x128xf32> to vector<2x8x128xf32>
    %18 = vector.extract_strided_slice %8 {offsets = [0, 256], sizes = [16, 128], strides = [1, 1]} : vector<16x384xf32> to vector<16x128xf32>
    %19 = vector.shape_cast %18 : vector<16x128xf32> to vector<2x8x128xf32>
    %20 = vector.extract_strided_slice %13 {offsets = [0, 0], sizes = [32, 128], strides = [1, 1]} : vector<32x384xf32> to vector<32x128xf32>
    %21 = vector.shape_cast %20 : vector<32x128xf32> to vector<2x16x128xf32>
    %22 = vector.extract_strided_slice %13 {offsets = [0, 128], sizes = [32, 128], strides = [1, 1]} : vector<32x384xf32> to vector<32x128xf32>
    %23 = vector.shape_cast %22 : vector<32x128xf32> to vector<2x16x128xf32>
    %24 = vector.extract_strided_slice %13 {offsets = [0, 256], sizes = [32, 128], strides = [1, 1]} : vector<32x384xf32> to vector<32x128xf32>
    %25 = vector.shape_cast %24 : vector<32x128xf32> to vector<2x16x128xf32>
    "tpu.trace_start"() <{level = 10 : i32, message = "bqd,bkd->bqk"}> : () -> ()
    %cst_14 = arith.constant dense<0.000000e+00> : vector<2x8x16xf32>
    %26 = tpu.matmul %15, %23, %cst_14 {dimension_numbers = #tpu.dot_dimension_numbers<[2], [2], [1], [1], [0, 0, 0, 1, 1, 1], [0], [0]>} : vector<2x8x128xf32>, vector<2x16x128xf32>, vector<2x8x16xf32> -> vector<2x8x16xf32>
    "tpu.trace_stop"() : () -> ()
    %cst_15 = arith.constant 0.0883883461 : f32
    %27 = vector.broadcast %cst_15 : f32 to vector<2x8x16xf32>
    %28 = arith.mulf %26, %27 : vector<2x8x16xf32>
    %cst_16 = arith.constant dense<0xFF800000> : vector<2x8xf32>
    %29 = vector.multi_reduction <maximumf>, %28, %cst_16 [2] : vector<2x8x16xf32> to vector<2x8xf32>
    %30 = vector.shape_cast %29 : vector<2x8xf32> to vector<2x8x1xf32>
    %31 = vector.broadcast %30 : vector<2x8x1xf32> to vector<2x8x16xf32>
    %32 = arith.subf %28, %31 : vector<2x8x16xf32>
    %33 = math.exp %32 : vector<2x8x16xf32>
    %cst_17 = arith.constant dense<0.000000e+00> : vector<2x8xf32>
    %34 = vector.multi_reduction <add>, %33, %cst_17 [2] : vector<2x8x16xf32> to vector<2x8xf32>
    %35 = vector.shape_cast %34 : vector<2x8xf32> to vector<2x8x1xf32>
    %36 = tpu.reciprocal %35 {approx = true} : vector<2x8x1xf32> -> vector<2x8x1xf32>
    %37 = vector.broadcast %36 : vector<2x8x1xf32> to vector<2x8x16xf32>
    %38 = arith.mulf %33, %37 : vector<2x8x16xf32>
    "tpu.trace_start"() <{level = 10 : i32, message = "bqk,bkd->bqd"}> : () -> ()
    %cst_18 = arith.constant dense<0.000000e+00> : vector<2x8x128xf32>
    %39 = tpu.matmul %38, %25, %cst_18 {dimension_numbers = #tpu.dot_dimension_numbers<[2], [1], [1], [2], [0, 0, 0, 1, 1, 2], [0], [0]>} : vector<2x8x16xf32>, vector<2x16x128xf32>, vector<2x8x128xf32> -> vector<2x8x128xf32>
    "tpu.trace_stop"() : () -> ()
    "tpu.trace_start"() <{level = 10 : i32, message = "bqd,bkd->bqk"}> : () -> ()
    %cst_19 = arith.constant dense<0.000000e+00> : vector<2x16x8xf32>
    %40 = tpu.matmul %21, %17, %cst_19 {dimension_numbers = #tpu.dot_dimension_numbers<[2], [2], [1], [1], [0, 0, 0, 1, 1, 1], [0], [0]>} : vector<2x16x128xf32>, vector<2x8x128xf32>, vector<2x16x8xf32> -> vector<2x16x8xf32>
    "tpu.trace_stop"() : () -> ()
    %cst_20 = arith.constant 0.0883883461 : f32
    %41 = vector.broadcast %cst_20 : f32 to vector<2x16x8xf32>
    %42 = arith.mulf %40, %41 : vector<2x16x8xf32>
    %cst_21 = arith.constant dense<0xFF800000> : vector<2x16xf32>
    %43 = vector.multi_reduction <maximumf>, %42, %cst_21 [2] : vector<2x16x8xf32> to vector<2x16xf32>
    %44 = vector.shape_cast %43 : vector<2x16xf32> to vector<2x16x1xf32>
    %45 = vector.broadcast %44 : vector<2x16x1xf32> to vector<2x16x8xf32>
    %46 = arith.subf %42, %45 : vector<2x16x8xf32>
    %47 = math.exp %46 : vector<2x16x8xf32>
    %cst_22 = arith.constant dense<0.000000e+00> : vector<2x16xf32>
    %48 = vector.multi_reduction <add>, %47, %cst_22 [2] : vector<2x16x8xf32> to vector<2x16xf32>
    %49 = vector.shape_cast %48 : vector<2x16xf32> to vector<2x16x1xf32>
    %50 = tpu.reciprocal %49 {approx = true} : vector<2x16x1xf32> -> vector<2x16x1xf32>
    %51 = vector.broadcast %50 : vector<2x16x1xf32> to vector<2x16x8xf32>
    %52 = arith.mulf %47, %51 : vector<2x16x8xf32>
    "tpu.trace_start"() <{level = 10 : i32, message = "bqk,bkd->bqd"}> : () -> ()
    %cst_23 = arith.constant dense<0.000000e+00> : vector<2x16x128xf32>
    %53 = tpu.matmul %52, %19, %cst_23 {dimension_numbers = #tpu.dot_dimension_numbers<[2], [1], [1], [2], [0, 0, 0, 1, 1, 2], [0], [0]>} : vector<2x16x8xf32>, vector<2x8x128xf32>, vector<2x16x128xf32> -> vector<2x16x128xf32>
    "tpu.trace_stop"() : () -> ()
    %54 = vector.shape_cast %39 : vector<2x8x128xf32> to vector<16x128xf32>
    %c0_24 = arith.constant 0 : index
    %c0_25 = arith.constant 0 : index
    %55 = vector.load %arg7[%c0_24, %c0_25] : memref<128x128xf32, #tpu.memory_space<vmem>>, vector<128x128xf32>
    %cst_26 = arith.constant dense<0.000000e+00> : vector<16x128xf32>
    %56 = tpu.matmul %54, %55, %cst_26 {dimension_numbers = #tpu.dot_dimension_numbers<[1], [0], [0], [1], [0, 0, 1, 1], [], []>} : vector<16x128xf32>, vector<128x128xf32>, vector<16x128xf32> -> vector<16x128xf32>
    %c0_27 = arith.constant 0 : index
    %c0_28 = arith.constant 0 : index
    %57 = vector.load %arg8[%c0_27, %c0_28] : memref<1x128xf32, #tpu.memory_space<vmem>>, vector<1x128xf32>
    %58 = vector.broadcast %57 : vector<1x128xf32> to vector<16x128xf32>
    %59 = arith.addf %56, %58 : vector<16x128xf32>
    %60 = vector.shape_cast %53 : vector<2x16x128xf32> to vector<32x128xf32>
    %c0_29 = arith.constant 0 : index
    %c0_30 = arith.constant 0 : index
    %61 = vector.load %arg7[%c0_29, %c0_30] : memref<128x128xf32, #tpu.memory_space<vmem>>, vector<128x128xf32>
    %cst_31 = arith.constant dense<0.000000e+00> : vector<32x128xf32>
    %62 = tpu.matmul %60, %61, %cst_31 {dimension_numbers = #tpu.dot_dimension_numbers<[1], [0], [0], [1], [0, 0, 1, 1], [], []>} : vector<32x128xf32>, vector<128x128xf32>, vector<32x128xf32> -> vector<32x128xf32>
    %c0_32 = arith.constant 0 : index
    %c0_33 = arith.constant 0 : index
    %63 = vector.load %arg8[%c0_32, %c0_33] : memref<1x128xf32, #tpu.memory_space<vmem>>, vector<1x128xf32>
    %64 = vector.broadcast %63 : vector<1x128xf32> to vector<32x128xf32>
    %65 = arith.addf %62, %64 : vector<32x128xf32>
    %c0_34 = arith.constant 0 : index
    %c0_35 = arith.constant 0 : index
    %66 = vector.load %arg9[%c0_34, %c0_35] : memref<128x128xf32, #tpu.memory_space<vmem>>, vector<128x128xf32>
    %cst_36 = arith.constant dense<0.000000e+00> : vector<16x128xf32>
    %67 = tpu.matmul %59, %66, %cst_36 {dimension_numbers = #tpu.dot_dimension_numbers<[1], [0], [0], [1], [0, 0, 1, 1], [], []>} : vector<16x128xf32>, vector<128x128xf32>, vector<16x128xf32> -> vector<16x128xf32>
    %c0_37 = arith.constant 0 : index
    %c0_38 = arith.constant 0 : index
    %68 = vector.load %arg10[%c0_37, %c0_38] : memref<1x128xf32, #tpu.memory_space<vmem>>, vector<1x128xf32>
    %69 = vector.broadcast %68 : vector<1x128xf32> to vector<16x128xf32>
    %70 = arith.addf %67, %69 : vector<16x128xf32>
    %71 = vector.shape_cast %70 : vector<16x128xf32> to vector<2x8x128xf32>
    %c0_39 = arith.constant 0 : index
    %c0_40 = arith.constant 0 : index
    %72 = vector.load %arg11[%c0_39, %c0_40] : memref<128x128xf32, #tpu.memory_space<vmem>>, vector<128x128xf32>
    %cst_41 = arith.constant 0.000000e+00 : f32
    %73 = vector.broadcast %cst_41 : f32 to vector<2x128xf32>
    %74 = vector.extract_strided_slice %71 {offsets = [0, 0, 0], sizes = [2, 1, 64], strides = [1, 1, 1]} : vector<2x8x128xf32> to vector<2x1x64xf32>
    %75 = vector.shape_cast %74 : vector<2x1x64xf32> to vector<2x64xf32>
    %76 = vector.extract_strided_slice %71 {offsets = [0, 7, 64], sizes = [2, 1, 64], strides = [1, 1, 1]} : vector<2x8x128xf32> to vector<2x1x64xf32>
    %77 = vector.shape_cast %76 : vector<2x1x64xf32> to vector<2x64xf32>
    %78 = tpu.concatenate %75, %77 in 1 : vector<2x64xf32>, vector<2x64xf32> -> vector<2x128xf32>
    %cst_42 = arith.constant dense<0.000000e+00> : vector<2x128xf32>
    %79 = tpu.matmul %73, %72, %cst_42 {dimension_numbers = #tpu.dot_dimension_numbers<[1], [0], [0], [1], [0, 0, 1, 1], [], []>} : vector<2x128xf32>, vector<128x128xf32>, vector<2x128xf32> -> vector<2x128xf32>
    %80 = arith.addf %78, %79 : vector<2x128xf32>
    %81 = math.tanh %80 : vector<2x128xf32>
    %82 = vector.extract_strided_slice %81 {offsets = [0, 0], sizes = [2, 64], strides = [1, 1]} : vector<2x128xf32> to vector<2x64xf32>
    %83 = vector.shape_cast %82 : vector<2x64xf32> to vector<2x1x64xf32>
    %c0_43 = arith.constant 0 : index
    %c0_44 = arith.constant 0 : index
    %c0_45 = arith.constant 0 : index
    %84 = vector.load %arg16[%c0_43, %c0_44, %c0_45] : memref<2x8x128xf32, #tpu.memory_space<vmem>>, vector<2x1x64xf32>
    tpu.vector_store %arg16[%c0_43, %c0_44, %c0_45], %83 {strides = array<i32>} : memref<2x8x128xf32, #tpu.memory_space<vmem>>, vector<2x1x64xf32>,
    %85 = vector.extract_strided_slice %81 {offsets = [0, 64], sizes = [2, 64], strides = [1, 1]} : vector<2x128xf32> to vector<2x64xf32>
    %86 = vector.shape_cast %85 : vector<2x64xf32> to vector<2x1x64xf32>
    %c0_46 = arith.constant 0 : index
    %c7 = arith.constant 7 : index
    %c64 = arith.constant 64 : index
    %87 = vector.load %arg16[%c0_46, %c7, %c64] : memref<2x8x128xf32, #tpu.memory_space<vmem>>, vector<2x1x64xf32>
    tpu.vector_store %arg16[%c0_46, %c7, %c64], %86 {strides = array<i32>} : memref<2x8x128xf32, #tpu.memory_space<vmem>>, vector<2x1x64xf32>,
    %88 = vector.extract_strided_slice %71 {offsets = [0, 1, 0], sizes = [2, 1, 64], strides = [1, 1, 1]} : vector<2x8x128xf32> to vector<2x1x64xf32>
    %89 = vector.shape_cast %88 : vector<2x1x64xf32> to vector<2x64xf32>
    %90 = vector.extract_strided_slice %71 {offsets = [0, 6, 64], sizes = [2, 1, 64], strides = [1, 1, 1]} : vector<2x8x128xf32> to vector<2x1x64xf32>
    %91 = vector.shape_cast %90 : vector<2x1x64xf32> to vector<2x64xf32>
    %92 = tpu.concatenate %89, %91 in 1 : vector<2x64xf32>, vector<2x64xf32> -> vector<2x128xf32>
    %cst_47 = arith.constant dense<0.000000e+00> : vector<2x128xf32>
    %93 = tpu.matmul %81, %72, %cst_47 {dimension_numbers = #tpu.dot_dimension_numbers<[1], [0], [0], [1], [0, 0, 1, 1], [], []>} : vector<2x128xf32>, vector<128x128xf32>, vector<2x128xf32> -> vector<2x128xf32>
    %94 = arith.addf %92, %93 : vector<2x128xf32>
    %95 = math.tanh %94 : vector<2x128xf32>
    %96 = vector.extract_strided_slice %95 {offsets = [0, 0], sizes = [2, 64], strides = [1, 1]} : vector<2x128xf32> to vector<2x64xf32>
    %97 = vector.shape_cast %96 : vector<2x64xf32> to vector<2x1x64xf32>
    %c0_48 = arith.constant 0 : index
    %c1 = arith.constant 1 : index
    %c0_49 = arith.constant 0 : index
    %98 = vector.load %arg16[%c0_48, %c1, %c0_49] : memref<2x8x128xf32, #tpu.memory_space<vmem>>, vector<2x1x64xf32>
    tpu.vector_store %arg16[%c0_48, %c1, %c0_49], %97 {strides = array<i32>} : memref<2x8x128xf32, #tpu.memory_space<vmem>>, vector<2x1x64xf32>,
    %99 = vector.extract_strided_slice %95 {offsets = [0, 64], sizes = [2, 64], strides = [1, 1]} : vector<2x128xf32> to vector<2x64xf32>
    %100 = vector.shape_cast %99 : vector<2x64xf32> to vector<2x1x64xf32>
    %c0_50 = arith.constant 0 : index
    %c6 = arith.constant 6 : index
    %c64_51 = arith.constant 64 : index
    %101 = vector.load %arg16[%c0_50, %c6, %c64_51] : memref<2x8x128xf32, #tpu.memory_space<vmem>>, vector<2x1x64xf32>
    tpu.vector_store %arg16[%c0_50, %c6, %c64_51], %100 {strides = array<i32>} : memref<2x8x128xf32, #tpu.memory_space<vmem>>, vector<2x1x64xf32>,
    %102 = vector.extract_strided_slice %71 {offsets = [0, 2, 0], sizes = [2, 1, 64], strides = [1, 1, 1]} : vector<2x8x128xf32> to vector<2x1x64xf32>
    %103 = vector.shape_cast %102 : vector<2x1x64xf32> to vector<2x64xf32>
    %104 = vector.extract_strided_slice %71 {offsets = [0, 5, 64], sizes = [2, 1, 64], strides = [1, 1, 1]} : vector<2x8x128xf32> to vector<2x1x64xf32>
    %105 = vector.shape_cast %104 : vector<2x1x64xf32> to vector<2x64xf32>
    %106 = tpu.concatenate %103, %105 in 1 : vector<2x64xf32>, vector<2x64xf32> -> vector<2x128xf32>
    %cst_52 = arith.constant dense<0.000000e+00> : vector<2x128xf32>
    %107 = tpu.matmul %95, %72, %cst_52 {dimension_numbers = #tpu.dot_dimension_numbers<[1], [0], [0], [1], [0, 0, 1, 1], [], []>} : vector<2x128xf32>, vector<128x128xf32>, vector<2x128xf32> -> vector<2x128xf32>
    %108 = arith.addf %106, %107 : vector<2x128xf32>
    %109 = math.tanh %108 : vector<2x128xf32>
    %110 = vector.extract_strided_slice %109 {offsets = [0, 0], sizes = [2, 64], strides = [1, 1]} : vector<2x128xf32> to vector<2x64xf32>
    %111 = vector.shape_cast %110 : vector<2x64xf32> to vector<2x1x64xf32>
    %c0_53 = arith.constant 0 : index
    %c2 = arith.constant 2 : index
    %c0_54 = arith.constant 0 : index
    %112 = vector.load %arg16[%c0_53, %c2, %c0_54] : memref<2x8x128xf32, #tpu.memory_space<vmem>>, vector<2x1x64xf32>
    tpu.vector_store %arg16[%c0_53, %c2, %c0_54], %111 {strides = array<i32>} : memref<2x8x128xf32, #tpu.memory_space<vmem>>, vector<2x1x64xf32>,
    %113 = vector.extract_strided_slice %109 {offsets = [0, 64], sizes = [2, 64], strides = [1, 1]} : vector<2x128xf32> to vector<2x64xf32>
    %114 = vector.shape_cast %113 : vector<2x64xf32> to vector<2x1x64xf32>
    %c0_55 = arith.constant 0 : index
    %c5 = arith.constant 5 : index
    %c64_56 = arith.constant 64 : index
    %115 = vector.load %arg16[%c0_55, %c5, %c64_56] : memref<2x8x128xf32, #tpu.memory_space<vmem>>, vector<2x1x64xf32>
    tpu.vector_store %arg16[%c0_55, %c5, %c64_56], %114 {strides = array<i32>} : memref<2x8x128xf32, #tpu.memory_space<vmem>>, vector<2x1x64xf32>,
    %116 = vector.extract_strided_slice %71 {offsets = [0, 3, 0], sizes = [2, 1, 64], strides = [1, 1, 1]} : vector<2x8x128xf32> to vector<2x1x64xf32>
    %117 = vector.shape_cast %116 : vector<2x1x64xf32> to vector<2x64xf32>
    %118 = vector.extract_strided_slice %71 {offsets = [0, 4, 64], sizes = [2, 1, 64], strides = [1, 1, 1]} : vector<2x8x128xf32> to vector<2x1x64xf32>
    %119 = vector.shape_cast %118 : vector<2x1x64xf32> to vector<2x64xf32>
    %120 = tpu.concatenate %117, %119 in 1 : vector<2x64xf32>, vector<2x64xf32> -> vector<2x128xf32>
    %cst_57 = arith.constant dense<0.000000e+00> : vector<2x128xf32>
    %121 = tpu.matmul %109, %72, %cst_57 {dimension_numbers = #tpu.dot_dimension_numbers<[1], [0], [0], [1], [0, 0, 1, 1], [], []>} : vector<2x128xf32>, vector<128x128xf32>, vector<2x128xf32> -> vector<2x128xf32>
    %122 = arith.addf %120, %121 : vector<2x128xf32>
    %123 = math.tanh %122 : vector<2x128xf32>
    %124 = vector.extract_strided_slice %123 {offsets = [0, 0], sizes = [2, 64], strides = [1, 1]} : vector<2x128xf32> to vector<2x64xf32>
    %125 = vector.shape_cast %124 : vector<2x64xf32> to vector<2x1x64xf32>
    %c0_58 = arith.constant 0 : index
    %c3 = arith.constant 3 : index
    %c0_59 = arith.constant 0 : index
    %126 = vector.load %arg16[%c0_58, %c3, %c0_59] : memref<2x8x128xf32, #tpu.memory_space<vmem>>, vector<2x1x64xf32>
    tpu.vector_store %arg16[%c0_58, %c3, %c0_59], %125 {strides = array<i32>} : memref<2x8x128xf32, #tpu.memory_space<vmem>>, vector<2x1x64xf32>,
    %127 = vector.extract_strided_slice %123 {offsets = [0, 64], sizes = [2, 64], strides = [1, 1]} : vector<2x128xf32> to vector<2x64xf32>
    %128 = vector.shape_cast %127 : vector<2x64xf32> to vector<2x1x64xf32>
    %c0_60 = arith.constant 0 : index
    %c4 = arith.constant 4 : index
    %c64_61 = arith.constant 64 : index
    %129 = vector.load %arg16[%c0_60, %c4, %c64_61] : memref<2x8x128xf32, #tpu.memory_space<vmem>>, vector<2x1x64xf32>
    tpu.vector_store %arg16[%c0_60, %c4, %c64_61], %128 {strides = array<i32>} : memref<2x8x128xf32, #tpu.memory_space<vmem>>, vector<2x1x64xf32>,
    %130 = vector.extract_strided_slice %71 {offsets = [0, 4, 0], sizes = [2, 1, 64], strides = [1, 1, 1]} : vector<2x8x128xf32> to vector<2x1x64xf32>
    %131 = vector.shape_cast %130 : vector<2x1x64xf32> to vector<2x64xf32>
    %132 = vector.extract_strided_slice %71 {offsets = [0, 3, 64], sizes = [2, 1, 64], strides = [1, 1, 1]} : vector<2x8x128xf32> to vector<2x1x64xf32>
    %133 = vector.shape_cast %132 : vector<2x1x64xf32> to vector<2x64xf32>
    %134 = tpu.concatenate %131, %133 in 1 : vector<2x64xf32>, vector<2x64xf32> -> vector<2x128xf32>
    %cst_62 = arith.constant dense<0.000000e+00> : vector<2x128xf32>
    %135 = tpu.matmul %123, %72, %cst_62 {dimension_numbers = #tpu.dot_dimension_numbers<[1], [0], [0], [1], [0, 0, 1, 1], [], []>} : vector<2x128xf32>, vector<128x128xf32>, vector<2x128xf32> -> vector<2x128xf32>
    %136 = arith.addf %134, %135 : vector<2x128xf32>
    %137 = math.tanh %136 : vector<2x128xf32>
    %138 = vector.extract_strided_slice %137 {offsets = [0, 0], sizes = [2, 64], strides = [1, 1]} : vector<2x128xf32> to vector<2x64xf32>
    %139 = vector.shape_cast %138 : vector<2x64xf32> to vector<2x1x64xf32>
    %c0_63 = arith.constant 0 : index
    %c4_64 = arith.constant 4 : index
    %c0_65 = arith.constant 0 : index
    %140 = vector.load %arg16[%c0_63, %c4_64, %c0_65] : memref<2x8x128xf32, #tpu.memory_space<vmem>>, vector<2x1x64xf32>
    tpu.vector_store %arg16[%c0_63, %c4_64, %c0_65], %139 {strides = array<i32>} : memref<2x8x128xf32, #tpu.memory_space<vmem>>, vector<2x1x64xf32>,
    %141 = vector.extract_strided_slice %137 {offsets = [0, 64], sizes = [2, 64], strides = [1, 1]} : vector<2x128xf32> to vector<2x64xf32>
    %142 = vector.shape_cast %141 : vector<2x64xf32> to vector<2x1x64xf32>
    %c0_66 = arith.constant 0 : index
    %c3_67 = arith.constant 3 : index
    %c64_68 = arith.constant 64 : index
    %143 = vector.load %arg16[%c0_66, %c3_67, %c64_68] : memref<2x8x128xf32, #tpu.memory_space<vmem>>, vector<2x1x64xf32>
    tpu.vector_store %arg16[%c0_66, %c3_67, %c64_68], %142 {strides = array<i32>} : memref<2x8x128xf32, #tpu.memory_space<vmem>>, vector<2x1x64xf32>,
    %144 = vector.extract_strided_slice %71 {offsets = [0, 5, 0], sizes = [2, 1, 64], strides = [1, 1, 1]} : vector<2x8x128xf32> to vector<2x1x64xf32>
    %145 = vector.shape_cast %144 : vector<2x1x64xf32> to vector<2x64xf32>
    %146 = vector.extract_strided_slice %71 {offsets = [0, 2, 64], sizes = [2, 1, 64], strides = [1, 1, 1]} : vector<2x8x128xf32> to vector<2x1x64xf32>
    %147 = vector.shape_cast %146 : vector<2x1x64xf32> to vector<2x64xf32>
    %148 = tpu.concatenate %145, %147 in 1 : vector<2x64xf32>, vector<2x64xf32> -> vector<2x128xf32>
    %cst_69 = arith.constant dense<0.000000e+00> : vector<2x128xf32>
    %149 = tpu.matmul %137, %72, %cst_69 {dimension_numbers = #tpu.dot_dimension_numbers<[1], [0], [0], [1], [0, 0, 1, 1], [], []>} : vector<2x128xf32>, vector<128x128xf32>, vector<2x128xf32> -> vector<2x128xf32>
    %150 = arith.addf %148, %149 : vector<2x128xf32>
    %151 = math.tanh %150 : vector<2x128xf32>
    %152 = vector.extract_strided_slice %151 {offsets = [0, 0], sizes = [2, 64], strides = [1, 1]} : vector<2x128xf32> to vector<2x64xf32>
    %153 = vector.shape_cast %152 : vector<2x64xf32> to vector<2x1x64xf32>
    %c0_70 = arith.constant 0 : index
    %c5_71 = arith.constant 5 : index
    %c0_72 = arith.constant 0 : index
    %154 = vector.load %arg16[%c0_70, %c5_71, %c0_72] : memref<2x8x128xf32, #tpu.memory_space<vmem>>, vector<2x1x64xf32>
    tpu.vector_store %arg16[%c0_70, %c5_71, %c0_72], %153 {strides = array<i32>} : memref<2x8x128xf32, #tpu.memory_space<vmem>>, vector<2x1x64xf32>,
    %155 = vector.extract_strided_slice %151 {offsets = [0, 64], sizes = [2, 64], strides = [1, 1]} : vector<2x128xf32> to vector<2x64xf32>
    %156 = vector.shape_cast %155 : vector<2x64xf32> to vector<2x1x64xf32>
    %c0_73 = arith.constant 0 : index
    %c2_74 = arith.constant 2 : index
    %c64_75 = arith.constant 64 : index
    %157 = vector.load %arg16[%c0_73, %c2_74, %c64_75] : memref<2x8x128xf32, #tpu.memory_space<vmem>>, vector<2x1x64xf32>
    tpu.vector_store %arg16[%c0_73, %c2_74, %c64_75], %156 {strides = array<i32>} : memref<2x8x128xf32, #tpu.memory_space<vmem>>, vector<2x1x64xf32>,
    %158 = vector.extract_strided_slice %71 {offsets = [0, 6, 0], sizes = [2, 1, 64], strides = [1, 1, 1]} : vector<2x8x128xf32> to vector<2x1x64xf32>
    %159 = vector.shape_cast %158 : vector<2x1x64xf32> to vector<2x64xf32>
    %160 = vector.extract_strided_slice %71 {offsets = [0, 1, 64], sizes = [2, 1, 64], strides = [1, 1, 1]} : vector<2x8x128xf32> to vector<2x1x64xf32>
    %161 = vector.shape_cast %160 : vector<2x1x64xf32> to vector<2x64xf32>
    %162 = tpu.concatenate %159, %161 in 1 : vector<2x64xf32>, vector<2x64xf32> -> vector<2x128xf32>
    %cst_76 = arith.constant dense<0.000000e+00> : vector<2x128xf32>
    %163 = tpu.matmul %151, %72, %cst_76 {dimension_numbers = #tpu.dot_dimension_numbers<[1], [0], [0], [1], [0, 0, 1, 1], [], []>} : vector<2x128xf32>, vector<128x128xf32>, vector<2x128xf32> -> vector<2x128xf32>
    %164 = arith.addf %162, %163 : vector<2x128xf32>
    %165 = math.tanh %164 : vector<2x128xf32>
    %166 = vector.extract_strided_slice %165 {offsets = [0, 0], sizes = [2, 64], strides = [1, 1]} : vector<2x128xf32> to vector<2x64xf32>
    %167 = vector.shape_cast %166 : vector<2x64xf32> to vector<2x1x64xf32>
    %c0_77 = arith.constant 0 : index
    %c6_78 = arith.constant 6 : index
    %c0_79 = arith.constant 0 : index
    %168 = vector.load %arg16[%c0_77, %c6_78, %c0_79] : memref<2x8x128xf32, #tpu.memory_space<vmem>>, vector<2x1x64xf32>
    tpu.vector_store %arg16[%c0_77, %c6_78, %c0_79], %167 {strides = array<i32>} : memref<2x8x128xf32, #tpu.memory_space<vmem>>, vector<2x1x64xf32>,
    %169 = vector.extract_strided_slice %165 {offsets = [0, 64], sizes = [2, 64], strides = [1, 1]} : vector<2x128xf32> to vector<2x64xf32>
    %170 = vector.shape_cast %169 : vector<2x64xf32> to vector<2x1x64xf32>
    %c0_80 = arith.constant 0 : index
    %c1_81 = arith.constant 1 : index
    %c64_82 = arith.constant 64 : index
    %171 = vector.load %arg16[%c0_80, %c1_81, %c64_82] : memref<2x8x128xf32, #tpu.memory_space<vmem>>, vector<2x1x64xf32>
    tpu.vector_store %arg16[%c0_80, %c1_81, %c64_82], %170 {strides = array<i32>} : memref<2x8x128xf32, #tpu.memory_space<vmem>>, vector<2x1x64xf32>,
    %172 = vector.extract_strided_slice %71 {offsets = [0, 7, 0], sizes = [2, 1, 64], strides = [1, 1, 1]} : vector<2x8x128xf32> to vector<2x1x64xf32>
    %173 = vector.shape_cast %172 : vector<2x1x64xf32> to vector<2x64xf32>
    %174 = vector.extract_strided_slice %71 {offsets = [0, 0, 64], sizes = [2, 1, 64], strides = [1, 1, 1]} : vector<2x8x128xf32> to vector<2x1x64xf32>
    %175 = vector.shape_cast %174 : vector<2x1x64xf32> to vector<2x64xf32>
    %176 = tpu.concatenate %173, %175 in 1 : vector<2x64xf32>, vector<2x64xf32> -> vector<2x128xf32>
    %cst_83 = arith.constant dense<0.000000e+00> : vector<2x128xf32>
    %177 = tpu.matmul %165, %72, %cst_83 {dimension_numbers = #tpu.dot_dimension_numbers<[1], [0], [0], [1], [0, 0, 1, 1], [], []>} : vector<2x128xf32>, vector<128x128xf32>, vector<2x128xf32> -> vector<2x128xf32>
    %178 = arith.addf %176, %177 : vector<2x128xf32>
    %179 = math.tanh %178 : vector<2x128xf32>
    %180 = vector.extract_strided_slice %179 {offsets = [0, 0], sizes = [2, 64], strides = [1, 1]} : vector<2x128xf32> to vector<2x64xf32>
    %181 = vector.shape_cast %180 : vector<2x64xf32> to vector<2x1x64xf32>
    %c0_84 = arith.constant 0 : index
    %c7_85 = arith.constant 7 : index
    %c0_86 = arith.constant 0 : index
    %182 = vector.load %arg16[%c0_84, %c7_85, %c0_86] : memref<2x8x128xf32, #tpu.memory_space<vmem>>, vector<2x1x64xf32>
    tpu.vector_store %arg16[%c0_84, %c7_85, %c0_86], %181 {strides = array<i32>} : memref<2x8x128xf32, #tpu.memory_space<vmem>>, vector<2x1x64xf32>,
    %183 = vector.extract_strided_slice %179 {offsets = [0, 64], sizes = [2, 64], strides = [1, 1]} : vector<2x128xf32> to vector<2x64xf32>
    %184 = vector.shape_cast %183 : vector<2x64xf32> to vector<2x1x64xf32>
    %c0_87 = arith.constant 0 : index
    %c0_88 = arith.constant 0 : index
    %c64_89 = arith.constant 64 : index
    %185 = vector.load %arg16[%c0_87, %c0_88, %c64_89] : memref<2x8x128xf32, #tpu.memory_space<vmem>>, vector<2x1x64xf32>
    tpu.vector_store %arg16[%c0_87, %c0_88, %c64_89], %184 {strides = array<i32>} : memref<2x8x128xf32, #tpu.memory_space<vmem>>, vector<2x1x64xf32>,
    %c0_90 = arith.constant 0 : index
    %c0_91 = arith.constant 0 : index
    %c0_92 = arith.constant 0 : index
    %186 = vector.load %arg16[%c0_90, %c0_91, %c0_92] : memref<2x8x128xf32, #tpu.memory_space<vmem>>, vector<2x8x128xf32>
    %c0_93 = arith.constant 0 : index
    %c0_94 = arith.constant 0 : index
    %187 = vector.load %arg12[%c0_93, %c0_94] : memref<128x128xf32, #tpu.memory_space<vmem>>, vector<128x128xf32>
    %cst_95 = arith.constant dense<0.000000e+00> : vector<32x128xf32>
    %188 = tpu.matmul %65, %187, %cst_95 {dimension_numbers = #tpu.dot_dimension_numbers<[1], [0], [0], [1], [0, 0, 1, 1], [], []>} : vector<32x128xf32>, vector<128x128xf32>, vector<32x128xf32> -> vector<32x128xf32>
    %c0_96 = arith.constant 0 : index
    %c0_97 = arith.constant 0 : index
    %189 = vector.load %arg13[%c0_96, %c0_97] : memref<1x128xf32, #tpu.memory_space<vmem>>, vector<1x128xf32>
    %190 = vector.broadcast %189 : vector<1x128xf32> to vector<32x128xf32>
    %191 = arith.addf %188, %190 : vector<32x128xf32>
    %192 = vector.shape_cast %191 : vector<32x128xf32> to vector<2x16x128xf32>
    %c0_98 = arith.constant 0 : index
    %c0_99 = arith.constant 0 : index
    %193 = vector.load %arg14[%c0_98, %c0_99] : memref<128x128xf32, #tpu.memory_space<vmem>>, vector<128x128xf32>
    %cst_100 = arith.constant 0.000000e+00 : f32
    %194 = vector.broadcast %cst_100 : f32 to vector<2x128xf32>
    %195 = vector.extract_strided_slice %192 {offsets = [0, 0, 0], sizes = [2, 1, 64], strides = [1, 1, 1]} : vector<2x16x128xf32> to vector<2x1x64xf32>
    %196 = vector.shape_cast %195 : vector<2x1x64xf32> to vector<2x64xf32>
    %197 = vector.extract_strided_slice %192 {offsets = [0, 15, 64], sizes = [2, 1, 64], strides = [1, 1, 1]} : vector<2x16x128xf32> to vector<2x1x64xf32>
    %198 = vector.shape_cast %197 : vector<2x1x64xf32> to vector<2x64xf32>
    %199 = tpu.concatenate %196, %198 in 1 : vector<2x64xf32>, vector<2x64xf32> -> vector<2x128xf32>
    %cst_101 = arith.constant dense<0.000000e+00> : vector<2x128xf32>
    %200 = tpu.matmul %194, %193, %cst_101 {dimension_numbers = #tpu.dot_dimension_numbers<[1], [0], [0], [1], [0, 0, 1, 1], [], []>} : vector<2x128xf32>, vector<128x128xf32>, vector<2x128xf32> -> vector<2x128xf32>
    %201 = arith.addf %199, %200 : vector<2x128xf32>
    %202 = math.tanh %201 : vector<2x128xf32>
    %203 = vector.extract_strided_slice %202 {offsets = [0, 0], sizes = [2, 64], strides = [1, 1]} : vector<2x128xf32> to vector<2x64xf32>
    %204 = vector.shape_cast %203 : vector<2x64xf32> to vector<2x1x64xf32>
    %c0_102 = arith.constant 0 : index
    %c0_103 = arith.constant 0 : index
    %c0_104 = arith.constant 0 : index
    %205 = vector.load %arg17[%c0_102, %c0_103, %c0_104] : memref<2x16x128xf32, #tpu.memory_space<vmem>>, vector<2x1x64xf32>
    tpu.vector_store %arg17[%c0_102, %c0_103, %c0_104], %204 {strides = array<i32>} : memref<2x16x128xf32, #tpu.memory_space<vmem>>, vector<2x1x64xf32>,
    %206 = vector.extract_strided_slice %202 {offsets = [0, 64], sizes = [2, 64], strides = [1, 1]} : vector<2x128xf32> to vector<2x64xf32>
    %207 = vector.shape_cast %206 : vector<2x64xf32> to vector<2x1x64xf32>
    %c0_105 = arith.constant 0 : index
    %c15 = arith.constant 15 : index
    %c64_106 = arith.constant 64 : index
    %208 = vector.load %arg17[%c0_105, %c15, %c64_106] : memref<2x16x128xf32, #tpu.memory_space<vmem>>, vector<2x1x64xf32>
    tpu.vector_store %arg17[%c0_105, %c15, %c64_106], %207 {strides = array<i32>} : memref<2x16x128xf32, #tpu.memory_space<vmem>>, vector<2x1x64xf32>,
    %209 = vector.extract_strided_slice %192 {offsets = [0, 1, 0], sizes = [2, 1, 64], strides = [1, 1, 1]} : vector<2x16x128xf32> to vector<2x1x64xf32>
    %210 = vector.shape_cast %209 : vector<2x1x64xf32> to vector<2x64xf32>
    %211 = vector.extract_strided_slice %192 {offsets = [0, 14, 64], sizes = [2, 1, 64], strides = [1, 1, 1]} : vector<2x16x128xf32> to vector<2x1x64xf32>
    %212 = vector.shape_cast %211 : vector<2x1x64xf32> to vector<2x64xf32>
    %213 = tpu.concatenate %210, %212 in 1 : vector<2x64xf32>, vector<2x64xf32> -> vector<2x128xf32>
    %cst_107 = arith.constant dense<0.000000e+00> : vector<2x128xf32>
    %214 = tpu.matmul %202, %193, %cst_107 {dimension_numbers = #tpu.dot_dimension_numbers<[1], [0], [0], [1], [0, 0, 1, 1], [], []>} : vector<2x128xf32>, vector<128x128xf32>, vector<2x128xf32> -> vector<2x128xf32>
    %215 = arith.addf %213, %214 : vector<2x128xf32>
    %216 = math.tanh %215 : vector<2x128xf32>
    %217 = vector.extract_strided_slice %216 {offsets = [0, 0], sizes = [2, 64], strides = [1, 1]} : vector<2x128xf32> to vector<2x64xf32>
    %218 = vector.shape_cast %217 : vector<2x64xf32> to vector<2x1x64xf32>
    %c0_108 = arith.constant 0 : index
    %c1_109 = arith.constant 1 : index
    %c0_110 = arith.constant 0 : index
    %219 = vector.load %arg17[%c0_108, %c1_109, %c0_110] : memref<2x16x128xf32, #tpu.memory_space<vmem>>, vector<2x1x64xf32>
    tpu.vector_store %arg17[%c0_108, %c1_109, %c0_110], %218 {strides = array<i32>} : memref<2x16x128xf32, #tpu.memory_space<vmem>>, vector<2x1x64xf32>,
    %220 = vector.extract_strided_slice %216 {offsets = [0, 64], sizes = [2, 64], strides = [1, 1]} : vector<2x128xf32> to vector<2x64xf32>
    %221 = vector.shape_cast %220 : vector<2x64xf32> to vector<2x1x64xf32>
    %c0_111 = arith.constant 0 : index
    %c14 = arith.constant 14 : index
    %c64_112 = arith.constant 64 : index
    %222 = vector.load %arg17[%c0_111, %c14, %c64_112] : memref<2x16x128xf32, #tpu.memory_space<vmem>>, vector<2x1x64xf32>
    tpu.vector_store %arg17[%c0_111, %c14, %c64_112], %221 {strides = array<i32>} : memref<2x16x128xf32, #tpu.memory_space<vmem>>, vector<2x1x64xf32>,
    %223 = vector.extract_strided_slice %192 {offsets = [0, 2, 0], sizes = [2, 1, 64], strides = [1, 1, 1]} : vector<2x16x128xf32> to vector<2x1x64xf32>
    %224 = vector.shape_cast %223 : vector<2x1x64xf32> to vector<2x64xf32>
    %225 = vector.extract_strided_slice %192 {offsets = [0, 13, 64], sizes = [2, 1, 64], strides = [1, 1, 1]} : vector<2x16x128xf32> to vector<2x1x64xf32>
    %226 = vector.shape_cast %225 : vector<2x1x64xf32> to vector<2x64xf32>
    %227 = tpu.concatenate %224, %226 in 1 : vector<2x64xf32>, vector<2x64xf32> -> vector<2x128xf32>
    %cst_113 = arith.constant dense<0.000000e+00> : vector<2x128xf32>
    %228 = tpu.matmul %216, %193, %cst_113 {dimension_numbers = #tpu.dot_dimension_numbers<[1], [0], [0], [1], [0, 0, 1, 1], [], []>} : vector<2x128xf32>, vector<128x128xf32>, vector<2x128xf32> -> vector<2x128xf32>
    %229 = arith.addf %227, %228 : vector<2x128xf32>
    %230 = math.tanh %229 : vector<2x128xf32>
    %231 = vector.extract_strided_slice %230 {offsets = [0, 0], sizes = [2, 64], strides = [1, 1]} : vector<2x128xf32> to vector<2x64xf32>
    %232 = vector.shape_cast %231 : vector<2x64xf32> to vector<2x1x64xf32>
    %c0_114 = arith.constant 0 : index
    %c2_115 = arith.constant 2 : index
    %c0_116 = arith.constant 0 : index
    %233 = vector.load %arg17[%c0_114, %c2_115, %c0_116] : memref<2x16x128xf32, #tpu.memory_space<vmem>>, vector<2x1x64xf32>
    tpu.vector_store %arg17[%c0_114, %c2_115, %c0_116], %232 {strides = array<i32>} : memref<2x16x128xf32, #tpu.memory_space<vmem>>, vector<2x1x64xf32>,
    %234 = vector.extract_strided_slice %230 {offsets = [0, 64], sizes = [2, 64], strides = [1, 1]} : vector<2x128xf32> to vector<2x64xf32>
    %235 = vector.shape_cast %234 : vector<2x64xf32> to vector<2x1x64xf32>
    %c0_117 = arith.constant 0 : index
    %c13 = arith.constant 13 : index
    %c64_118 = arith.constant 64 : index
    %236 = vector.load %arg17[%c0_117, %c13, %c64_118] : memref<2x16x128xf32, #tpu.memory_space<vmem>>, vector<2x1x64xf32>
    tpu.vector_store %arg17[%c0_117, %c13, %c64_118], %235 {strides = array<i32>} : memref<2x16x128xf32, #tpu.memory_space<vmem>>, vector<2x1x64xf32>,
    %237 = vector.extract_strided_slice %192 {offsets = [0, 3, 0], sizes = [2, 1, 64], strides = [1, 1, 1]} : vector<2x16x128xf32> to vector<2x1x64xf32>
    %238 = vector.shape_cast %237 : vector<2x1x64xf32> to vector<2x64xf32>
    %239 = vector.extract_strided_slice %192 {offsets = [0, 12, 64], sizes = [2, 1, 64], strides = [1, 1, 1]} : vector<2x16x128xf32> to vector<2x1x64xf32>
    %240 = vector.shape_cast %239 : vector<2x1x64xf32> to vector<2x64xf32>
    %241 = tpu.concatenate %238, %240 in 1 : vector<2x64xf32>, vector<2x64xf32> -> vector<2x128xf32>
    %cst_119 = arith.constant dense<0.000000e+00> : vector<2x128xf32>
    %242 = tpu.matmul %230, %193, %cst_119 {dimension_numbers = #tpu.dot_dimension_numbers<[1], [0], [0], [1], [0, 0, 1, 1], [], []>} : vector<2x128xf32>, vector<128x128xf32>, vector<2x128xf32> -> vector<2x128xf32>
    %243 = arith.addf %241, %242 : vector<2x128xf32>
    %244 = math.tanh %243 : vector<2x128xf32>
    %245 = vector.extract_strided_slice %244 {offsets = [0, 0], sizes = [2, 64], strides = [1, 1]} : vector<2x128xf32> to vector<2x64xf32>
    %246 = vector.shape_cast %245 : vector<2x64xf32> to vector<2x1x64xf32>
    %c0_120 = arith.constant 0 : index
    %c3_121 = arith.constant 3 : index
    %c0_122 = arith.constant 0 : index
    %247 = vector.load %arg17[%c0_120, %c3_121, %c0_122] : memref<2x16x128xf32, #tpu.memory_space<vmem>>, vector<2x1x64xf32>
    tpu.vector_store %arg17[%c0_120, %c3_121, %c0_122], %246 {strides = array<i32>} : memref<2x16x128xf32, #tpu.memory_space<vmem>>, vector<2x1x64xf32>,
    %248 = vector.extract_strided_slice %244 {offsets = [0, 64], sizes = [2, 64], strides = [1, 1]} : vector<2x128xf32> to vector<2x64xf32>
    %249 = vector.shape_cast %248 : vector<2x64xf32> to vector<2x1x64xf32>
    %c0_123 = arith.constant 0 : index
    %c12 = arith.constant 12 : index
    %c64_124 = arith.constant 64 : index
    %250 = vector.load %arg17[%c0_123, %c12, %c64_124] : memref<2x16x128xf32, #tpu.memory_space<vmem>>, vector<2x1x64xf32>
    tpu.vector_store %arg17[%c0_123, %c12, %c64_124], %249 {strides = array<i32>} : memref<2x16x128xf32, #tpu.memory_space<vmem>>, vector<2x1x64xf32>,
    %251 = vector.extract_strided_slice %192 {offsets = [0, 4, 0], sizes = [2, 1, 64], strides = [1, 1, 1]} : vector<2x16x128xf32> to vector<2x1x64xf32>
    %252 = vector.shape_cast %251 : vector<2x1x64xf32> to vector<2x64xf32>
    %253 = vector.extract_strided_slice %192 {offsets = [0, 11, 64], sizes = [2, 1, 64], strides = [1, 1, 1]} : vector<2x16x128xf32> to vector<2x1x64xf32>
    %254 = vector.shape_cast %253 : vector<2x1x64xf32> to vector<2x64xf32>
    %255 = tpu.concatenate %252, %254 in 1 : vector<2x64xf32>, vector<2x64xf32> -> vector<2x128xf32>
    %cst_125 = arith.constant dense<0.000000e+00> : vector<2x128xf32>
    %256 = tpu.matmul %244, %193, %cst_125 {dimension_numbers = #tpu.dot_dimension_numbers<[1], [0], [0], [1], [0, 0, 1, 1], [], []>} : vector<2x128xf32>, vector<128x128xf32>, vector<2x128xf32> -> vector<2x128xf32>
    %257 = arith.addf %255, %256 : vector<2x128xf32>
    %258 = math.tanh %257 : vector<2x128xf32>
    %259 = vector.extract_strided_slice %258 {offsets = [0, 0], sizes = [2, 64], strides = [1, 1]} : vector<2x128xf32> to vector<2x64xf32>
    %260 = vector.shape_cast %259 : vector<2x64xf32> to vector<2x1x64xf32>
    %c0_126 = arith.constant 0 : index
    %c4_127 = arith.constant 4 : index
    %c0_128 = arith.constant 0 : index
    %261 = vector.load %arg17[%c0_126, %c4_127, %c0_128] : memref<2x16x128xf32, #tpu.memory_space<vmem>>, vector<2x1x64xf32>
    tpu.vector_store %arg17[%c0_126, %c4_127, %c0_128], %260 {strides = array<i32>} : memref<2x16x128xf32, #tpu.memory_space<vmem>>, vector<2x1x64xf32>,
    %262 = vector.extract_strided_slice %258 {offsets = [0, 64], sizes = [2, 64], strides = [1, 1]} : vector<2x128xf32> to vector<2x64xf32>
    %263 = vector.shape_cast %262 : vector<2x64xf32> to vector<2x1x64xf32>
    %c0_129 = arith.constant 0 : index
    %c11 = arith.constant 11 : index
    %c64_130 = arith.constant 64 : index
    %264 = vector.load %arg17[%c0_129, %c11, %c64_130] : memref<2x16x128xf32, #tpu.memory_space<vmem>>, vector<2x1x64xf32>
    tpu.vector_store %arg17[%c0_129, %c11, %c64_130], %263 {strides = array<i32>} : memref<2x16x128xf32, #tpu.memory_space<vmem>>, vector<2x1x64xf32>,
    %265 = vector.extract_strided_slice %192 {offsets = [0, 5, 0], sizes = [2, 1, 64], strides = [1, 1, 1]} : vector<2x16x128xf32> to vector<2x1x64xf32>
    %266 = vector.shape_cast %265 : vector<2x1x64xf32> to vector<2x64xf32>
    %267 = vector.extract_strided_slice %192 {offsets = [0, 10, 64], sizes = [2, 1, 64], strides = [1, 1, 1]} : vector<2x16x128xf32> to vector<2x1x64xf32>
    %268 = vector.shape_cast %267 : vector<2x1x64xf32> to vector<2x64xf32>
    %269 = tpu.concatenate %266, %268 in 1 : vector<2x64xf32>, vector<2x64xf32> -> vector<2x128xf32>
    %cst_131 = arith.constant dense<0.000000e+00> : vector<2x128xf32>
    %270 = tpu.matmul %258, %193, %cst_131 {dimension_numbers = #tpu.dot_dimension_numbers<[1], [0], [0], [1], [0, 0, 1, 1], [], []>} : vector<2x128xf32>, vector<128x128xf32>, vector<2x128xf32> -> vector<2x128xf32>
    %271 = arith.addf %269, %270 : vector<2x128xf32>
    %272 = math.tanh %271 : vector<2x128xf32>
    %273 = vector.extract_strided_slice %272 {offsets = [0, 0], sizes = [2, 64], strides = [1, 1]} : vector<2x128xf32> to vector<2x64xf32>
    %274 = vector.shape_cast %273 : vector<2x64xf32> to vector<2x1x64xf32>
    %c0_132 = arith.constant 0 : index
    %c5_133 = arith.constant 5 : index
    %c0_134 = arith.constant 0 : index
    %275 = vector.load %arg17[%c0_132, %c5_133, %c0_134] : memref<2x16x128xf32, #tpu.memory_space<vmem>>, vector<2x1x64xf32>
    tpu.vector_store %arg17[%c0_132, %c5_133, %c0_134], %274 {strides = array<i32>} : memref<2x16x128xf32, #tpu.memory_space<vmem>>, vector<2x1x64xf32>,
    %276 = vector.extract_strided_slice %272 {offsets = [0, 64], sizes = [2, 64], strides = [1, 1]} : vector<2x128xf32> to vector<2x64xf32>
    %277 = vector.shape_cast %276 : vector<2x64xf32> to vector<2x1x64xf32>
    %c0_135 = arith.constant 0 : index
    %c10 = arith.constant 10 : index
    %c64_136 = arith.constant 64 : index
    %278 = vector.load %arg17[%c0_135, %c10, %c64_136] : memref<2x16x128xf32, #tpu.memory_space<vmem>>, vector<2x1x64xf32>
    tpu.vector_store %arg17[%c0_135, %c10, %c64_136], %277 {strides = array<i32>} : memref<2x16x128xf32, #tpu.memory_space<vmem>>, vector<2x1x64xf32>,
    %279 = vector.extract_strided_slice %192 {offsets = [0, 6, 0], sizes = [2, 1, 64], strides = [1, 1, 1]} : vector<2x16x128xf32> to vector<2x1x64xf32>
    %280 = vector.shape_cast %279 : vector<2x1x64xf32> to vector<2x64xf32>
    %281 = vector.extract_strided_slice %192 {offsets = [0, 9, 64], sizes = [2, 1, 64], strides = [1, 1, 1]} : vector<2x16x128xf32> to vector<2x1x64xf32>
    %282 = vector.shape_cast %281 : vector<2x1x64xf32> to vector<2x64xf32>
    %283 = tpu.concatenate %280, %282 in 1 : vector<2x64xf32>, vector<2x64xf32> -> vector<2x128xf32>
    %cst_137 = arith.constant dense<0.000000e+00> : vector<2x128xf32>
    %284 = tpu.matmul %272, %193, %cst_137 {dimension_numbers = #tpu.dot_dimension_numbers<[1], [0], [0], [1], [0, 0, 1, 1], [], []>} : vector<2x128xf32>, vector<128x128xf32>, vector<2x128xf32> -> vector<2x128xf32>
    %285 = arith.addf %283, %284 : vector<2x128xf32>
    %286 = math.tanh %285 : vector<2x128xf32>
    %287 = vector.extract_strided_slice %286 {offsets = [0, 0], sizes = [2, 64], strides = [1, 1]} : vector<2x128xf32> to vector<2x64xf32>
    %288 = vector.shape_cast %287 : vector<2x64xf32> to vector<2x1x64xf32>
    %c0_138 = arith.constant 0 : index
    %c6_139 = arith.constant 6 : index
    %c0_140 = arith.constant 0 : index
    %289 = vector.load %arg17[%c0_138, %c6_139, %c0_140] : memref<2x16x128xf32, #tpu.memory_space<vmem>>, vector<2x1x64xf32>
    tpu.vector_store %arg17[%c0_138, %c6_139, %c0_140], %288 {strides = array<i32>} : memref<2x16x128xf32, #tpu.memory_space<vmem>>, vector<2x1x64xf32>,
    %290 = vector.extract_strided_slice %286 {offsets = [0, 64], sizes = [2, 64], strides = [1, 1]} : vector<2x128xf32> to vector<2x64xf32>
    %291 = vector.shape_cast %290 : vector<2x64xf32> to vector<2x1x64xf32>
    %c0_141 = arith.constant 0 : index
    %c9 = arith.constant 9 : index
    %c64_142 = arith.constant 64 : index
    %292 = vector.load %arg17[%c0_141, %c9, %c64_142] : memref<2x16x128xf32, #tpu.memory_space<vmem>>, vector<2x1x64xf32>
    tpu.vector_store %arg17[%c0_141, %c9, %c64_142], %291 {strides = array<i32>} : memref<2x16x128xf32, #tpu.memory_space<vmem>>, vector<2x1x64xf32>,
    %293 = vector.extract_strided_slice %192 {offsets = [0, 7, 0], sizes = [2, 1, 64], strides = [1, 1, 1]} : vector<2x16x128xf32> to vector<2x1x64xf32>
    %294 = vector.shape_cast %293 : vector<2x1x64xf32> to vector<2x64xf32>
    %295 = vector.extract_strided_slice %192 {offsets = [0, 8, 64], sizes = [2, 1, 64], strides = [1, 1, 1]} : vector<2x16x128xf32> to vector<2x1x64xf32>
    %296 = vector.shape_cast %295 : vector<2x1x64xf32> to vector<2x64xf32>
    %297 = tpu.concatenate %294, %296 in 1 : vector<2x64xf32>, vector<2x64xf32> -> vector<2x128xf32>
    %cst_143 = arith.constant dense<0.000000e+00> : vector<2x128xf32>
    %298 = tpu.matmul %286, %193, %cst_143 {dimension_numbers = #tpu.dot_dimension_numbers<[1], [0], [0], [1], [0, 0, 1, 1], [], []>} : vector<2x128xf32>, vector<128x128xf32>, vector<2x128xf32> -> vector<2x128xf32>
    %299 = arith.addf %297, %298 : vector<2x128xf32>
    %300 = math.tanh %299 : vector<2x128xf32>
    %301 = vector.extract_strided_slice %300 {offsets = [0, 0], sizes = [2, 64], strides = [1, 1]} : vector<2x128xf32> to vector<2x64xf32>
    %302 = vector.shape_cast %301 : vector<2x64xf32> to vector<2x1x64xf32>
    %c0_144 = arith.constant 0 : index
    %c7_145 = arith.constant 7 : index
    %c0_146 = arith.constant 0 : index
    %303 = vector.load %arg17[%c0_144, %c7_145, %c0_146] : memref<2x16x128xf32, #tpu.memory_space<vmem>>, vector<2x1x64xf32>
    tpu.vector_store %arg17[%c0_144, %c7_145, %c0_146], %302 {strides = array<i32>} : memref<2x16x128xf32, #tpu.memory_space<vmem>>, vector<2x1x64xf32>,
    %304 = vector.extract_strided_slice %300 {offsets = [0, 64], sizes = [2, 64], strides = [1, 1]} : vector<2x128xf32> to vector<2x64xf32>
    %305 = vector.shape_cast %304 : vector<2x64xf32> to vector<2x1x64xf32>
    %c0_147 = arith.constant 0 : index
    %c8 = arith.constant 8 : index
    %c64_148 = arith.constant 64 : index
    %306 = vector.load %arg17[%c0_147, %c8, %c64_148] : memref<2x16x128xf32, #tpu.memory_space<vmem>>, vector<2x1x64xf32>
    tpu.vector_store %arg17[%c0_147, %c8, %c64_148], %305 {strides = array<i32>} : memref<2x16x128xf32, #tpu.memory_space<vmem>>, vector<2x1x64xf32>,
    %307 = vector.extract_strided_slice %192 {offsets = [0, 8, 0], sizes = [2, 1, 64], strides = [1, 1, 1]} : vector<2x16x128xf32> to vector<2x1x64xf32>
    %308 = vector.shape_cast %307 : vector<2x1x64xf32> to vector<2x64xf32>
    %309 = vector.extract_strided_slice %192 {offsets = [0, 7, 64], sizes = [2, 1, 64], strides = [1, 1, 1]} : vector<2x16x128xf32> to vector<2x1x64xf32>
    %310 = vector.shape_cast %309 : vector<2x1x64xf32> to vector<2x64xf32>
    %311 = tpu.concatenate %308, %310 in 1 : vector<2x64xf32>, vector<2x64xf32> -> vector<2x128xf32>
    %cst_149 = arith.constant dense<0.000000e+00> : vector<2x128xf32>
    %312 = tpu.matmul %300, %193, %cst_149 {dimension_numbers = #tpu.dot_dimension_numbers<[1], [0], [0], [1], [0, 0, 1, 1], [], []>} : vector<2x128xf32>, vector<128x128xf32>, vector<2x128xf32> -> vector<2x128xf32>
    %313 = arith.addf %311, %312 : vector<2x128xf32>
    %314 = math.tanh %313 : vector<2x128xf32>
    %315 = vector.extract_strided_slice %314 {offsets = [0, 0], sizes = [2, 64], strides = [1, 1]} : vector<2x128xf32> to vector<2x64xf32>
    %316 = vector.shape_cast %315 : vector<2x64xf32> to vector<2x1x64xf32>
    %c0_150 = arith.constant 0 : index
    %c8_151 = arith.constant 8 : index
    %c0_152 = arith.constant 0 : index
    %317 = vector.load %arg17[%c0_150, %c8_151, %c0_152] : memref<2x16x128xf32, #tpu.memory_space<vmem>>, vector<2x1x64xf32>
    tpu.vector_store %arg17[%c0_150, %c8_151, %c0_152], %316 {strides = array<i32>} : memref<2x16x128xf32, #tpu.memory_space<vmem>>, vector<2x1x64xf32>,
    %318 = vector.extract_strided_slice %314 {offsets = [0, 64], sizes = [2, 64], strides = [1, 1]} : vector<2x128xf32> to vector<2x64xf32>
    %319 = vector.shape_cast %318 : vector<2x64xf32> to vector<2x1x64xf32>
    %c0_153 = arith.constant 0 : index
    %c7_154 = arith.constant 7 : index
    %c64_155 = arith.constant 64 : index
    %320 = vector.load %arg17[%c0_153, %c7_154, %c64_155] : memref<2x16x128xf32, #tpu.memory_space<vmem>>, vector<2x1x64xf32>
    tpu.vector_store %arg17[%c0_153, %c7_154, %c64_155], %319 {strides = array<i32>} : memref<2x16x128xf32, #tpu.memory_space<vmem>>, vector<2x1x64xf32>,
    %321 = vector.extract_strided_slice %192 {offsets = [0, 9, 0], sizes = [2, 1, 64], strides = [1, 1, 1]} : vector<2x16x128xf32> to vector<2x1x64xf32>
    %322 = vector.shape_cast %321 : vector<2x1x64xf32> to vector<2x64xf32>
    %323 = vector.extract_strided_slice %192 {offsets = [0, 6, 64], sizes = [2, 1, 64], strides = [1, 1, 1]} : vector<2x16x128xf32> to vector<2x1x64xf32>
    %324 = vector.shape_cast %323 : vector<2x1x64xf32> to vector<2x64xf32>
    %325 = tpu.concatenate %322, %324 in 1 : vector<2x64xf32>, vector<2x64xf32> -> vector<2x128xf32>
    %cst_156 = arith.constant dense<0.000000e+00> : vector<2x128xf32>
    %326 = tpu.matmul %314, %193, %cst_156 {dimension_numbers = #tpu.dot_dimension_numbers<[1], [0], [0], [1], [0, 0, 1, 1], [], []>} : vector<2x128xf32>, vector<128x128xf32>, vector<2x128xf32> -> vector<2x128xf32>
    %327 = arith.addf %325, %326 : vector<2x128xf32>
    %328 = math.tanh %327 : vector<2x128xf32>
    %329 = vector.extract_strided_slice %328 {offsets = [0, 0], sizes = [2, 64], strides = [1, 1]} : vector<2x128xf32> to vector<2x64xf32>
    %330 = vector.shape_cast %329 : vector<2x64xf32> to vector<2x1x64xf32>
    %c0_157 = arith.constant 0 : index
    %c9_158 = arith.constant 9 : index
    %c0_159 = arith.constant 0 : index
    %331 = vector.load %arg17[%c0_157, %c9_158, %c0_159] : memref<2x16x128xf32, #tpu.memory_space<vmem>>, vector<2x1x64xf32>
    tpu.vector_store %arg17[%c0_157, %c9_158, %c0_159], %330 {strides = array<i32>} : memref<2x16x128xf32, #tpu.memory_space<vmem>>, vector<2x1x64xf32>,
    %332 = vector.extract_strided_slice %328 {offsets = [0, 64], sizes = [2, 64], strides = [1, 1]} : vector<2x128xf32> to vector<2x64xf32>
    %333 = vector.shape_cast %332 : vector<2x64xf32> to vector<2x1x64xf32>
    %c0_160 = arith.constant 0 : index
    %c6_161 = arith.constant 6 : index
    %c64_162 = arith.constant 64 : index
    %334 = vector.load %arg17[%c0_160, %c6_161, %c64_162] : memref<2x16x128xf32, #tpu.memory_space<vmem>>, vector<2x1x64xf32>
    tpu.vector_store %arg17[%c0_160, %c6_161, %c64_162], %333 {strides = array<i32>} : memref<2x16x128xf32, #tpu.memory_space<vmem>>, vector<2x1x64xf32>,
    %335 = vector.extract_strided_slice %192 {offsets = [0, 10, 0], sizes = [2, 1, 64], strides = [1, 1, 1]} : vector<2x16x128xf32> to vector<2x1x64xf32>
    %336 = vector.shape_cast %335 : vector<2x1x64xf32> to vector<2x64xf32>
    %337 = vector.extract_strided_slice %192 {offsets = [0, 5, 64], sizes = [2, 1, 64], strides = [1, 1, 1]} : vector<2x16x128xf32> to vector<2x1x64xf32>
    %338 = vector.shape_cast %337 : vector<2x1x64xf32> to vector<2x64xf32>
    %339 = tpu.concatenate %336, %338 in 1 : vector<2x64xf32>, vector<2x64xf32> -> vector<2x128xf32>
    %cst_163 = arith.constant dense<0.000000e+00> : vector<2x128xf32>
    %340 = tpu.matmul %328, %193, %cst_163 {dimension_numbers = #tpu.dot_dimension_numbers<[1], [0], [0], [1], [0, 0, 1, 1], [], []>} : vector<2x128xf32>, vector<128x128xf32>, vector<2x128xf32> -> vector<2x128xf32>
    %341 = arith.addf %339, %340 : vector<2x128xf32>
    %342 = math.tanh %341 : vector<2x128xf32>
    %343 = vector.extract_strided_slice %342 {offsets = [0, 0], sizes = [2, 64], strides = [1, 1]} : vector<2x128xf32> to vector<2x64xf32>
    %344 = vector.shape_cast %343 : vector<2x64xf32> to vector<2x1x64xf32>
    %c0_164 = arith.constant 0 : index
    %c10_165 = arith.constant 10 : index
    %c0_166 = arith.constant 0 : index
    %345 = vector.load %arg17[%c0_164, %c10_165, %c0_166] : memref<2x16x128xf32, #tpu.memory_space<vmem>>, vector<2x1x64xf32>
    tpu.vector_store %arg17[%c0_164, %c10_165, %c0_166], %344 {strides = array<i32>} : memref<2x16x128xf32, #tpu.memory_space<vmem>>, vector<2x1x64xf32>,
    %346 = vector.extract_strided_slice %342 {offsets = [0, 64], sizes = [2, 64], strides = [1, 1]} : vector<2x128xf32> to vector<2x64xf32>
    %347 = vector.shape_cast %346 : vector<2x64xf32> to vector<2x1x64xf32>
    %c0_167 = arith.constant 0 : index
    %c5_168 = arith.constant 5 : index
    %c64_169 = arith.constant 64 : index
    %348 = vector.load %arg17[%c0_167, %c5_168, %c64_169] : memref<2x16x128xf32, #tpu.memory_space<vmem>>, vector<2x1x64xf32>
    tpu.vector_store %arg17[%c0_167, %c5_168, %c64_169], %347 {strides = array<i32>} : memref<2x16x128xf32, #tpu.memory_space<vmem>>, vector<2x1x64xf32>,
    %349 = vector.extract_strided_slice %192 {offsets = [0, 11, 0], sizes = [2, 1, 64], strides = [1, 1, 1]} : vector<2x16x128xf32> to vector<2x1x64xf32>
    %350 = vector.shape_cast %349 : vector<2x1x64xf32> to vector<2x64xf32>
    %351 = vector.extract_strided_slice %192 {offsets = [0, 4, 64], sizes = [2, 1, 64], strides = [1, 1, 1]} : vector<2x16x128xf32> to vector<2x1x64xf32>
    %352 = vector.shape_cast %351 : vector<2x1x64xf32> to vector<2x64xf32>
    %353 = tpu.concatenate %350, %352 in 1 : vector<2x64xf32>, vector<2x64xf32> -> vector<2x128xf32>
    %cst_170 = arith.constant dense<0.000000e+00> : vector<2x128xf32>
    %354 = tpu.matmul %342, %193, %cst_170 {dimension_numbers = #tpu.dot_dimension_numbers<[1], [0], [0], [1], [0, 0, 1, 1], [], []>} : vector<2x128xf32>, vector<128x128xf32>, vector<2x128xf32> -> vector<2x128xf32>
    %355 = arith.addf %353, %354 : vector<2x128xf32>
    %356 = math.tanh %355 : vector<2x128xf32>
    %357 = vector.extract_strided_slice %356 {offsets = [0, 0], sizes = [2, 64], strides = [1, 1]} : vector<2x128xf32> to vector<2x64xf32>
    %358 = vector.shape_cast %357 : vector<2x64xf32> to vector<2x1x64xf32>
    %c0_171 = arith.constant 0 : index
    %c11_172 = arith.constant 11 : index
    %c0_173 = arith.constant 0 : index
    %359 = vector.load %arg17[%c0_171, %c11_172, %c0_173] : memref<2x16x128xf32, #tpu.memory_space<vmem>>, vector<2x1x64xf32>
    tpu.vector_store %arg17[%c0_171, %c11_172, %c0_173], %358 {strides = array<i32>} : memref<2x16x128xf32, #tpu.memory_space<vmem>>, vector<2x1x64xf32>,
    %360 = vector.extract_strided_slice %356 {offsets = [0, 64], sizes = [2, 64], strides = [1, 1]} : vector<2x128xf32> to vector<2x64xf32>
    %361 = vector.shape_cast %360 : vector<2x64xf32> to vector<2x1x64xf32>
    %c0_174 = arith.constant 0 : index
    %c4_175 = arith.constant 4 : index
    %c64_176 = arith.constant 64 : index
    %362 = vector.load %arg17[%c0_174, %c4_175, %c64_176] : memref<2x16x128xf32, #tpu.memory_space<vmem>>, vector<2x1x64xf32>
    tpu.vector_store %arg17[%c0_174, %c4_175, %c64_176], %361 {strides = array<i32>} : memref<2x16x128xf32, #tpu.memory_space<vmem>>, vector<2x1x64xf32>,
    %363 = vector.extract_strided_slice %192 {offsets = [0, 12, 0], sizes = [2, 1, 64], strides = [1, 1, 1]} : vector<2x16x128xf32> to vector<2x1x64xf32>
    %364 = vector.shape_cast %363 : vector<2x1x64xf32> to vector<2x64xf32>
    %365 = vector.extract_strided_slice %192 {offsets = [0, 3, 64], sizes = [2, 1, 64], strides = [1, 1, 1]} : vector<2x16x128xf32> to vector<2x1x64xf32>
    %366 = vector.shape_cast %365 : vector<2x1x64xf32> to vector<2x64xf32>
    %367 = tpu.concatenate %364, %366 in 1 : vector<2x64xf32>, vector<2x64xf32> -> vector<2x128xf32>
    %cst_177 = arith.constant dense<0.000000e+00> : vector<2x128xf32>
    %368 = tpu.matmul %356, %193, %cst_177 {dimension_numbers = #tpu.dot_dimension_numbers<[1], [0], [0], [1], [0, 0, 1, 1], [], []>} : vector<2x128xf32>, vector<128x128xf32>, vector<2x128xf32> -> vector<2x128xf32>
    %369 = arith.addf %367, %368 : vector<2x128xf32>
    %370 = math.tanh %369 : vector<2x128xf32>
    %371 = vector.extract_strided_slice %370 {offsets = [0, 0], sizes = [2, 64], strides = [1, 1]} : vector<2x128xf32> to vector<2x64xf32>
    %372 = vector.shape_cast %371 : vector<2x64xf32> to vector<2x1x64xf32>
    %c0_178 = arith.constant 0 : index
    %c12_179 = arith.constant 12 : index
    %c0_180 = arith.constant 0 : index
    %373 = vector.load %arg17[%c0_178, %c12_179, %c0_180] : memref<2x16x128xf32, #tpu.memory_space<vmem>>, vector<2x1x64xf32>
    tpu.vector_store %arg17[%c0_178, %c12_179, %c0_180], %372 {strides = array<i32>} : memref<2x16x128xf32, #tpu.memory_space<vmem>>, vector<2x1x64xf32>,
    %374 = vector.extract_strided_slice %370 {offsets = [0, 64], sizes = [2, 64], strides = [1, 1]} : vector<2x128xf32> to vector<2x64xf32>
    %375 = vector.shape_cast %374 : vector<2x64xf32> to vector<2x1x64xf32>
    %c0_181 = arith.constant 0 : index
    %c3_182 = arith.constant 3 : index
    %c64_183 = arith.constant 64 : index
    %376 = vector.load %arg17[%c0_181, %c3_182, %c64_183] : memref<2x16x128xf32, #tpu.memory_space<vmem>>, vector<2x1x64xf32>
    tpu.vector_store %arg17[%c0_181, %c3_182, %c64_183], %375 {strides = array<i32>} : memref<2x16x128xf32, #tpu.memory_space<vmem>>, vector<2x1x64xf32>,
    %377 = vector.extract_strided_slice %192 {offsets = [0, 13, 0], sizes = [2, 1, 64], strides = [1, 1, 1]} : vector<2x16x128xf32> to vector<2x1x64xf32>
    %378 = vector.shape_cast %377 : vector<2x1x64xf32> to vector<2x64xf32>
    %379 = vector.extract_strided_slice %192 {offsets = [0, 2, 64], sizes = [2, 1, 64], strides = [1, 1, 1]} : vector<2x16x128xf32> to vector<2x1x64xf32>
    %380 = vector.shape_cast %379 : vector<2x1x64xf32> to vector<2x64xf32>
    %381 = tpu.concatenate %378, %380 in 1 : vector<2x64xf32>, vector<2x64xf32> -> vector<2x128xf32>
    %cst_184 = arith.constant dense<0.000000e+00> : vector<2x128xf32>
    %382 = tpu.matmul %370, %193, %cst_184 {dimension_numbers = #tpu.dot_dimension_numbers<[1], [0], [0], [1], [0, 0, 1, 1], [], []>} : vector<2x128xf32>, vector<128x128xf32>, vector<2x128xf32> -> vector<2x128xf32>
    %383 = arith.addf %381, %382 : vector<2x128xf32>
    %384 = math.tanh %383 : vector<2x128xf32>
    %385 = vector.extract_strided_slice %384 {offsets = [0, 0], sizes = [2, 64], strides = [1, 1]} : vector<2x128xf32> to vector<2x64xf32>
    %386 = vector.shape_cast %385 : vector<2x64xf32> to vector<2x1x64xf32>
    %c0_185 = arith.constant 0 : index
    %c13_186 = arith.constant 13 : index
    %c0_187 = arith.constant 0 : index
    %387 = vector.load %arg17[%c0_185, %c13_186, %c0_187] : memref<2x16x128xf32, #tpu.memory_space<vmem>>, vector<2x1x64xf32>
    tpu.vector_store %arg17[%c0_185, %c13_186, %c0_187], %386 {strides = array<i32>} : memref<2x16x128xf32, #tpu.memory_space<vmem>>, vector<2x1x64xf32>,
    %388 = vector.extract_strided_slice %384 {offsets = [0, 64], sizes = [2, 64], strides = [1, 1]} : vector<2x128xf32> to vector<2x64xf32>
    %389 = vector.shape_cast %388 : vector<2x64xf32> to vector<2x1x64xf32>
    %c0_188 = arith.constant 0 : index
    %c2_189 = arith.constant 2 : index
    %c64_190 = arith.constant 64 : index
    %390 = vector.load %arg17[%c0_188, %c2_189, %c64_190] : memref<2x16x128xf32, #tpu.memory_space<vmem>>, vector<2x1x64xf32>
    tpu.vector_store %arg17[%c0_188, %c2_189, %c64_190], %389 {strides = array<i32>} : memref<2x16x128xf32, #tpu.memory_space<vmem>>, vector<2x1x64xf32>,
    %391 = vector.extract_strided_slice %192 {offsets = [0, 14, 0], sizes = [2, 1, 64], strides = [1, 1, 1]} : vector<2x16x128xf32> to vector<2x1x64xf32>
    %392 = vector.shape_cast %391 : vector<2x1x64xf32> to vector<2x64xf32>
    %393 = vector.extract_strided_slice %192 {offsets = [0, 1, 64], sizes = [2, 1, 64], strides = [1, 1, 1]} : vector<2x16x128xf32> to vector<2x1x64xf32>
    %394 = vector.shape_cast %393 : vector<2x1x64xf32> to vector<2x64xf32>
    %395 = tpu.concatenate %392, %394 in 1 : vector<2x64xf32>, vector<2x64xf32> -> vector<2x128xf32>
    %cst_191 = arith.constant dense<0.000000e+00> : vector<2x128xf32>
    %396 = tpu.matmul %384, %193, %cst_191 {dimension_numbers = #tpu.dot_dimension_numbers<[1], [0], [0], [1], [0, 0, 1, 1], [], []>} : vector<2x128xf32>, vector<128x128xf32>, vector<2x128xf32> -> vector<2x128xf32>
    %397 = arith.addf %395, %396 : vector<2x128xf32>
    %398 = math.tanh %397 : vector<2x128xf32>
    %399 = vector.extract_strided_slice %398 {offsets = [0, 0], sizes = [2, 64], strides = [1, 1]} : vector<2x128xf32> to vector<2x64xf32>
    %400 = vector.shape_cast %399 : vector<2x64xf32> to vector<2x1x64xf32>
    %c0_192 = arith.constant 0 : index
    %c14_193 = arith.constant 14 : index
    %c0_194 = arith.constant 0 : index
    %401 = vector.load %arg17[%c0_192, %c14_193, %c0_194] : memref<2x16x128xf32, #tpu.memory_space<vmem>>, vector<2x1x64xf32>
    tpu.vector_store %arg17[%c0_192, %c14_193, %c0_194], %400 {strides = array<i32>} : memref<2x16x128xf32, #tpu.memory_space<vmem>>, vector<2x1x64xf32>,
    %402 = vector.extract_strided_slice %398 {offsets = [0, 64], sizes = [2, 64], strides = [1, 1]} : vector<2x128xf32> to vector<2x64xf32>
    %403 = vector.shape_cast %402 : vector<2x64xf32> to vector<2x1x64xf32>
    %c0_195 = arith.constant 0 : index
    %c1_196 = arith.constant 1 : index
    %c64_197 = arith.constant 64 : index
    %404 = vector.load %arg17[%c0_195, %c1_196, %c64_197] : memref<2x16x128xf32, #tpu.memory_space<vmem>>, vector<2x1x64xf32>
    tpu.vector_store %arg17[%c0_195, %c1_196, %c64_197], %403 {strides = array<i32>} : memref<2x16x128xf32, #tpu.memory_space<vmem>>, vector<2x1x64xf32>,
    %405 = vector.extract_strided_slice %192 {offsets = [0, 15, 0], sizes = [2, 1, 64], strides = [1, 1, 1]} : vector<2x16x128xf32> to vector<2x1x64xf32>
    %406 = vector.shape_cast %405 : vector<2x1x64xf32> to vector<2x64xf32>
    %407 = vector.extract_strided_slice %192 {offsets = [0, 0, 64], sizes = [2, 1, 64], strides = [1, 1, 1]} : vector<2x16x128xf32> to vector<2x1x64xf32>
    %408 = vector.shape_cast %407 : vector<2x1x64xf32> to vector<2x64xf32>
    %409 = tpu.concatenate %406, %408 in 1 : vector<2x64xf32>, vector<2x64xf32> -> vector<2x128xf32>
    %cst_198 = arith.constant dense<0.000000e+00> : vector<2x128xf32>
    %410 = tpu.matmul %398, %193, %cst_198 {dimension_numbers = #tpu.dot_dimension_numbers<[1], [0], [0], [1], [0, 0, 1, 1], [], []>} : vector<2x128xf32>, vector<128x128xf32>, vector<2x128xf32> -> vector<2x128xf32>
    %411 = arith.addf %409, %410 : vector<2x128xf32>
    %412 = math.tanh %411 : vector<2x128xf32>
    %413 = vector.extract_strided_slice %412 {offsets = [0, 0], sizes = [2, 64], strides = [1, 1]} : vector<2x128xf32> to vector<2x64xf32>
    %414 = vector.shape_cast %413 : vector<2x64xf32> to vector<2x1x64xf32>
    %c0_199 = arith.constant 0 : index
    %c15_200 = arith.constant 15 : index
    %c0_201 = arith.constant 0 : index
    %415 = vector.load %arg17[%c0_199, %c15_200, %c0_201] : memref<2x16x128xf32, #tpu.memory_space<vmem>>, vector<2x1x64xf32>
    tpu.vector_store %arg17[%c0_199, %c15_200, %c0_201], %414 {strides = array<i32>} : memref<2x16x128xf32, #tpu.memory_space<vmem>>, vector<2x1x64xf32>,
    %416 = vector.extract_strided_slice %412 {offsets = [0, 64], sizes = [2, 64], strides = [1, 1]} : vector<2x128xf32> to vector<2x64xf32>
    %417 = vector.shape_cast %416 : vector<2x64xf32> to vector<2x1x64xf32>
    %c0_202 = arith.constant 0 : index
    %c0_203 = arith.constant 0 : index
    %c64_204 = arith.constant 64 : index
    %418 = vector.load %arg17[%c0_202, %c0_203, %c64_204] : memref<2x16x128xf32, #tpu.memory_space<vmem>>, vector<2x1x64xf32>
    tpu.vector_store %arg17[%c0_202, %c0_203, %c64_204], %417 {strides = array<i32>} : memref<2x16x128xf32, #tpu.memory_space<vmem>>, vector<2x1x64xf32>,
    %c0_205 = arith.constant 0 : index
    %c0_206 = arith.constant 0 : index
    %c0_207 = arith.constant 0 : index
    %419 = vector.load %arg17[%c0_205, %c0_206, %c0_207] : memref<2x16x128xf32, #tpu.memory_space<vmem>>, vector<2x16x128xf32>
    "tpu.trace_start"() <{level = 10 : i32, message = "bsf,btf->bst"}> : () -> ()
    %cst_208 = arith.constant dense<0.000000e+00> : vector<2x8x16xf32>
    %420 = tpu.matmul %186, %419, %cst_208 {dimension_numbers = #tpu.dot_dimension_numbers<[2], [2], [1], [1], [0, 0, 0, 1, 1, 1], [0], [0]>} : vector<2x8x128xf32>, vector<2x16x128xf32>, vector<2x8x16xf32> -> vector<2x8x16xf32>
    "tpu.trace_stop"() : () -> ()
    %c0_209 = arith.constant 0 : index
    %c0_210 = arith.constant 0 : index
    %c0_211 = arith.constant 0 : index
    %421 = vector.load %arg15[%c0_209, %c0_210, %c0_211] : memref<2x8x16xf32, #tpu.memory_space<vmem>>, vector<2x8x16xf32>
    tpu.vector_store %arg15[%c0_209, %c0_210, %c0_211], %420 {strides = array<i32>} : memref<2x8x16xf32, #tpu.memory_space<vmem>>, vector<2x8x16xf32>,
    return
  }
  func.func @transform_0(%arg0: i32) -> (i32, i32, i32) {
    %c0_i32 = arith.constant 0 : i32
    %c0_i32_0 = arith.constant 0 : i32
    %c0_i32_1 = arith.constant 0 : i32
    return %arg0, %c0_i32, %c0_i32_0 : i32, i32, i32
  }
  func.func @transform_1(%arg0: i32) -> (i32, i32, i32) {
    %c0_i32 = arith.constant 0 : i32
    %c0_i32_0 = arith.constant 0 : i32
    %c0_i32_1 = arith.constant 0 : i32
    return %arg0, %c0_i32, %c0_i32_0 : i32, i32, i32
  }
  func.func @transform_2(%arg0: i32) -> (i32, i32) {
    %c0_i32 = arith.constant 0 : i32
    %c0_i32_0 = arith.constant 0 : i32
    %c0_i32_1 = arith.constant 0 : i32
    return %c0_i32, %c0_i32_0 : i32, i32
  }
  func.func @transform_3(%arg0: i32) -> (i32, i32) {
    %c0_i32 = arith.constant 0 : i32
    %c0_i32_0 = arith.constant 0 : i32
    %c0_i32_1 = arith.constant 0 : i32
    return %c0_i32, %c0_i32_0 : i32, i32
  }
  func.func @transform_4(%arg0: i32) -> (i32, i32) {
    %c0_i32 = arith.constant 0 : i32
    %c0_i32_0 = arith.constant 0 : i32
    %c0_i32_1 = arith.constant 0 : i32
    return %c0_i32, %c0_i32_0 : i32, i32
  }
  func.func @transform_5(%arg0: i32) -> (i32, i32) {
    %c0_i32 = arith.constant 0 : i32
    %c0_i32_0 = arith.constant 0 : i32
    %c0_i32_1 = arith.constant 0 : i32
    return %c0_i32, %c0_i32_0 : i32, i32
  }
  func.func @transform_6(%arg0: i32) -> (i32, i32) {
    %c0_i32 = arith.constant 0 : i32
    %c0_i32_0 = arith.constant 0 : i32
    %c0_i32_1 = arith.constant 0 : i32
    return %c0_i32, %c0_i32_0 : i32, i32
  }
  func.func @transform_7(%arg0: i32) -> (i32, i32) {
    %c0_i32 = arith.constant 0 : i32
    %c0_i32_0 = arith.constant 0 : i32
    %c0_i32_1 = arith.constant 0 : i32
    return %c0_i32, %c0_i32_0 : i32, i32
  }
  func.func @transform_8(%arg0: i32) -> (i32, i32) {
    %c0_i32 = arith.constant 0 : i32
    %c0_i32_0 = arith.constant 0 : i32
    %c0_i32_1 = arith.constant 0 : i32
    return %c0_i32, %c0_i32_0 : i32, i32
  }
  func.func @transform_9(%arg0: i32) -> (i32, i32) {
    %c0_i32 = arith.constant 0 : i32
    %c0_i32_0 = arith.constant 0 : i32
    %c0_i32_1 = arith.constant 0 : i32
    return %c0_i32, %c0_i32_0 : i32, i32
  }
  func.func @transform_10(%arg0: i32) -> (i32, i32) {
    %c0_i32 = arith.constant 0 : i32
    %c0_i32_0 = arith.constant 0 : i32
    %c0_i32_1 = arith.constant 0 : i32
    return %c0_i32, %c0_i32_0 : i32, i32
  }
  func.func @transform_11(%arg0: i32) -> (i32, i32) {
    %c0_i32 = arith.constant 0 : i32
    %c0_i32_0 = arith.constant 0 : i32
    %c0_i32_1 = arith.constant 0 : i32
    return %c0_i32, %c0_i32_0 : i32, i32
  }
  func.func @transform_12(%arg0: i32) -> (i32, i32) {
    %c0_i32 = arith.constant 0 : i32
    %c0_i32_0 = arith.constant 0 : i32
    %c0_i32_1 = arith.constant 0 : i32
    return %c0_i32, %c0_i32_0 : i32, i32
  }
  func.func @transform_13(%arg0: i32) -> (i32, i32) {
    %c0_i32 = arith.constant 0 : i32
    %c0_i32_0 = arith.constant 0 : i32
    %c0_i32_1 = arith.constant 0 : i32
    return %c0_i32, %c0_i32_0 : i32, i32
  }
  func.func @transform_14(%arg0: i32) -> (i32, i32, i32) {
    %c0_i32 = arith.constant 0 : i32
    %c0_i32_0 = arith.constant 0 : i32
    %c0_i32_1 = arith.constant 0 : i32
    return %arg0, %c0_i32, %c0_i32_0 : i32, i32, i32
  }
}

</mosaic_0001>

<llo_original>
// kernel: cat_birnn_forward.1
$region0: #{cat_birnn_forward.1}
  #allocation0 [shape = 'u32[]', space=smem, size = 0x4, offset = 0x4, fixed_abs, tag = 'smem constant byte address 0x4 - core index']
  #allocation1 [shape = 'u32[144,128]{1,0:T(1,128)}', space=vmem, size = 0x12000, scoped, tag = 'internal scratch']
  #allocation2 [shape = 'f32[2,8,128]{2,1,0:T(8,128)}', space=vmem, size = 0x2000, scoped, tag = 'scratch operand']
  #allocation3 [shape = 'f32[2,16,128]{2,1,0:T(8,128)}', space=vmem, size = 0x4000, scoped, tag = 'scratch operand']
  %s0 = inlined_call_operand.hbm [shape: f32[2,8,128], index: 0, kind: input, shape index: {}]
  %s1 = inlined_call_operand.hbm [shape: f32[2,16,128], index: 1, kind: input, shape index: {}]
  %s2 = inlined_call_operand.hbm [shape: f32[128,384], index: 2, kind: input, shape index: {}]
  %s3 = inlined_call_operand.vmem [shape: f32[1,384], index: 3, kind: input, shape index: {}]
  %s4 = inlined_call_operand.hbm [shape: f32[128,384], index: 4, kind: input, shape index: {}]
  %s5 = inlined_call_operand.vmem [shape: f32[1,384], index: 5, kind: input, shape index: {}]
  %s6 = inlined_call_operand.hbm [shape: f32[128,128], index: 6, kind: input, shape index: {}]
  %s7 = inlined_call_operand.vmem [shape: f32[1,128], index: 7, kind: input, shape index: {}]
  %s8 = inlined_call_operand.hbm [shape: f32[128,128], index: 8, kind: input, shape index: {}]
  %s9 = inlined_call_operand.hbm [shape: f32[1,128], index: 9, kind: input, shape index: {}]
  %s10 = inlined_call_operand.hbm [shape: f32[128,128], index: 10, kind: input, shape index: {}]
  %s11 = inlined_call_operand.hbm [shape: f32[128,128], index: 11, kind: input, shape index: {}]
  %s12 = inlined_call_operand.vmem [shape: f32[1,128], index: 12, kind: input, shape index: {}]
  %s13 = inlined_call_operand.hbm [shape: f32[128,128], index: 13, kind: input, shape index: {}]
  %s14 = inlined_call_operand.hbm [shape: f32[2,8,16], index: 14, kind: output, shape index: {}]
  %s15 = sld [smem:[#allocation0]]
  $region106: #{cat_birnn_forward.1} parent=0
    _
  %s17 = ssub.s32 1, %s15
  %s18 = scalar_select 0, %s17, %s15
  $region1: #{cat_birnn_forward.1} parent=0
    #allocation4 [shape = 'u8[8192]{0}', space=vmem, size = 0x2000, scoped, tag = 'input window, operand 0, single buffered']
    #allocation5 [shape = 's32[1]{0}', space=sflag, size = 0x4, scoped, tag = 'scoped memory for cat_birnn_forward.1']
    #allocation6 [shape = 's32[1]{0}', space=sflag, size = 0x4, scoped, tag = 'scoped memory for cat_birnn_forward.1']
    #allocation7 [shape = 'u8[16384]{0}', space=vmem, size = 0x4000, scoped, tag = 'input window, operand 1, single buffered']
    #allocation8 [shape = 's32[1]{0}', space=sflag, size = 0x4, scoped, tag = 'scoped memory for cat_birnn_forward.1']
    #allocation9 [shape = 'u8[196608]{0}', space=vmem, size = 0x30000, scoped, tag = 'input window, operand 2, single buffered']
    #allocation10 [shape = 'u8[196608]{0}', space=vmem, size = 0x30000, scoped, tag = 'input window, operand 4, single buffered']
    #allocation11 [shape = 's32[1]{0}', space=sflag, size = 0x4, scoped, tag = 'scoped memory for cat_birnn_forward.1']
    #allocation12 [shape = 'u8[65536]{0}', space=vmem, size = 0x10000, scoped, tag = 'input window, operand 6, single buffered']
    #allocation13 [shape = 'u8[65536]{0}', space=vmem, size = 0x10000, scoped, tag = 'input window, operand 8, single buffered']
    #allocation14 [shape = 's32[1]{0}', space=sflag, size = 0x4, scoped, tag = 'scoped memory for cat_birnn_forward.1']
    #allocation15 [shape = 'u8[512]{0}', space=vmem, size = 0x400, scoped, tag = 'input window, operand 9, single buffered']
    #allocation16 [shape = 'u8[65536]{0}', space=vmem, size = 0x10000, scoped, tag = 'input window, operand 10, single buffered']
    #allocation17 [shape = 's32[1]{0}', space=sflag, size = 0x4, scoped, tag = 'scoped memory for cat_birnn_forward.1']
    #allocation18 [shape = 'u8[65536]{0}', space=vmem, size = 0x10000, scoped, tag = 'input window, operand 11, single buffered']
    #allocation19 [shape = 'u8[65536]{0}', space=vmem, size = 0x10000, scoped, tag = 'input window, operand 13, single buffered']
    #allocation20 [shape = 's32[1]{0}', space=sflag, size = 0x4, scoped, tag = 'scoped memory for cat_birnn_forward.1']
    #allocation21 [shape = 'u8[8192]{0}', space=vmem, size = 0x2000, scoped, tag = 'output window, operand 0, single buffered']
    %19 = vsyncpa [#allocation5], 0
    %20 = vsyncpa [#allocation8], 0
    %21 = vsyncpa [#allocation11], 0
    %22 = vsyncpa [#allocation14], 0
    %23 = vsyncpa [#allocation17], 0
    %24 = vsyncpa [#allocation20], 0
    %25 = vsyncpa [#allocation6], 0
    // Predicated region
    $region2: #{cat_birnn_forward.1} parent=1 // pred_check
      _
    $region3: #{cat_birnn_forward.1} parent=1 // pred_check_branch
      %27 = sbr.rel (0) target = $region5
    $region4: #{cat_birnn_forward.1} parent=1 // pred_region
      %s29 = ssub.s32 256, 256
      %30 = vsyncadd [#allocation5], %s29
      %s31 = sshll.u32 [#allocation4], 4
      %s32 = int_to_ptr.vmem [resolvable:$true] %s31
      %37 = dma.hbm_to_vmem [thread:$0]  %s0, 256, %s32, [#allocation5], 128, 128, 8
    $region5: #{cat_birnn_forward.1} parent=1 // pred_fallthru
      _
    // Predicated region
    $region6: #{cat_birnn_forward.1} parent=1 // pred_check
      _
    $region7: #{cat_birnn_forward.1} parent=1 // pred_check_branch
      %39 = sbr.rel (0) target = $region9
    $region8: #{cat_birnn_forward.1} parent=1 // pred_region
      %s41 = ssub.s32 512, 512
      %42 = vsyncadd [#allocation8], %s41
      %s43 = sshll.u32 [#allocation7], 4
      %s44 = int_to_ptr.vmem [resolvable:$true] %s43
      %49 = dma.hbm_to_vmem [thread:$0]  %s1, 512, %s44, [#allocation8], 128, 128, 8
    $region9: #{cat_birnn_forward.1} parent=1 // pred_fallthru
      _
    // Predicated region
    $region10: #{cat_birnn_forward.1} parent=1 // pred_check
      _
    $region11: #{cat_birnn_forward.1} parent=1 // pred_check_branch
      %51 = sbr.rel (0) target = $region13
    $region12: #{cat_birnn_forward.1} parent=1 // pred_region
      %s53 = ssub.s32 6144, 6144
      %54 = vsyncadd [#allocation8], %s53
      %s55 = sshll.u32 [#allocation9], 4
      %s56 = int_to_ptr.vmem [resolvable:$true] %s55
      %61 = dma.hbm_to_vmem [thread:$0]  %s2, 6144, %s56, [#allocation8], 384, 384, 24
    $region13: #{cat_birnn_forward.1} parent=1 // pred_fallthru
      _
    // Predicated region
    $region14: #{cat_birnn_forward.1} parent=1 // pred_check
      _
    $region15: #{cat_birnn_forward.1} parent=1 // pred_check_branch
      %63 = sbr.rel (0) target = $region17
    $region16: #{cat_birnn_forward.1} parent=1 // pred_region
      _
    $region17: #{cat_birnn_forward.1} parent=1 // pred_fallthru
      _
    // Predicated region
    $region18: #{cat_birnn_forward.1} parent=1 // pred_check
      _
    $region19: #{cat_birnn_forward.1} parent=1 // pred_check_branch
      %65 = sbr.rel (0) target = $region21
    $region20: #{cat_birnn_forward.1} parent=1 // pred_region
      %s67 = ssub.s32 6144, 6144
      %68 = vsyncadd [#allocation11], %s67
      %s69 = sshll.u32 [#allocation10], 4
      %s70 = int_to_ptr.vmem [resolvable:$true] %s69
      %75 = dma.hbm_to_vmem [thread:$0]  %s4, 6144, %s70, [#allocation11], 384, 384, 24
    $region21: #{cat_birnn_forward.1} parent=1 // pred_fallthru
      _
    // Predicated region
    $region22: #{cat_birnn_forward.1} parent=1 // pred_check
      _
    $region23: #{cat_birnn_forward.1} parent=1 // pred_check_branch
      %77 = sbr.rel (0) target = $region25
    $region24: #{cat_birnn_forward.1} parent=1 // pred_region
      _
    $region25: #{cat_birnn_forward.1} parent=1 // pred_fallthru
      _
    // Predicated region
    $region26: #{cat_birnn_forward.1} parent=1 // pred_check
      _
    $region27: #{cat_birnn_forward.1} parent=1 // pred_check_branch
      %79 = sbr.rel (0) target = $region29
    $region28: #{cat_birnn_forward.1} parent=1 // pred_region
      %s81 = ssub.s32 2048, 2048
      %82 = vsyncadd [#allocation11], %s81
      %s83 = sshll.u32 [#allocation12], 4
      %s84 = int_to_ptr.vmem [resolvable:$true] %s83
      %89 = dma.hbm_to_vmem [thread:$0]  %s6, 2048, %s84, [#allocation11], 128, 128, 8
    $region29: #{cat_birnn_forward.1} parent=1 // pred_fallthru
      _
    // Predicated region
    $region30: #{cat_birnn_forward.1} parent=1 // pred_check
      _
    $region31: #{cat_birnn_forward.1} parent=1 // pred_check_branch
      %91 = sbr.rel (0) target = $region33
    $region32: #{cat_birnn_forward.1} parent=1 // pred_region
      _
    $region33: #{cat_birnn_forward.1} parent=1 // pred_fallthru
      _
    // Predicated region
    $region34: #{cat_birnn_forward.1} parent=1 // pred_check
      _
    $region35: #{cat_birnn_forward.1} parent=1 // pred_check_branch
      %93 = sbr.rel (0) target = $region37
    $region36: #{cat_birnn_forward.1} parent=1 // pred_region
      %s95 = ssub.s32 2048, 2048
      %96 = vsyncadd [#allocation14], %s95
      %s97 = sshll.u32 [#allocation13], 4
      %s98 = int_to_ptr.vmem [resolvable:$true] %s97
      %103 = dma.hbm_to_vmem [thread:$0]  %s8, 2048, %s98, [#allocation14], 128, 128, 8
    $region37: #{cat_birnn_forward.1} parent=1 // pred_fallthru
      _
    // Predicated region
    $region38: #{cat_birnn_forward.1} parent=1 // pred_check
      _
    $region39: #{cat_birnn_forward.1} parent=1 // pred_check_branch
      %105 = sbr.rel (0) target = $region41
    $region40: #{cat_birnn_forward.1} parent=1 // pred_region
      %s107 = ssub.s32 16, 16
      %108 = vsyncadd [#allocation14], %s107
      %s110 = sshll.u32 [#allocation15], 4
      %s111 = int_to_ptr.vmem [resolvable:$true] %s110
      %113 = dma.hbm_to_vmem [thread:$0]  %s9, 16, %s111, [#allocation14]
    $region41: #{cat_birnn_forward.1} parent=1 // pred_fallthru
      _
    // Predicated region
    $region42: #{cat_birnn_forward.1} parent=1 // pred_check
      _
    $region43: #{cat_birnn_forward.1} parent=1 // pred_check_branch
      %115 = sbr.rel (0) target = $region45
    $region44: #{cat_birnn_forward.1} parent=1 // pred_region
      %s117 = ssub.s32 2048, 2048
      %118 = vsyncadd [#allocation17], %s117
      %s119 = sshll.u32 [#allocation16], 4
      %s120 = int_to_ptr.vmem [resolvable:$true] %s119
      %125 = dma.hbm_to_vmem [thread:$0]  %s10, 2048, %s120, [#allocation17], 128, 128, 8
    $region45: #{cat_birnn_forward.1} parent=1 // pred_fallthru
      _
    // Predicated region
    $region46: #{cat_birnn_forward.1} parent=1 // pred_check
      _
    $region47: #{cat_birnn_forward.1} parent=1 // pred_check_branch
      %127 = sbr.rel (0) target = $region49
    $region48: #{cat_birnn_forward.1} parent=1 // pred_region
      %s129 = ssub.s32 2048, 2048
      %130 = vsyncadd [#allocation17], %s129
      %s131 = sshll.u32 [#allocation18], 4
      %s132 = int_to_ptr.vmem [resolvable:$true] %s131
      %137 = dma.hbm_to_vmem [thread:$0]  %s11, 2048, %s132, [#allocation17], 128, 128, 8
    $region49: #{cat_birnn_forward.1} parent=1 // pred_fallthru
      _
    // Predicated region
    $region50: #{cat_birnn_forward.1} parent=1 // pred_check
      _
    $region51: #{cat_birnn_forward.1} parent=1 // pred_check_branch
      %139 = sbr.rel (0) target = $region53
    $region52: #{cat_birnn_forward.1} parent=1 // pred_region
      _
    $region53: #{cat_birnn_forward.1} parent=1 // pred_fallthru
      _
    // Predicated region
    $region54: #{cat_birnn_forward.1} parent=1 // pred_check
      _
    $region55: #{cat_birnn_forward.1} parent=1 // pred_check_branch
      %141 = sbr.rel (0) target = $region57
    $region56: #{cat_birnn_forward.1} parent=1 // pred_region
      %s143 = ssub.s32 2048, 2048
      %144 = vsyncadd [#allocation20], %s143
      %s145 = sshll.u32 [#allocation19], 4
      %s146 = int_to_ptr.vmem [resolvable:$true] %s145
      %151 = dma.hbm_to_vmem [thread:$0]  %s13, 2048, %s146, [#allocation20], 128, 128, 8
    $region57: #{cat_birnn_forward.1} parent=1 // pred_fallthru
      _
    // Predicated region
    $region58: #{cat_birnn_forward.1} parent=1 // pred_check
      _
    $region59: #{cat_birnn_forward.1} parent=1 // pred_check_branch
      %153 = sbr.rel (0) target = $region61
    $region60: #{cat_birnn_forward.1} parent=1 // pred_region
      %154 = dma.done [#allocation5], 256
    $region61: #{cat_birnn_forward.1} parent=1 // pred_fallthru
      _
    // Predicated region
    $region62: #{cat_birnn_forward.1} parent=1 // pred_check
      _
    $region63: #{cat_birnn_forward.1} parent=1 // pred_check_branch
      %156 = sbr.rel (0) target = $region65
    $region64: #{cat_birnn_forward.1} parent=1 // pred_region
      %157 = dma.done [#allocation8], 512
    $region65: #{cat_birnn_forward.1} parent=1 // pred_fallthru
      _
    // Predicated region
    $region66: #{cat_birnn_forward.1} parent=1 // pred_check
      _
    $region67: #{cat_birnn_forward.1} parent=1 // pred_check_branch
      %159 = sbr.rel (0) target = $region69
    $region68: #{cat_birnn_forward.1} parent=1 // pred_region
      %160 = dma.done [#allocation8], 6144
    $region69: #{cat_birnn_forward.1} parent=1 // pred_fallthru
      _
    // Predicated region
    $region70: #{cat_birnn_forward.1} parent=1 // pred_check
      _
    $region71: #{cat_birnn_forward.1} parent=1 // pred_check_branch
      %162 = sbr.rel (0) target = $region73
    $region72: #{cat_birnn_forward.1} parent=1 // pred_region
      %163 = dma.done [#allocation11], 6144
    $region73: #{cat_birnn_forward.1} parent=1 // pred_fallthru
      _
    // Predicated region
    $region74: #{cat_birnn_forward.1} parent=1 // pred_check
      _
    $region75: #{cat_birnn_forward.1} parent=1 // pred_check_branch
      %165 = sbr.rel (0) target = $region77
    $region76: #{cat_birnn_forward.1} parent=1 // pred_region
      %166 = dma.done [#allocation11], 2048
    $region77: #{cat_birnn_forward.1} parent=1 // pred_fallthru
      _
    // Predicated region
    $region78: #{cat_birnn_forward.1} parent=1 // pred_check
      _
    $region79: #{cat_birnn_forward.1} parent=1 // pred_check_branch
      %168 = sbr.rel (0) target = $region81
    $region80: #{cat_birnn_forward.1} parent=1 // pred_region
      %169 = dma.done [#allocation14], 2048
    $region81: #{cat_birnn_forward.1} parent=1 // pred_fallthru
      _
    // Predicated region
    $region82: #{cat_birnn_forward.1} parent=1 // pred_check
      _
    $region83: #{cat_birnn_forward.1} parent=1 // pred_check_branch
      %171 = sbr.rel (0) target = $region85
    $region84: #{cat_birnn_forward.1} parent=1 // pred_region
      %172 = dma.done [#allocation14], 16
    $region85: #{cat_birnn_forward.1} parent=1 // pred_fallthru
      _
    // Predicated region
    $region86: #{cat_birnn_forward.1} parent=1 // pred_check
      _
    $region87: #{cat_birnn_forward.1} parent=1 // pred_check_branch
      %174 = sbr.rel (0) target = $region89
    $region88: #{cat_birnn_forward.1} parent=1 // pred_region
      %175 = dma.done [#allocation17], 2048
    $region89: #{cat_birnn_forward.1} parent=1 // pred_fallthru
      _
    // Predicated region
    $region90: #{cat_birnn_forward.1} parent=1 // pred_check
      _
    $region91: #{cat_birnn_forward.1} parent=1 // pred_check_branch
      %177 = sbr.rel (0) target = $region93
    $region92: #{cat_birnn_forward.1} parent=1 // pred_region
      %178 = dma.done [#allocation17], 2048
    $region93: #{cat_birnn_forward.1} parent=1 // pred_fallthru
      _
    // Predicated region
    $region94: #{cat_birnn_forward.1} parent=1 // pred_check
      _
    $region95: #{cat_birnn_forward.1} parent=1 // pred_check_branch
      %180 = sbr.rel (0) target = $region97
    $region96: #{cat_birnn_forward.1} parent=1 // pred_region
      %181 = dma.done [#allocation20], 2048
    $region97: #{cat_birnn_forward.1} parent=1 // pred_fallthru
      _
    %v182 = vld [vmem:[#allocation4] sm:$0xff]
    %v183 = vld [vmem:[#allocation4 + $0x8] sm:$0xff]
    %v184 = vld [vmem:[#allocation7] sm:$0xff]
    %v185 = vld [vmem:[#allocation7 + $0x8] sm:$0xff]
    %v186 = vld [vmem:[#allocation7 + $0x10] sm:$0xff]
    %v187 = vld [vmem:[#allocation7 + $0x18] sm:$0xff]
    %v188 = vld [vmem:[#allocation9] sm:$0xff]
    %v189 = vld [vmem:[#allocation9 + $0x8] sm:$0xff]
    %v190 = vld [vmem:[#allocation9 + $0x10] sm:$0xff]
    %v191 = vld [vmem:[#allocation9 + $0x18] sm:$0xff]
    %v192 = vld [vmem:[#allocation9 + $0x20] sm:$0xff]
    %v193 = vld [vmem:[#allocation9 + $0x28] sm:$0xff]
    %v194 = vld [vmem:[#allocation9 + $0x30] sm:$0xff]
    %v195 = vld [vmem:[#allocation9 + $0x38] sm:$0xff]
    %v196 = vld [vmem:[#allocation9 + $0x40] sm:$0xff]
    %v197 = vld [vmem:[#allocation9 + $0x48] sm:$0xff]
    %v198 = vld [vmem:[#allocation9 + $0x50] sm:$0xff]
    %v199 = vld [vmem:[#allocation9 + $0x58] sm:$0xff]
    %v200 = vld [vmem:[#allocation9 + $0x60] sm:$0xff]
    %v201 = vld [vmem:[#allocation9 + $0x68] sm:$0xff]
    %v202 = vld [vmem:[#allocation9 + $0x70] sm:$0xff]
    %v203 = vld [vmem:[#allocation9 + $0x78] sm:$0xff]
    %v204 = vld [vmem:[#allocation9 + $0x80] sm:$0xff]
    %v205 = vld [vmem:[#allocation9 + $0x88] sm:$0xff]
    %v206 = vld [vmem:[#allocation9 + $0x90] sm:$0xff]
    %v207 = vld [vmem:[#allocation9 + $0x98] sm:$0xff]
    %v208 = vld [vmem:[#allocation9 + $0xa0] sm:$0xff]
    %v209 = vld [vmem:[#allocation9 + $0xa8] sm:$0xff]
    %v210 = vld [vmem:[#allocation9 + $0xb0] sm:$0xff]
    %v211 = vld [vmem:[#allocation9 + $0xb8] sm:$0xff]
    %v212 = vld [vmem:[#allocation9 + $0xc0] sm:$0xff]
    %v213 = vld [vmem:[#allocation9 + $0xc8] sm:$0xff]
    %v214 = vld [vmem:[#allocation9 + $0xd0] sm:$0xff]
    %v215 = vld [vmem:[#allocation9 + $0xd8] sm:$0xff]
    %v216 = vld [vmem:[#allocation9 + $0xe0] sm:$0xff]
    %v217 = vld [vmem:[#allocation9 + $0xe8] sm:$0xff]
    %v218 = vld [vmem:[#allocation9 + $0xf0] sm:$0xff]
    %v219 = vld [vmem:[#allocation9 + $0xf8] sm:$0xff]
    %v220 = vld [vmem:[#allocation9 + $0x100] sm:$0xff]
    %v221 = vld [vmem:[#allocation9 + $0x108] sm:$0xff]
    %v222 = vld [vmem:[#allocation9 + $0x110] sm:$0xff]
    %v223 = vld [vmem:[#allocation9 + $0x118] sm:$0xff]
    %v224 = vld [vmem:[#allocation9 + $0x120] sm:$0xff]
    %v225 = vld [vmem:[#allocation9 + $0x128] sm:$0xff]
    %v226 = vld [vmem:[#allocation9 + $0x130] sm:$0xff]
    %v227 = vld [vmem:[#allocation9 + $0x138] sm:$0xff]
    %v228 = vld [vmem:[#allocation9 + $0x140] sm:$0xff]
    %v229 = vld [vmem:[#allocation9 + $0x148] sm:$0xff]
    %v230 = vld [vmem:[#allocation9 + $0x150] sm:$0xff]
    %v231 = vld [vmem:[#allocation9 + $0x158] sm:$0xff]
    %v232 = vld [vmem:[#allocation9 + $0x160] sm:$0xff]
    %v233 = vld [vmem:[#allocation9 + $0x168] sm:$0xff]
    %v234 = vld [vmem:[#allocation9 + $0x170] sm:$0xff]
    %v235 = vld [vmem:[#allocation9 + $0x178] sm:$0xff]
    %v236 = vld [vmem:[%s3] sm:$0x7]
    %v238 = vlaneseq
    %v239 = vshrl.u32 %v238, 7
    %v240 = vsub.s32 0, %v239
    %v241 = vrot.slane %v236, %v240
    %v242 = vlaneseq
    %v243 = vshrl.u32 %v242, 7
    %v244 = vsub.s32 1, %v243
    %v245 = vrot.slane %v236, %v244
    %v246 = vlaneseq
    %v247 = vshrl.u32 %v246, 7
    %v248 = vsub.s32 2, %v247
    %v249 = vrot.slane %v236, %v248
    %253 = vmatprep.subr.mxu0 %v189
    %254 = vmatpush1.msra.mxu0 %v188
    %255 = vmatprep.subr.mxu0 %v192
    %256 = vmatpush1.msra.mxu0 %v191
    %257 = vmatprep.subr.mxu0 %v195
    %258 = vmatpush1.msra.mxu0 %v194
    %259 = vmatprep.subr.mxu0 %v198
    %260 = vmatpush1.msra.mxu0 %v197
    %261 = vmatprep.subr.mxu0 %v201
    %262 = vmatpush1.msra.mxu0 %v200
    %263 = vmatprep.subr.mxu0 %v204
    %264 = vmatpush1.msra.mxu0 %v203
    %265 = vmatprep.subr.mxu0 %v207
    %266 = vmatpush1.msra.mxu0 %v206
    %267 = vmatprep.subr.mxu0 %v210
    %268 = vmatpush1.msra.mxu0 %v209
    %269 = vmatprep.subr.mxu0 %v213
    %270 = vmatpush1.msra.mxu0 %v212
    %271 = vmatprep.subr.mxu0 %v216
    %272 = vmatpush1.msra.mxu0 %v215
    %273 = vmatprep.subr.mxu0 %v219
    %274 = vmatpush1.msra.mxu0 %v218
    %275 = vmatprep.subr.mxu0 %v222
    %276 = vmatpush1.msra.mxu0 %v221
    %277 = vmatprep.subr.mxu0 %v225
    %278 = vmatpush1.msra.mxu0 %v224
    %279 = vmatprep.subr.mxu0 %v228
    %280 = vmatpush1.msra.mxu0 %v227
    %281 = vmatprep.subr.mxu0 %v231
    %282 = vmatpush1.msra.mxu0 %v230
    %283 = vmatprep.subr.mxu0 %v234
    %284 = vmatpush1.msra.mxu0 %v233
    %285 = vmatprep.subr.mxu0 0.0
    %286 = vmatpush1.msra.mxu0 0.0
    %287 = vmatprep.subr.mxu0 0.0
    %288 = vmatpush1.msra.mxu0 0.0
    %289 = vmatprep.subr.mxu0 0.0
    %290 = vmatpush1.msra.mxu0 0.0
    %291 = vmatprep.subr.mxu0 0.0
    %292 = vmatpush1.msra.mxu0 0.0
    %293 = vmatprep.subr.mxu0 0.0
    %294 = vmatpush1.msra.mxu0 0.0
    %295 = vmatprep.subr.mxu0 0.0
    %296 = vmatpush1.msra.mxu0 0.0
    %297 = vmatprep.subr.mxu0 0.0
    %298 = vmatpush1.msra.mxu0 0.0
    %299 = vmatprep.subr.mxu0 0.0
    %300 = vmatpush1.msra.mxu0 0.0
    %301 = vmatprep.subr.mxu0 0.0
    %302 = vmatpush1.msra.mxu0 0.0
    %303 = vmatprep.subr.mxu0 0.0
    %304 = vmatpush1.msra.mxu0 0.0
    %305 = vmatprep.subr.mxu0 0.0
    %306 = vmatpush1.msra.mxu0 0.0
    %307 = vmatprep.subr.mxu0 0.0
    %308 = vmatpush1.msra.mxu0 0.0
    %309 = vmatprep.subr.mxu0 0.0
    %310 = vmatpush1.msra.mxu0 0.0
    %311 = vmatprep.subr.mxu0 0.0
    %312 = vmatpush1.msra.mxu0 0.0
    %313 = vmatprep.subr.mxu0 0.0
    %314 = vmatpush1.msra.mxu0 0.0
    %315 = vmatprep.subr.mxu0 0.0
    %316 = vmatpush1.msra.mxu0 0.0
    %317 = vmatprep.mubr.f32.mxu0 0.0
    %318 = vmatmul.mubr.f32.gmra.mrb[0].mxu0 %v182
    %v319 = vpop.f32.mrb[0].mxu0
    %v320 = vadd.f32 %v241, %v319
    %v321 = vpop.f32.mrb[0].mxu0
    %v322 = vadd.f32 %v245, %v321
    %323 = vmatprep.mubr.f32.mxu0 0.0
    %324 = vmatmul.mubr.f32.gmra.mrb[0].mxu0 %v183
    %v325 = vpop.f32.mrb[0].mxu0
    %v326 = vadd.f32 %v241, %v325
    %v327 = vpop.f32.mrb[0].mxu0
    %v328 = vadd.f32 %v245, %v327
    %329 = vdwg.mxu0
    %330 = vmatprep.subr.mxu0 0.0
    %331 = vmatpush1.msra.mxu0 %v190
    %332 = vmatprep.subr.mxu0 0.0
    %333 = vmatpush1.msra.mxu0 %v193
    %334 = vmatprep.subr.mxu0 0.0
    %335 = vmatpush1.msra.mxu0 %v196
    %336 = vmatprep.subr.mxu0 0.0
    %337 = vmatpush1.msra.mxu0 %v199
    %338 = vmatprep.subr.mxu0 0.0
    %339 = vmatpush1.msra.mxu0 %v202
    %340 = vmatprep.subr.mxu0 0.0
    %341 = vmatpush1.msra.mxu0 %v205
    %342 = vmatprep.subr.mxu0 0.0
    %343 = vmatpush1.msra.mxu0 %v208
    %344 = vmatprep.subr.mxu0 0.0
    %345 = vmatpush1.msra.mxu0 %v211
    %346 = vmatprep.subr.mxu0 0.0
    %347 = vmatpush1.msra.mxu0 %v214
    %348 = vmatprep.subr.mxu0 0.0
    %349 = vmatpush1.msra.mxu0 %v217
    %350 = vmatprep.subr.mxu0 0.0
    %351 = vmatpush1.msra.mxu0 %v220
    %352 = vmatprep.subr.mxu0 0.0
    %353 = vmatpush1.msra.mxu0 %v223
    %354 = vmatprep.subr.mxu0 0.0
    %355 = vmatpush1.msra.mxu0 %v226
    %356 = vmatprep.subr.mxu0 0.0
    %357 = vmatpush1.msra.mxu0 %v229
    %358 = vmatprep.subr.mxu0 0.0
    %359 = vmatpush1.msra.mxu0 %v232
    %360 = vmatprep.subr.mxu0 0.0
    %361 = vmatpush1.msra.mxu0 %v235
    %362 = vmatprep.subr.mxu0 0.0
    %363 = vmatpush1.msra.mxu0 0.0
    %364 = vmatprep.subr.mxu0 0.0
    %365 = vmatpush1.msra.mxu0 0.0
    %366 = vmatprep.subr.mxu0 0.0
    %367 = vmatpush1.msra.mxu0 0.0
    %368 = vmatprep.subr.mxu0 0.0
    %369 = vmatpush1.msra.mxu0 0.0
    %370 = vmatprep.subr.mxu0 0.0
    %371 = vmatpush1.msra.mxu0 0.0
    %372 = vmatprep.subr.mxu0 0.0
    %373 = vmatpush1.msra.mxu0 0.0
    %374 = vmatprep.subr.mxu0 0.0
    %375 = vmatpush1.msra.mxu0 0.0
    %376 = vmatprep.subr.mxu0 0.0
    %377 = vmatpush1.msra.mxu0 0.0
    %378 = vmatprep.subr.mxu0 0.0
    %379 = vmatpush1.msra.mxu0 0.0
    %380 = vmatprep.subr.mxu0 0.0
    %381 = vmatpush1.msra.mxu0 0.0
    %382 = vmatprep.subr.mxu0 0.0
    %383 = vmatpush1.msra.mxu0 0.0
    %384 = vmatprep.subr.mxu0 0.0
    %385 = vmatpush1.msra.mxu0 0.0
    %386 = vmatprep.subr.mxu0 0.0
    %387 = vmatpush1.msra.mxu0 0.0
    %388 = vmatprep.subr.mxu0 0.0
    %389 = vmatpush1.msra.mxu0 0.0
    %390 = vmatprep.subr.mxu0 0.0
    %391 = vmatpush1.msra.mxu0 0.0
    %392 = vmatprep.subr.mxu0 0.0
    %393 = vmatpush1.msra.mxu0 0.0
    %394 = vmatprep.mubr.f32.mxu0 0.0
    %395 = vmatmul.mubr.f32.gmra.mrb[0].mxu0 %v182
    %v396 = vpop.f32.mrb[0].mxu0
    %v397 = vadd.f32 %v249, %v396
    %v398 = vpop.f32.mrb[0].mxu0
    %399 = vmatprep.mubr.f32.mxu0 0.0
    %400 = vmatmul.mubr.f32.gmra.mrb[0].mxu0 %v183
    %v401 = vpop.f32.mrb[0].mxu0
    %v402 = vadd.f32 %v249, %v401
    %v403 = vpop.f32.mrb[0].mxu0
    %404 = vdwg.mxu0
    %v405 = vld [vmem:[#allocation10] sm:$0xff]
    %v406 = vld [vmem:[#allocation10 + $0x8] sm:$0xff]
    %v407 = vld [vmem:[#allocation10 + $0x10] sm:$0xff]
    %v408 = vld [vmem:[#allocation10 + $0x18] sm:$0xff]
    %v409 = vld [vmem:[#allocation10 + $0x20] sm:$0xff]
    %v410 = vld [vmem:[#allocation10 + $0x28] sm:$0xff]
    %v411 = vld [vmem:[#allocation10 + $0x30] sm:$0xff]
    %v412 = vld [vmem:[#allocation10 + $0x38] sm:$0xff]
    %v413 = vld [vmem:[#allocation10 + $0x40] sm:$0xff]
    %v414 = vld [vmem:[#allocation10 + $0x48] sm:$0xff]
    %v415 = vld [vmem:[#allocation10 + $0x50] sm:$0xff]
    %v416 = vld [vmem:[#allocation10 + $0x58] sm:$0xff]
    %v417 = vld [vmem:[#allocation10 + $0x60] sm:$0xff]
    %v418 = vld [vmem:[#allocation10 + $0x68] sm:$0xff]
    %v419 = vld [vmem:[#allocation10 + $0x70] sm:$0xff]
    %v420 = vld [vmem:[#allocation10 + $0x78] sm:$0xff]
    %v421 = vld [vmem:[#allocation10 + $0x80] sm:$0xff]
    %v422 = vld [vmem:[#allocation10 + $0x88] sm:$0xff]
    %v423 = vld [vmem:[#allocation10 + $0x90] sm:$0xff]
    %v424 = vld [vmem:[#allocation10 + $0x98] sm:$0xff]
    %v425 = vld [vmem:[#allocation10 + $0xa0] sm:$0xff]
    %v426 = vld [vmem:[#allocation10 + $0xa8] sm:$0xff]
    %v427 = vld [vmem:[#allocation10 + $0xb0] sm:$0xff]
    %v428 = vld [vmem:[#allocation10 + $0xb8] sm:$0xff]
    %v429 = vld [vmem:[#allocation10 + $0xc0] sm:$0xff]
    %v430 = vld [vmem:[#allocation10 + $0xc8] sm:$0xff]
    %v431 = vld [vmem:[#allocation10 + $0xd0] sm:$0xff]
    %v432 = vld [vmem:[#allocation10 + $0xd8] sm:$0xff]
    %v433 = vld [vmem:[#allocation10 + $0xe0] sm:$0xff]
    %v434 = vld [vmem:[#allocation10 + $0xe8] sm:$0xff]
    %v435 = vld [vmem:[#allocation10 + $0xf0] sm:$0xff]
    %v436 = vld [vmem:[#allocation10 + $0xf8] sm:$0xff]
    %v437 = vld [vmem:[#allocation10 + $0x100] sm:$0xff]
    %v438 = vld [vmem:[#allocation10 + $0x108] sm:$0xff]
    %v439 = vld [vmem:[#allocation10 + $0x110] sm:$0xff]
    %v440 = vld [vmem:[#allocation10 + $0x118] sm:$0xff]
    %v441 = vld [vmem:[#allocation10 + $0x120] sm:$0xff]
    %v442 = vld [vmem:[#allocation10 + $0x128] sm:$0xff]
    %v443 = vld [vmem:[#allocation10 + $0x130] sm:$0xff]
    %v444 = vld [vmem:[#allocation10 + $0x138] sm:$0xff]
    %v445 = vld [vmem:[#allocation10 + $0x140] sm:$0xff]
    %v446 = vld [vmem:[#allocation10 + $0x148] sm:$0xff]
    %v447 = vld [vmem:[#allocation10 + $0x150] sm:$0xff]
    %v448 = vld [vmem:[#allocation10 + $0x158] sm:$0xff]
    %v449 = vld [vmem:[#allocation10 + $0x160] sm:$0xff]
    %v450 = vld [vmem:[#allocation10 + $0x168] sm:$0xff]
    %v451 = vld [vmem:[#allocation10 + $0x170] sm:$0xff]
    %v452 = vld [vmem:[#allocation10 + $0x178] sm:$0xff]
    %v453 = vld [vmem:[%s5] sm:$0x7]
    %v455 = vlaneseq
    %v456 = vshrl.u32 %v455, 7
    %v457 = vsub.s32 0, %v456
    %v458 = vrot.slane %v453, %v457
    %v459 = vlaneseq
    %v460 = vshrl.u32 %v459, 7
    %v461 = vsub.s32 1, %v460
    %v462 = vrot.slane %v453, %v461
    %v463 = vlaneseq
    %v464 = vshrl.u32 %v463, 7
    %v465 = vsub.s32 2, %v464
    %v466 = vrot.slane %v453, %v465
    %470 = vmatprep.subr.mxu0 %v406
    %471 = vmatpush1.msra.mxu0 %v405
    %472 = vmatprep.subr.mxu0 %v409
    %473 = vmatpush1.msra.mxu0 %v408
    %474 = vmatprep.subr.mxu0 %v412
    %475 = vmatpush1.msra.mxu0 %v411
    %476 = vmatprep.subr.mxu0 %v415
    %477 = vmatpush1.msra.mxu0 %v414
    %478 = vmatprep.subr.mxu0 %v418
    %479 = vmatpush1.msra.mxu0 %v417
    %480 = vmatprep.subr.mxu0 %v421
    %481 = vmatpush1.msra.mxu0 %v420
    %482 = vmatprep.subr.mxu0 %v424
    %483 = vmatpush1.msra.mxu0 %v423
    %484 = vmatprep.subr.mxu0 %v427
    %485 = vmatpush1.msra.mxu0 %v426
    %486 = vmatprep.subr.mxu0 %v430
    %487 = vmatpush1.msra.mxu0 %v429
    %488 = vmatprep.subr.mxu0 %v433
    %489 = vmatpush1.msra.mxu0 %v432
    %490 = vmatprep.subr.mxu0 %v436
    %491 = vmatpush1.msra.mxu0 %v435
    %492 = vmatprep.subr.mxu0 %v439
    %493 = vmatpush1.msra.mxu0 %v438
    %494 = vmatprep.subr.mxu0 %v442
    %495 = vmatpush1.msra.mxu0 %v441
    %496 = vmatprep.subr.mxu0 %v445
    %497 = vmatpush1.msra.mxu0 %v444
    %498 = vmatprep.subr.mxu0 %v448
    %499 = vmatpush1.msra.mxu0 %v447
    %500 = vmatprep.subr.mxu0 %v451
    %501 = vmatpush1.msra.mxu0 %v450
    %502 = vmatprep.subr.mxu0 0.0
    %503 = vmatpush1.msra.mxu0 0.0
    %504 = vmatprep.subr.mxu0 0.0
    %505 = vmatpush1.msra.mxu0 0.0
    %506 = vmatprep.subr.mxu0 0.0
    %507 = vmatpush1.msra.mxu0 0.0
    %508 = vmatprep.subr.mxu0 0.0
    %509 = vmatpush1.msra.mxu0 0.0
    %510 = vmatprep.subr.mxu0 0.0
    %511 = vmatpush1.msra.mxu0 0.0
    %512 = vmatprep.subr.mxu0 0.0
    %513 = vmatpush1.msra.mxu0 0.0
    %514 = vmatprep.subr.mxu0 0.0
    %515 = vmatpush1.msra.mxu0 0.0
    %516 = vmatprep.subr.mxu0 0.0
    %517 = vmatpush1.msra.mxu0 0.0
    %518 = vmatprep.subr.mxu0 0.0
    %519 = vmatpush1.msra.mxu0 0.0
    %520 = vmatprep.subr.mxu0 0.0
    %521 = vmatpush1.msra.mxu0 0.0
    %522 = vmatprep.subr.mxu0 0.0
    %523 = vmatpush1.msra.mxu0 0.0
    %524 = vmatprep.subr.mxu0 0.0
    %525 = vmatpush1.msra.mxu0 0.0
    %526 = vmatprep.subr.mxu0 0.0
    %527 = vmatpush1.msra.mxu0 0.0
    %528 = vmatprep.subr.mxu0 0.0
    %529 = vmatpush1.msra.mxu0 0.0
    %530 = vmatprep.subr.mxu0 0.0
    %531 = vmatpush1.msra.mxu0 0.0
    %532 = vmatprep.subr.mxu0 0.0
    %533 = vmatpush1.msra.mxu0 0.0
    %534 = vmatprep.mubr.f32.mxu0 0.0
    %535 = vmatmul.mubr.f32.gmra.mrb[0].mxu0 %v184
    %v536 = vpop.f32.mrb[0].mxu0
    %v537 = vadd.f32 %v458, %v536
    %v538 = vpop.f32.mrb[0].mxu0
    %v539 = vadd.f32 %v462, %v538
    %540 = vmatprep.mubr.f32.mxu0 0.0
    %541 = vmatmul.mubr.f32.gmra.mrb[0].mxu0 %v185
    %v542 = vpop.f32.mrb[0].mxu0
    %v543 = vadd.f32 %v458, %v542
    %v544 = vpop.f32.mrb[0].mxu0
    %v545 = vadd.f32 %v462, %v544
    %546 = vmatprep.mubr.f32.mxu0 0.0
    %547 = vmatmul.mubr.f32.gmra.mrb[0].mxu0 %v186
    %v548 = vpop.f32.mrb[0].mxu0
    %v549 = vadd.f32 %v458, %v548
    %v550 = vpop.f32.mrb[0].mxu0
    %v551 = vadd.f32 %v462, %v550
    %552 = vmatprep.mubr.f32.mxu0 0.0
    %553 = vmatmul.mubr.f32.gmra.mrb[0].mxu0 %v187
    %v554 = vpop.f32.mrb[0].mxu0
    %v555 = vadd.f32 %v458, %v554
    %v556 = vpop.f32.mrb[0].mxu0
    %v557 = vadd.f32 %v462, %v556
    %558 = vdwg.mxu0
    %559 = vmatprep.subr.mxu0 0.0
    %560 = vmatpush1.msra.mxu0 %v407
    %561 = vmatprep.subr.mxu0 0.0
    %562 = vmatpush1.msra.mxu0 %v410
    %563 = vmatprep.subr.mxu0 0.0
    %564 = vmatpush1.msra.mxu0 %v413
    %565 = vmatprep.subr.mxu0 0.0
    %566 = vmatpush1.msra.mxu0 %v416
    %567 = vmatprep.subr.mxu0 0.0
    %568 = vmatpush1.msra.mxu0 %v419
    %569 = vmatprep.subr.mxu0 0.0
    %570 = vmatpush1.msra.mxu0 %v422
    %571 = vmatprep.subr.mxu0 0.0
    %572 = vmatpush1.msra.mxu0 %v425
    %573 = vmatprep.subr.mxu0 0.0
    %574 = vmatpush1.msra.mxu0 %v428
    %575 = vmatprep.subr.mxu0 0.0
    %576 = vmatpush1.msra.mxu0 %v431
    %577 = vmatprep.subr.mxu0 0.0
    %578 = vmatpush1.msra.mxu0 %v434
    %579 = vmatprep.subr.mxu0 0.0
    %580 = vmatpush1.msra.mxu0 %v437
    %581 = vmatprep.subr.mxu0 0.0
    %582 = vmatpush1.msra.mxu0 %v440
    %583 = vmatprep.subr.mxu0 0.0
    %584 = vmatpush1.msra.mxu0 %v443
    %585 = vmatprep.subr.mxu0 0.0
    %586 = vmatpush1.msra.mxu0 %v446
    %587 = vmatprep.subr.mxu0 0.0
    %588 = vmatpush1.msra.mxu0 %v449
    %589 = vmatprep.subr.mxu0 0.0
    %590 = vmatpush1.msra.mxu0 %v452
    %591 = vmatprep.subr.mxu0 0.0
    %592 = vmatpush1.msra.mxu0 0.0
    %593 = vmatprep.subr.mxu0 0.0
    %594 = vmatpush1.msra.mxu0 0.0
    %595 = vmatprep.subr.mxu0 0.0
    %596 = vmatpush1.msra.mxu0 0.0
    %597 = vmatprep.subr.mxu0 0.0
    %598 = vmatpush1.msra.mxu0 0.0
    %599 = vmatprep.subr.mxu0 0.0
    %600 = vmatpush1.msra.mxu0 0.0
    %601 = vmatprep.subr.mxu0 0.0
    %602 = vmatpush1.msra.mxu0 0.0
    %603 = vmatprep.subr.mxu0 0.0
    %604 = vmatpush1.msra.mxu0 0.0
    %605 = vmatprep.subr.mxu0 0.0
    %606 = vmatpush1.msra.mxu0 0.0
    %607 = vmatprep.subr.mxu0 0.0
    %608 = vmatpush1.msra.mxu0 0.0
    %609 = vmatprep.subr.mxu0 0.0
    %610 = vmatpush1.msra.mxu0 0.0
    %611 = vmatprep.subr.mxu0 0.0
    %612 = vmatpush1.msra.mxu0 0.0
    %613 = vmatprep.subr.mxu0 0.0
    %614 = vmatpush1.msra.mxu0 0.0
    %615 = vmatprep.subr.mxu0 0.0
    %616 = vmatpush1.msra.mxu0 0.0
    %617 = vmatprep.subr.mxu0 0.0
    %618 = vmatpush1.msra.mxu0 0.0
    %619 = vmatprep.subr.mxu0 0.0
    %620 = vmatpush1.msra.mxu0 0.0
    %621 = vmatprep.subr.mxu0 0.0
    %622 = vmatpush1.msra.mxu0 0.0
    %623 = vmatprep.mubr.f32.mxu0 0.0
    %624 = vmatmul.mubr.f32.gmra.mrb[0].mxu0 %v184
    %v625 = vpop.f32.mrb[0].mxu0
    %v626 = vadd.f32 %v466, %v625
    %v627 = vpop.f32.mrb[0].mxu0
    %628 = vmatprep.mubr.f32.mxu0 0.0
    %629 = vmatmul.mubr.f32.gmra.mrb[0].mxu0 %v185
    %v630 = vpop.f32.mrb[0].mxu0
    %v631 = vadd.f32 %v466, %v630
    %v632 = vpop.f32.mrb[0].mxu0
    %633 = vmatprep.mubr.f32.mxu0 0.0
    %634 = vmatmul.mubr.f32.gmra.mrb[0].mxu0 %v186
    %v635 = vpop.f32.mrb[0].mxu0
    %v636 = vadd.f32 %v466, %v635
    %v637 = vpop.f32.mrb[0].mxu0
    %638 = vmatprep.mubr.f32.mxu0 0.0
    %639 = vmatmul.mubr.f32.gmra.mrb[0].mxu0 %v187
    %v640 = vpop.f32.mrb[0].mxu0
    %v641 = vadd.f32 %v466, %v640
    %v642 = vpop.f32.mrb[0].mxu0
    %643 = vdwg.mxu0
    %644 = vmatprep.subr.mxu0 0.0
    %645 = vmatpush1.xpose.msra.mxu0 %v539
    %646 = vmatprep.subr.mxu0 0.0
    %647 = vmatpush1.xpose.msra.mxu0 %v545
    %648 = vmatprep.subr.mxu0 0.0
    %649 = vmatpush1.xpose.msra.mxu0 0.0
    %650 = vmatprep.subr.mxu0 0.0
    %651 = vmatpush1.xpose.msra.mxu0 0.0
    %652 = vmatprep.subr.mxu0 0.0
    %653 = vmatpush1.xpose.msra.mxu0 0.0
    %654 = vmatprep.subr.mxu0 0.0
    %655 = vmatpush1.xpose.msra.mxu0 0.0
    %656 = vmatprep.subr.mxu0 0.0
    %657 = vmatpush1.xpose.msra.mxu0 0.0
    %658 = vmatprep.subr.mxu0 0.0
    %659 = vmatpush1.xpose.msra.mxu0 0.0
    %660 = vmatprep.subr.mxu0 0.0
    %661 = vmatpush1.xpose.msra.mxu0 0.0
    %662 = vmatprep.subr.mxu0 0.0
    %663 = vmatpush1.xpose.msra.mxu0 0.0
    %664 = vmatprep.subr.mxu0 0.0
    %665 = vmatpush1.xpose.msra.mxu0 0.0
    %666 = vmatprep.subr.mxu0 0.0
    %667 = vmatpush1.xpose.msra.mxu0 0.0
    %668 = vmatprep.subr.mxu0 0.0
    %669 = vmatpush1.xpose.msra.mxu0 0.0
    %670 = vmatprep.subr.mxu0 0.0
    %671 = vmatpush1.xpose.msra.mxu0 0.0
    %672 = vmatprep.subr.mxu0 0.0
    %673 = vmatpush1.xpose.msra.mxu0 0.0
    %674 = vmatprep.subr.mxu0 0.0
    %675 = vmatpush1.xpose.msra.mxu0 0.0
    %676 = vmatprep.subr.mxu0 0.0
    %677 = vmatpush1.xpose.msra.mxu0 0.0
    %678 = vmatprep.subr.mxu0 0.0
    %679 = vmatpush1.xpose.msra.mxu0 0.0
    %680 = vmatprep.subr.mxu0 0.0
    %681 = vmatpush1.xpose.msra.mxu0 0.0
    %682 = vmatprep.subr.mxu0 0.0
    %683 = vmatpush1.xpose.msra.mxu0 0.0
    %684 = vmatprep.subr.mxu0 0.0
    %685 = vmatpush1.xpose.msra.mxu0 0.0
    %686 = vmatprep.subr.mxu0 0.0
    %687 = vmatpush1.xpose.msra.mxu0 0.0
    %688 = vmatprep.subr.mxu0 0.0
    %689 = vmatpush1.xpose.msra.mxu0 0.0
    %690 = vmatprep.subr.mxu0 0.0
    %691 = vmatpush1.xpose.msra.mxu0 0.0
    %692 = vmatprep.subr.mxu0 0.0
    %693 = vmatpush1.xpose.msra.mxu0 0.0
    %694 = vmatprep.subr.mxu0 0.0
    %695 = vmatpush1.xpose.msra.mxu0 0.0
    %696 = vmatprep.subr.mxu0 0.0
    %697 = vmatpush1.xpose.msra.mxu0 0.0
    %698 = vmatprep.subr.mxu0 0.0
    %699 = vmatpush1.xpose.msra.mxu0 0.0
    %700 = vmatprep.subr.mxu0 0.0
    %701 = vmatpush1.xpose.msra.mxu0 0.0
    %702 = vmatprep.subr.mxu0 0.0
    %703 = vmatpush1.xpose.msra.mxu0 0.0
    %704 = vmatprep.subr.mxu0 0.0
    %705 = vmatpush1.xpose.msra.mxu0 0.0
    %706 = vmatprep.subr.mxu0 0.0
    %707 = vmatpush1.xpose.msra.mxu0 0.0
    %708 = vmatprep.mubr.f32.mxu0 0.0
    %709 = vmatmul.mubr.f32.gmra.mrb[0].mxu0 %v320
    %v710 = vpop.f32.mrb[0].mxu0
    %v711 = vadd.f32 0.0, %v710
    %v712 = vpop.f32.mrb[0].mxu0
    %713 = vdwg.mxu0
    %714 = vmatprep.subr.mxu0 0.0
    %715 = vmatpush1.xpose.msra.mxu0 %v551
    %716 = vmatprep.subr.mxu0 0.0
    %717 = vmatpush1.xpose.msra.mxu0 %v557
    %718 = vmatprep.subr.mxu0 0.0
    %719 = vmatpush1.xpose.msra.mxu0 0.0
    %720 = vmatprep.subr.mxu0 0.0
    %721 = vmatpush1.xpose.msra.mxu0 0.0
    %722 = vmatprep.subr.mxu0 0.0
    %723 = vmatpush1.xpose.msra.mxu0 0.0
    %724 = vmatprep.subr.mxu0 0.0
    %725 = vmatpush1.xpose.msra.mxu0 0.0
    %726 = vmatprep.subr.mxu0 0.0
    %727 = vmatpush1.xpose.msra.mxu0 0.0
    %728 = vmatprep.subr.mxu0 0.0
    %729 = vmatpush1.xpose.msra.mxu0 0.0
    %730 = vmatprep.subr.mxu0 0.0
    %731 = vmatpush1.xpose.msra.mxu0 0.0
    %732 = vmatprep.subr.mxu0 0.0
    %733 = vmatpush1.xpose.msra.mxu0 0.0
    %734 = vmatprep.subr.mxu0 0.0
    %735 = vmatpush1.xpose.msra.mxu0 0.0
    %736 = vmatprep.subr.mxu0 0.0
    %737 = vmatpush1.xpose.msra.mxu0 0.0
    %738 = vmatprep.subr.mxu0 0.0
    %739 = vmatpush1.xpose.msra.mxu0 0.0
    %740 = vmatprep.subr.mxu0 0.0
    %741 = vmatpush1.xpose.msra.mxu0 0.0
    %742 = vmatprep.subr.mxu0 0.0
    %743 = vmatpush1.xpose.msra.mxu0 0.0
    %744 = vmatprep.subr.mxu0 0.0
    %745 = vmatpush1.xpose.msra.mxu0 0.0
    %746 = vmatprep.subr.mxu0 0.0
    %747 = vmatpush1.xpose.msra.mxu0 0.0
    %748 = vmatprep.subr.mxu0 0.0
    %749 = vmatpush1.xpose.msra.mxu0 0.0
    %750 = vmatprep.subr.mxu0 0.0
    %751 = vmatpush1.xpose.msra.mxu0 0.0
    %752 = vmatprep.subr.mxu0 0.0
    %753 = vmatpush1.xpose.msra.mxu0 0.0
    %754 = vmatprep.subr.mxu0 0.0
    %755 = vmatpush1.xpose.msra.mxu0 0.0
    %756 = vmatprep.subr.mxu0 0.0
    %757 = vmatpush1.xpose.msra.mxu0 0.0
    %758 = vmatprep.subr.mxu0 0.0
    %759 = vmatpush1.xpose.msra.mxu0 0.0
    %760 = vmatprep.subr.mxu0 0.0
    %761 = vmatpush1.xpose.msra.mxu0 0.0
    %762 = vmatprep.subr.mxu0 0.0
    %763 = vmatpush1.xpose.msra.mxu0 0.0
    %764 = vmatprep.subr.mxu0 0.0
    %765 = vmatpush1.xpose.msra.mxu0 0.0
    %766 = vmatprep.subr.mxu0 0.0
    %767 = vmatpush1.xpose.msra.mxu0 0.0
    %768 = vmatprep.subr.mxu0 0.0
    %769 = vmatpush1.xpose.msra.mxu0 0.0
    %770 = vmatprep.subr.mxu0 0.0
    %771 = vmatpush1.xpose.msra.mxu0 0.0
    %772 = vmatprep.subr.mxu0 0.0
    %773 = vmatpush1.xpose.msra.mxu0 0.0
    %774 = vmatprep.subr.mxu0 0.0
    %775 = vmatpush1.xpose.msra.mxu0 0.0
    %776 = vmatprep.subr.mxu0 0.0
    %777 = vmatpush1.xpose.msra.mxu0 0.0
    %778 = vmatprep.mubr.f32.mxu0 0.0
    %779 = vmatmul.mubr.f32.gmra.mrb[0].mxu0 %v326
    %v780 = vpop.f32.mrb[0].mxu0
    %v781 = vadd.f32 0.0, %v780
    %v782 = vpop.f32.mrb[0].mxu0
    %783 = vdwg.mxu0
    %v784 = vmul.f32 %v711, 0.088388346
    %v785 = vmul.f32 %v781, 0.088388346
    %vm786 = vcmask 130048
    %v787 = vsel %vm786, %v784, -inf
    %788 = vmax.xlane.f32.xlu0 %v787
    %v789 = vpop.xlane.xlu0 %788
    %v790 = vsel %vm786, %v785, -inf
    %791 = vmax.xlane.f32.xlu0 %v790
    %v792 = vpop.xlane.xlu0 %791
    %v793 = vsub.f32 %v784, %v789
    %v794 = vsub.f32 %v785, %v792
    %v795 = vmul.f32 %v793, 1.442695
    %v796 = vpow.pop %v795
    %v797 = vmul.f32 %v794, 1.442695
    %v798 = vpow.pop %v797
    %v799 = vsel %vm786, %v796, 0.0
    %800 = vadd.xlane.f32.xlu0 %v799
    %v801 = vpop.xlane.xlu0 %800
    %v802 = vsel %vm786, %v798, 0.0
    %803 = vadd.xlane.f32.xlu0 %v802
    %v804 = vpop.xlane.xlu0 %803
    %v805 = vrcp.pop %v801
    %v806 = vrcp.pop %v804
    %v807 = vmul.f32 %v796, %v805
    %v808 = vmul.f32 %v798, %v806
    %v810 = vsel %vm786, %v807, 0
    %812 = vmatprep.subr.mxu0 0.0
    %813 = vmatpush1.msra.mxu0 %v626
    %814 = vmatprep.subr.mxu0 0.0
    %815 = vmatpush1.msra.mxu0 %v631
    %816 = vmatprep.subr.mxu0 0.0
    %817 = vmatpush1.msra.mxu0 0.0
    %818 = vmatprep.subr.mxu0 0.0
    %819 = vmatpush1.msra.mxu0 0.0
    %820 = vmatprep.subr.mxu0 0.0
    %821 = vmatpush1.msra.mxu0 0.0
    %822 = vmatprep.subr.mxu0 0.0
    %823 = vmatpush1.msra.mxu0 0.0
    %824 = vmatprep.subr.mxu0 0.0
    %825 = vmatpush1.msra.mxu0 0.0
    %826 = vmatprep.subr.mxu0 0.0
    %827 = vmatpush1.msra.mxu0 0.0
    %828 = vmatprep.subr.mxu0 0.0
    %829 = vmatpush1.msra.mxu0 0.0
    %830 = vmatprep.subr.mxu0 0.0
    %831 = vmatpush1.msra.mxu0 0.0
    %832 = vmatprep.subr.mxu0 0.0
    %833 = vmatpush1.msra.mxu0 0.0
    %834 = vmatprep.subr.mxu0 0.0
    %835 = vmatpush1.msra.mxu0 0.0
    %836 = vmatprep.subr.mxu0 0.0
    %837 = vmatpush1.msra.mxu0 0.0
    %838 = vmatprep.subr.mxu0 0.0
    %839 = vmatpush1.msra.mxu0 0.0
    %840 = vmatprep.subr.mxu0 0.0
    %841 = vmatpush1.msra.mxu0 0.0
    %842 = vmatprep.subr.mxu0 0.0
    %843 = vmatpush1.msra.mxu0 0.0
    %844 = vmatprep.subr.mxu0 0.0
    %845 = vmatpush1.msra.mxu0 0.0
    %846 = vmatprep.subr.mxu0 0.0
    %847 = vmatpush1.msra.mxu0 0.0
    %848 = vmatprep.subr.mxu0 0.0
    %849 = vmatpush1.msra.mxu0 0.0
    %850 = vmatprep.subr.mxu0 0.0
    %851 = vmatpush1.msra.mxu0 0.0
    %852 = vmatprep.subr.mxu0 0.0
    %853 = vmatpush1.msra.mxu0 0.0
    %854 = vmatprep.subr.mxu0 0.0
    %855 = vmatpush1.msra.mxu0 0.0
    %856 = vmatprep.subr.mxu0 0.0
    %857 = vmatpush1.msra.mxu0 0.0
    %858 = vmatprep.subr.mxu0 0.0
    %859 = vmatpush1.msra.mxu0 0.0
    %860 = vmatprep.subr.mxu0 0.0
    %861 = vmatpush1.msra.mxu0 0.0
    %862 = vmatprep.subr.mxu0 0.0
    %863 = vmatpush1.msra.mxu0 0.0
    %864 = vmatprep.subr.mxu0 0.0
    %865 = vmatpush1.msra.mxu0 0.0
    %866 = vmatprep.subr.mxu0 0.0
    %867 = vmatpush1.msra.mxu0 0.0
    %868 = vmatprep.subr.mxu0 0.0
    %869 = vmatpush1.msra.mxu0 0.0
    %870 = vmatprep.subr.mxu0 0.0
    %871 = vmatpush1.msra.mxu0 0.0
    %872 = vmatprep.subr.mxu0 0.0
    %873 = vmatpush1.msra.mxu0 0.0
    %874 = vmatprep.subr.mxu0 0.0
    %875 = vmatpush1.msra.mxu0 0.0
    %876 = vmatprep.mubr.f32.mxu0 0.0
    %877 = vmatmul.mubr.f32.gmra.mrb[0].mxu0 %v810
    %v878 = vpop.f32.mrb[0].mxu0
    %v879 = vadd.f32 0.0, %v878
    %v880 = vpop.f32.mrb[0].mxu0
    %881 = vdwg.mxu0
    %v883 = vsel %vm786, %v808, 0
    %885 = vmatprep.subr.mxu0 0.0
    %886 = vmatpush1.msra.mxu0 %v636
    %887 = vmatprep.subr.mxu0 0.0
    %888 = vmatpush1.msra.mxu0 %v641
    %889 = vmatprep.subr.mxu0 0.0
    %890 = vmatpush1.msra.mxu0 0.0
    %891 = vmatprep.subr.mxu0 0.0
    %892 = vmatpush1.msra.mxu0 0.0
    %893 = vmatprep.subr.mxu0 0.0
    %894 = vmatpush1.msra.mxu0 0.0
    %895 = vmatprep.subr.mxu0 0.0
    %896 = vmatpush1.msra.mxu0 0.0
    %897 = vmatprep.subr.mxu0 0.0
    %898 = vmatpush1.msra.mxu0 0.0
    %899 = vmatprep.subr.mxu0 0.0
    %900 = vmatpush1.msra.mxu0 0.0
    %901 = vmatprep.subr.mxu0 0.0
    %902 = vmatpush1.msra.mxu0 0.0
    %903 = vmatprep.subr.mxu0 0.0
    %904 = vmatpush1.msra.mxu0 0.0
    %905 = vmatprep.subr.mxu0 0.0
    %906 = vmatpush1.msra.mxu0 0.0
    %907 = vmatprep.subr.mxu0 0.0
    %908 = vmatpush1.msra.mxu0 0.0
    %909 = vmatprep.subr.mxu0 0.0
    %910 = vmatpush1.msra.mxu0 0.0
    %911 = vmatprep.subr.mxu0 0.0
    %912 = vmatpush1.msra.mxu0 0.0
    %913 = vmatprep.subr.mxu0 0.0
    %914 = vmatpush1.msra.mxu0 0.0
    %915 = vmatprep.subr.mxu0 0.0
    %916 = vmatpush1.msra.mxu0 0.0
    %917 = vmatprep.subr.mxu0 0.0
    %918 = vmatpush1.msra.mxu0 0.0
    %919 = vmatprep.subr.mxu0 0.0
    %920 = vmatpush1.msra.mxu0 0.0
    %921 = vmatprep.subr.mxu0 0.0
    %922 = vmatpush1.msra.mxu0 0.0
    %923 = vmatprep.subr.mxu0 0.0
    %924 = vmatpush1.msra.mxu0 0.0
    %925 = vmatprep.subr.mxu0 0.0
    %926 = vmatpush1.msra.mxu0 0.0
    %927 = vmatprep.subr.mxu0 0.0
    %928 = vmatpush1.msra.mxu0 0.0
    %929 = vmatprep.subr.mxu0 0.0
    %930 = vmatpush1.msra.mxu0 0.0
    %931 = vmatprep.subr.mxu0 0.0
    %932 = vmatpush1.msra.mxu0 0.0
    %933 = vmatprep.subr.mxu0 0.0
    %934 = vmatpush1.msra.mxu0 0.0
    %935 = vmatprep.subr.mxu0 0.0
    %936 = vmatpush1.msra.mxu0 0.0
    %937 = vmatprep.subr.mxu0 0.0
    %938 = vmatpush1.msra.mxu0 0.0
    %939 = vmatprep.subr.mxu0 0.0
    %940 = vmatpush1.msra.mxu0 0.0
    %941 = vmatprep.subr.mxu0 0.0
    %942 = vmatpush1.msra.mxu0 0.0
    %943 = vmatprep.subr.mxu0 0.0
    %944 = vmatpush1.msra.mxu0 0.0
    %945 = vmatprep.subr.mxu0 0.0
    %946 = vmatpush1.msra.mxu0 0.0
    %947 = vmatprep.subr.mxu0 0.0
    %948 = vmatpush1.msra.mxu0 0.0
    %949 = vmatprep.mubr.f32.mxu0 0.0
    %950 = vmatmul.mubr.f32.gmra.mrb[0].mxu0 %v883
    %v951 = vpop.f32.mrb[0].mxu0
    %v952 = vadd.f32 0.0, %v951
    %v953 = vpop.f32.mrb[0].mxu0
    %954 = vdwg.mxu0
    %955 = vmatprep.subr.mxu0 0.0
    %956 = vmatpush1.xpose.msra.mxu0 %v322
    %957 = vmatprep.subr.mxu0 0.0
    %958 = vmatpush1.xpose.msra.mxu0 0.0
    %959 = vmatprep.subr.mxu0 0.0
    %960 = vmatpush1.xpose.msra.mxu0 0.0
    %961 = vmatprep.subr.mxu0 0.0
    %962 = vmatpush1.xpose.msra.mxu0 0.0
    %963 = vmatprep.subr.mxu0 0.0
    %964 = vmatpush1.xpose.msra.mxu0 0.0
    %965 = vmatprep.subr.mxu0 0.0
    %966 = vmatpush1.xpose.msra.mxu0 0.0
    %967 = vmatprep.subr.mxu0 0.0
    %968 = vmatpush1.xpose.msra.mxu0 0.0
    %969 = vmatprep.subr.mxu0 0.0
    %970 = vmatpush1.xpose.msra.mxu0 0.0
    %971 = vmatprep.subr.mxu0 0.0
    %972 = vmatpush1.xpose.msra.mxu0 0.0
    %973 = vmatprep.subr.mxu0 0.0
    %974 = vmatpush1.xpose.msra.mxu0 0.0
    %975 = vmatprep.subr.mxu0 0.0
    %976 = vmatpush1.xpose.msra.mxu0 0.0
    %977 = vmatprep.subr.mxu0 0.0
    %978 = vmatpush1.xpose.msra.mxu0 0.0
    %979 = vmatprep.subr.mxu0 0.0
    %980 = vmatpush1.xpose.msra.mxu0 0.0
    %981 = vmatprep.subr.mxu0 0.0
    %982 = vmatpush1.xpose.msra.mxu0 0.0
    %983 = vmatprep.subr.mxu0 0.0
    %984 = vmatpush1.xpose.msra.mxu0 0.0
    %985 = vmatprep.subr.mxu0 0.0
    %986 = vmatpush1.xpose.msra.mxu0 0.0
    %987 = vmatprep.subr.mxu0 0.0
    %988 = vmatpush1.xpose.msra.mxu0 0.0
    %989 = vmatprep.subr.mxu0 0.0
    %990 = vmatpush1.xpose.msra.mxu0 0.0
    %991 = vmatprep.subr.mxu0 0.0
    %992 = vmatpush1.xpose.msra.mxu0 0.0
    %993 = vmatprep.subr.mxu0 0.0
    %994 = vmatpush1.xpose.msra.mxu0 0.0
    %995 = vmatprep.subr.mxu0 0.0
    %996 = vmatpush1.xpose.msra.mxu0 0.0
    %997 = vmatprep.subr.mxu0 0.0
    %998 = vmatpush1.xpose.msra.mxu0 0.0
    %999 = vmatprep.subr.mxu0 0.0
    %1000 = vmatpush1.xpose.msra.mxu0 0.0
    %1001 = vmatprep.subr.mxu0 0.0
    %1002 = vmatpush1.xpose.msra.mxu0 0.0
    %1003 = vmatprep.subr.mxu0 0.0
    %1004 = vmatpush1.xpose.msra.mxu0 0.0
    %1005 = vmatprep.subr.mxu0 0.0
    %1006 = vmatpush1.xpose.msra.mxu0 0.0
    %1007 = vmatprep.subr.mxu0 0.0
    %1008 = vmatpush1.xpose.msra.mxu0 0.0
    %1009 = vmatprep.subr.mxu0 0.0
    %1010 = vmatpush1.xpose.msra.mxu0 0.0
    %1011 = vmatprep.subr.mxu0 0.0
    %1012 = vmatpush1.xpose.msra.mxu0 0.0
    %1013 = vmatprep.subr.mxu0 0.0
    %1014 = vmatpush1.xpose.msra.mxu0 0.0
    %1015 = vmatprep.subr.mxu0 0.0
    %1016 = vmatpush1.xpose.msra.mxu0 0.0
    %1017 = vmatprep.subr.mxu0 0.0
    %1018 = vmatpush1.xpose.msra.mxu0 0.0
    %1019 = vmatprep.mubr.f32.mxu0 0.0
    %1020 = vmatmul.mubr.f32.gmra.mrb[0].mxu0 %v537
    %v1021 = vpop.f32.mrb[0].mxu0
    %v1022 = vadd.f32 0.0, %v1021
    %v1023 = vpop.f32.mrb[0].mxu0
    %1024 = vmatprep.mubr.f32.mxu0 0.0
    %1025 = vmatmul.mubr.f32.gmra.mrb[0].mxu0 %v543
    %v1026 = vpop.f32.mrb[0].mxu0
    %v1027 = vadd.f32 0.0, %v1026
    %v1028 = vpop.f32.mrb[0].mxu0
    %1029 = vdwg.mxu0
    %1030 = vmatprep.subr.mxu0 0.0
    %1031 = vmatpush1.xpose.msra.mxu0 %v328
    %1032 = vmatprep.subr.mxu0 0.0
    %1033 = vmatpush1.xpose.msra.mxu0 0.0
    %1034 = vmatprep.subr.mxu0 0.0
    %1035 = vmatpush1.xpose.msra.mxu0 0.0
    %1036 = vmatprep.subr.mxu0 0.0
    %1037 = vmatpush1.xpose.msra.mxu0 0.0
    %1038 = vmatprep.subr.mxu0 0.0
    %1039 = vmatpush1.xpose.msra.mxu0 0.0
    %1040 = vmatprep.subr.mxu0 0.0
    %1041 = vmatpush1.xpose.msra.mxu0 0.0
    %1042 = vmatprep.subr.mxu0 0.0
    %1043 = vmatpush1.xpose.msra.mxu0 0.0
    %1044 = vmatprep.subr.mxu0 0.0
    %1045 = vmatpush1.xpose.msra.mxu0 0.0
    %1046 = vmatprep.subr.mxu0 0.0
    %1047 = vmatpush1.xpose.msra.mxu0 0.0
    %1048 = vmatprep.subr.mxu0 0.0
    %1049 = vmatpush1.xpose.msra.mxu0 0.0
    %1050 = vmatprep.subr.mxu0 0.0
    %1051 = vmatpush1.xpose.msra.mxu0 0.0
    %1052 = vmatprep.subr.mxu0 0.0
    %1053 = vmatpush1.xpose.msra.mxu0 0.0
    %1054 = vmatprep.subr.mxu0 0.0
    %1055 = vmatpush1.xpose.msra.mxu0 0.0
    %1056 = vmatprep.subr.mxu0 0.0
    %1057 = vmatpush1.xpose.msra.mxu0 0.0
    %1058 = vmatprep.subr.mxu0 0.0
    %1059 = vmatpush1.xpose.msra.mxu0 0.0
    %1060 = vmatprep.subr.mxu0 0.0
    %1061 = vmatpush1.xpose.msra.mxu0 0.0
    %1062 = vmatprep.subr.mxu0 0.0
    %1063 = vmatpush1.xpose.msra.mxu0 0.0
    %1064 = vmatprep.subr.mxu0 0.0
    %1065 = vmatpush1.xpose.msra.mxu0 0.0
    %1066 = vmatprep.subr.mxu0 0.0
    %1067 = vmatpush1.xpose.msra.mxu0 0.0
    %1068 = vmatprep.subr.mxu0 0.0
    %1069 = vmatpush1.xpose.msra.mxu0 0.0
    %1070 = vmatprep.subr.mxu0 0.0
    %1071 = vmatpush1.xpose.msra.mxu0 0.0
    %1072 = vmatprep.subr.mxu0 0.0
    %1073 = vmatpush1.xpose.msra.mxu0 0.0
    %1074 = vmatprep.subr.mxu0 0.0
    %1075 = vmatpush1.xpose.msra.mxu0 0.0
    %1076 = vmatprep.subr.mxu0 0.0
    %1077 = vmatpush1.xpose.msra.mxu0 0.0
    %1078 = vmatprep.subr.mxu0 0.0
    %1079 = vmatpush1.xpose.msra.mxu0 0.0
    %1080 = vmatprep.subr.mxu0 0.0
    %1081 = vmatpush1.xpose.msra.mxu0 0.0
    %1082 = vmatprep.subr.mxu0 0.0
    %1083 = vmatpush1.xpose.msra.mxu0 0.0
    %1084 = vmatprep.subr.mxu0 0.0
    %1085 = vmatpush1.xpose.msra.mxu0 0.0
    %1086 = vmatprep.subr.mxu0 0.0
    %1087 = vmatpush1.xpose.msra.mxu0 0.0
    %1088 = vmatprep.subr.mxu0 0.0
    %1089 = vmatpush1.xpose.msra.mxu0 0.0
    %1090 = vmatprep.subr.mxu0 0.0
    %1091 = vmatpush1.xpose.msra.mxu0 0.0
    %1092 = vmatprep.subr.mxu0 0.0
    %1093 = vmatpush1.xpose.msra.mxu0 0.0
    %1094 = vmatprep.mubr.f32.mxu0 0.0
    %1095 = vmatmul.mubr.f32.gmra.mrb[0].mxu0 %v549
    %v1096 = vpop.f32.mrb[0].mxu0
    %v1097 = vadd.f32 0.0, %v1096
    %v1098 = vpop.f32.mrb[0].mxu0
    %1099 = vmatprep.mubr.f32.mxu0 0.0
    %1100 = vmatmul.mubr.f32.gmra.mrb[0].mxu0 %v555
    %v1101 = vpop.f32.mrb[0].mxu0
    %v1102 = vadd.f32 0.0, %v1101
    %v1103 = vpop.f32.mrb[0].mxu0
    %1104 = vdwg.mxu0
    %v1105 = vmul.f32 %v1022, 0.088388346
    %v1106 = vmul.f32 %v1027, 0.088388346
    %v1107 = vmul.f32 %v1097, 0.088388346
    %v1108 = vmul.f32 %v1102, 0.088388346
    %vm1109 = vcmask 64512
    %v1110 = vsel %vm1109, %v1105, -inf
    %1111 = vmax.xlane.f32.xlu0 %v1110
    %v1112 = vpop.xlane.xlu0 %1111
    %v1113 = vsel %vm1109, %v1106, -inf
    %1114 = vmax.xlane.f32.xlu0 %v1113
    %v1115 = vpop.xlane.xlu0 %1114
    %v1116 = vsel %vm1109, %v1107, -inf
    %1117 = vmax.xlane.f32.xlu0 %v1116
    %v1118 = vpop.xlane.xlu0 %1117
    %v1119 = vsel %vm1109, %v1108, -inf
    %1120 = vmax.xlane.f32.xlu0 %v1119
    %v1121 = vpop.xlane.xlu0 %1120
    %v1122 = vsub.f32 %v1105, %v1112
    %v1123 = vsub.f32 %v1106, %v1115
    %v1124 = vsub.f32 %v1107, %v1118
    %v1125 = vsub.f32 %v1108, %v1121
    %v1126 = vmul.f32 %v1122, 1.442695
    %v1127 = vpow.pop %v1126
    %v1128 = vmul.f32 %v1123, 1.442695
    %v1129 = vpow.pop %v1128
    %v1130 = vmul.f32 %v1124, 1.442695
    %v1131 = vpow.pop %v1130
    %v1132 = vmul.f32 %v1125, 1.442695
    %v1133 = vpow.pop %v1132
    %v1134 = vsel %vm1109, %v1127, 0.0
    %1135 = vadd.xlane.f32.xlu0 %v1134
    %v1136 = vpop.xlane.xlu0 %1135
    %v1137 = vsel %vm1109, %v1129, 0.0
    %1138 = vadd.xlane.f32.xlu0 %v1137
    %v1139 = vpop.xlane.xlu0 %1138
    %v1140 = vsel %vm1109, %v1131, 0.0
    %1141 = vadd.xlane.f32.xlu0 %v1140
    %v1142 = vpop.xlane.xlu0 %1141
    %v1143 = vsel %vm1109, %v1133, 0.0
    %1144 = vadd.xlane.f32.xlu0 %v1143
    %v1145 = vpop.xlane.xlu0 %1144
    %v1146 = vrcp.pop %v1136
    %v1147 = vrcp.pop %v1139
    %v1148 = vrcp.pop %v1142
    %v1149 = vrcp.pop %v1145
    %v1150 = vmul.f32 %v1127, %v1146
    %v1151 = vmul.f32 %v1129, %v1147
    %v1152 = vmul.f32 %v1131, %v1148
    %v1153 = vmul.f32 %v1133, %v1149
    %v1155 = vsel %vm1109, %v1150, 0
    %v1158 = vsel %vm1109, %v1151, 0
    %1160 = vmatprep.subr.mxu0 0.0
    %1161 = vmatpush1.msra.mxu0 %v397
    %1162 = vmatprep.subr.mxu0 0.0
    %1163 = vmatpush1.msra.mxu0 0.0
    %1164 = vmatprep.subr.mxu0 0.0
    %1165 = vmatpush1.msra.mxu0 0.0
    %1166 = vmatprep.subr.mxu0 0.0
    %1167 = vmatpush1.msra.mxu0 0.0
    %1168 = vmatprep.subr.mxu0 0.0
    %1169 = vmatpush1.msra.mxu0 0.0
    %1170 = vmatprep.subr.mxu0 0.0
    %1171 = vmatpush1.msra.mxu0 0.0
    %1172 = vmatprep.subr.mxu0 0.0
    %1173 = vmatpush1.msra.mxu0 0.0
    %1174 = vmatprep.subr.mxu0 0.0
    %1175 = vmatpush1.msra.mxu0 0.0
    %1176 = vmatprep.subr.mxu0 0.0
    %1177 = vmatpush1.msra.mxu0 0.0
    %1178 = vmatprep.subr.mxu0 0.0
    %1179 = vmatpush1.msra.mxu0 0.0
    %1180 = vmatprep.subr.mxu0 0.0
    %1181 = vmatpush1.msra.mxu0 0.0
    %1182 = vmatprep.subr.mxu0 0.0
    %1183 = vmatpush1.msra.mxu0 0.0
    %1184 = vmatprep.subr.mxu0 0.0
    %1185 = vmatpush1.msra.mxu0 0.0
    %1186 = vmatprep.subr.mxu0 0.0
    %1187 = vmatpush1.msra.mxu0 0.0
    %1188 = vmatprep.subr.mxu0 0.0
    %1189 = vmatpush1.msra.mxu0 0.0
    %1190 = vmatprep.subr.mxu0 0.0
    %1191 = vmatpush1.msra.mxu0 0.0
    %1192 = vmatprep.subr.mxu0 0.0
    %1193 = vmatpush1.msra.mxu0 0.0
    %1194 = vmatprep.subr.mxu0 0.0
    %1195 = vmatpush1.msra.mxu0 0.0
    %1196 = vmatprep.subr.mxu0 0.0
    %1197 = vmatpush1.msra.mxu0 0.0
    %1198 = vmatprep.subr.mxu0 0.0
    %1199 = vmatpush1.msra.mxu0 0.0
    %1200 = vmatprep.subr.mxu0 0.0
    %1201 = vmatpush1.msra.mxu0 0.0
    %1202 = vmatprep.subr.mxu0 0.0
    %1203 = vmatpush1.msra.mxu0 0.0
    %1204 = vmatprep.subr.mxu0 0.0
    %1205 = vmatpush1.msra.mxu0 0.0
    %1206 = vmatprep.subr.mxu0 0.0
    %1207 = vmatpush1.msra.mxu0 0.0
    %1208 = vmatprep.subr.mxu0 0.0
    %1209 = vmatpush1.msra.mxu0 0.0
    %1210 = vmatprep.subr.mxu0 0.0
    %1211 = vmatpush1.msra.mxu0 0.0
    %1212 = vmatprep.subr.mxu0 0.0
    %1213 = vmatpush1.msra.mxu0 0.0
    %1214 = vmatprep.subr.mxu0 0.0
    %1215 = vmatpush1.msra.mxu0 0.0
    %1216 = vmatprep.subr.mxu0 0.0
    %1217 = vmatpush1.msra.mxu0 0.0
    %1218 = vmatprep.subr.mxu0 0.0
    %1219 = vmatpush1.msra.mxu0 0.0
    %1220 = vmatprep.subr.mxu0 0.0
    %1221 = vmatpush1.msra.mxu0 0.0
    %1222 = vmatprep.subr.mxu0 0.0
    %1223 = vmatpush1.msra.mxu0 0.0
    %1224 = vmatprep.mubr.f32.mxu0 0.0
    %1225 = vmatmul.mubr.f32.gmra.mrb[0].mxu0 %v1155
    %v1226 = vpop.f32.mrb[0].mxu0
    %v1227 = vadd.f32 0.0, %v1226
    %v1228 = vpop.f32.mrb[0].mxu0
    %1229 = vmatprep.mubr.f32.mxu0 0.0
    %1230 = vmatmul.mubr.f32.gmra.mrb[0].mxu0 %v1158
    %v1231 = vpop.f32.mrb[0].mxu0
    %v1232 = vadd.f32 0.0, %v1231
    %v1233 = vpop.f32.mrb[0].mxu0
    %1234 = vdwg.mxu0
    %v1236 = vsel %vm1109, %v1152, 0
    %v1239 = vsel %vm1109, %v1153, 0
    %1241 = vmatprep.subr.mxu0 0.0
    %1242 = vmatpush1.msra.mxu0 %v402
    %1243 = vmatprep.subr.mxu0 0.0
    %1244 = vmatpush1.msra.mxu0 0.0
    %1245 = vmatprep.subr.mxu0 0.0
    %1246 = vmatpush1.msra.mxu0 0.0
    %1247 = vmatprep.subr.mxu0 0.0
    %1248 = vmatpush1.msra.mxu0 0.0
    %1249 = vmatprep.subr.mxu0 0.0
    %1250 = vmatpush1.msra.mxu0 0.0
    %1251 = vmatprep.subr.mxu0 0.0
    %1252 = vmatpush1.msra.mxu0 0.0
    %1253 = vmatprep.subr.mxu0 0.0
    %1254 = vmatpush1.msra.mxu0 0.0
    %1255 = vmatprep.subr.mxu0 0.0
    %1256 = vmatpush1.msra.mxu0 0.0
    %1257 = vmatprep.subr.mxu0 0.0
    %1258 = vmatpush1.msra.mxu0 0.0
    %1259 = vmatprep.subr.mxu0 0.0
    %1260 = vmatpush1.msra.mxu0 0.0
    %1261 = vmatprep.subr.mxu0 0.0
    %1262 = vmatpush1.msra.mxu0 0.0
    %1263 = vmatprep.subr.mxu0 0.0
    %1264 = vmatpush1.msra.mxu0 0.0
    %1265 = vmatprep.subr.mxu0 0.0
    %1266 = vmatpush1.msra.mxu0 0.0
    %1267 = vmatprep.subr.mxu0 0.0
    %1268 = vmatpush1.msra.mxu0 0.0
    %1269 = vmatprep.subr.mxu0 0.0
    %1270 = vmatpush1.msra.mxu0 0.0
    %1271 = vmatprep.subr.mxu0 0.0
    %1272 = vmatpush1.msra.mxu0 0.0
    %1273 = vmatprep.subr.mxu0 0.0
    %1274 = vmatpush1.msra.mxu0 0.0
    %1275 = vmatprep.subr.mxu0 0.0
    %1276 = vmatpush1.msra.mxu0 0.0
    %1277 = vmatprep.subr.mxu0 0.0
    %1278 = vmatpush1.msra.mxu0 0.0
    %1279 = vmatprep.subr.mxu0 0.0
    %1280 = vmatpush1.msra.mxu0 0.0
    %1281 = vmatprep.subr.mxu0 0.0
    %1282 = vmatpush1.msra.mxu0 0.0
    %1283 = vmatprep.subr.mxu0 0.0
    %1284 = vmatpush1.msra.mxu0 0.0
    %1285 = vmatprep.subr.mxu0 0.0
    %1286 = vmatpush1.msra.mxu0 0.0
    %1287 = vmatprep.subr.mxu0 0.0
    %1288 = vmatpush1.msra.mxu0 0.0
    %1289 = vmatprep.subr.mxu0 0.0
    %1290 = vmatpush1.msra.mxu0 0.0
    %1291 = vmatprep.subr.mxu0 0.0
    %1292 = vmatpush1.msra.mxu0 0.0
    %1293 = vmatprep.subr.mxu0 0.0
    %1294 = vmatpush1.msra.mxu0 0.0
    %1295 = vmatprep.subr.mxu0 0.0
    %1296 = vmatpush1.msra.mxu0 0.0
    %1297 = vmatprep.subr.mxu0 0.0
    %1298 = vmatpush1.msra.mxu0 0.0
    %1299 = vmatprep.subr.mxu0 0.0
    %1300 = vmatpush1.msra.mxu0 0.0
    %1301 = vmatprep.subr.mxu0 0.0
    %1302 = vmatpush1.msra.mxu0 0.0
    %1303 = vmatprep.subr.mxu0 0.0
    %1304 = vmatpush1.msra.mxu0 0.0
    %1305 = vmatprep.mubr.f32.mxu0 0.0
    %1306 = vmatmul.mubr.f32.gmra.mrb[0].mxu0 %v1236
    %v1307 = vpop.f32.mrb[0].mxu0
    %v1308 = vadd.f32 0.0, %v1307
    %v1309 = vpop.f32.mrb[0].mxu0
    %1310 = vmatprep.mubr.f32.mxu0 0.0
    %1311 = vmatmul.mubr.f32.gmra.mrb[0].mxu0 %v1239
    %v1312 = vpop.f32.mrb[0].mxu0
    %v1313 = vadd.f32 0.0, %v1312
    %v1314 = vpop.f32.mrb[0].mxu0
    %1315 = vdwg.mxu0
    %v1316 = vld [vmem:[#allocation12] sm:$0xff]
    %v1317 = vld [vmem:[#allocation12 + $0x8] sm:$0xff]
    %v1318 = vld [vmem:[#allocation12 + $0x10] sm:$0xff]
    %v1319 = vld [vmem:[#allocation12 + $0x18] sm:$0xff]
    %v1320 = vld [vmem:[#allocation12 + $0x20] sm:$0xff]
    %v1321 = vld [vmem:[#allocation12 + $0x28] sm:$0xff]
    %v1322 = vld [vmem:[#allocation12 + $0x30] sm:$0xff]
    %v1323 = vld [vmem:[#allocation12 + $0x38] sm:$0xff]
    %v1324 = vld [vmem:[#allocation12 + $0x40] sm:$0xff]
    %v1325 = vld [vmem:[#allocation12 + $0x48] sm:$0xff]
    %v1326 = vld [vmem:[#allocation12 + $0x50] sm:$0xff]
    %v1327 = vld [vmem:[#allocation12 + $0x58] sm:$0xff]
    %v1328 = vld [vmem:[#allocation12 + $0x60] sm:$0xff]
    %v1329 = vld [vmem:[#allocation12 + $0x68] sm:$0xff]
    %v1330 = vld [vmem:[#allocation12 + $0x70] sm:$0xff]
    %v1331 = vld [vmem:[#allocation12 + $0x78] sm:$0xff]
    %v1332 = vld [vmem:[%s7] sm:$0x1]
    %v1334 = vlaneseq
    %v1335 = vshrl.u32 %v1334, 7
    %v1336 = vsub.s32 0, %v1335
    %v1337 = vrot.slane %v1332, %v1336
    %1339 = vmatprep.subr.mxu0 0.0
    %1340 = vmatpush1.msra.mxu0 %v1316
    %1341 = vmatprep.subr.mxu0 0.0
    %1342 = vmatpush1.msra.mxu0 %v1317
    %1343 = vmatprep.subr.mxu0 0.0
    %1344 = vmatpush1.msra.mxu0 %v1318
    %1345 = vmatprep.subr.mxu0 0.0
    %1346 = vmatpush1.msra.mxu0 %v1319
    %1347 = vmatprep.subr.mxu0 0.0
    %1348 = vmatpush1.msra.mxu0 %v1320
    %1349 = vmatprep.subr.mxu0 0.0
    %1350 = vmatpush1.msra.mxu0 %v1321
    %1351 = vmatprep.subr.mxu0 0.0
    %1352 = vmatpush1.msra.mxu0 %v1322
    %1353 = vmatprep.subr.mxu0 0.0
    %1354 = vmatpush1.msra.mxu0 %v1323
    %1355 = vmatprep.subr.mxu0 0.0
    %1356 = vmatpush1.msra.mxu0 %v1324
    %1357 = vmatprep.subr.mxu0 0.0
    %1358 = vmatpush1.msra.mxu0 %v1325
    %1359 = vmatprep.subr.mxu0 0.0
    %1360 = vmatpush1.msra.mxu0 %v1326
    %1361 = vmatprep.subr.mxu0 0.0
    %1362 = vmatpush1.msra.mxu0 %v1327
    %1363 = vmatprep.subr.mxu0 0.0
    %1364 = vmatpush1.msra.mxu0 %v1328
    %1365 = vmatprep.subr.mxu0 0.0
    %1366 = vmatpush1.msra.mxu0 %v1329
    %1367 = vmatprep.subr.mxu0 0.0
    %1368 = vmatpush1.msra.mxu0 %v1330
    %1369 = vmatprep.subr.mxu0 0.0
    %1370 = vmatpush1.msra.mxu0 %v1331
    %1371 = vmatprep.subr.mxu0 0.0
    %1372 = vmatpush1.msra.mxu0 0.0
    %1373 = vmatprep.subr.mxu0 0.0
    %1374 = vmatpush1.msra.mxu0 0.0
    %1375 = vmatprep.subr.mxu0 0.0
    %1376 = vmatpush1.msra.mxu0 0.0
    %1377 = vmatprep.subr.mxu0 0.0
    %1378 = vmatpush1.msra.mxu0 0.0
    %1379 = vmatprep.subr.mxu0 0.0
    %1380 = vmatpush1.msra.mxu0 0.0
    %1381 = vmatprep.subr.mxu0 0.0
    %1382 = vmatpush1.msra.mxu0 0.0
    %1383 = vmatprep.subr.mxu0 0.0
    %1384 = vmatpush1.msra.mxu0 0.0
    %1385 = vmatprep.subr.mxu0 0.0
    %1386 = vmatpush1.msra.mxu0 0.0
    %1387 = vmatprep.subr.mxu0 0.0
    %1388 = vmatpush1.msra.mxu0 0.0
    %1389 = vmatprep.subr.mxu0 0.0
    %1390 = vmatpush1.msra.mxu0 0.0
    %1391 = vmatprep.subr.mxu0 0.0
    %1392 = vmatpush1.msra.mxu0 0.0
    %1393 = vmatprep.subr.mxu0 0.0
    %1394 = vmatpush1.msra.mxu0 0.0
    %1395 = vmatprep.subr.mxu0 0.0
    %1396 = vmatpush1.msra.mxu0 0.0
    %1397 = vmatprep.subr.mxu0 0.0
    %1398 = vmatpush1.msra.mxu0 0.0
    %1399 = vmatprep.subr.mxu0 0.0
    %1400 = vmatpush1.msra.mxu0 0.0
    %1401 = vmatprep.subr.mxu0 0.0
    %1402 = vmatpush1.msra.mxu0 0.0
    %1403 = vmatprep.mubr.f32.mxu0 0.0
    %1404 = vmatmul.mubr.f32.gmra.mrb[0].mxu0 %v879
    %v1405 = vpop.f32.mrb[0].mxu0
    %v1406 = vadd.f32 %v1337, %v1405
    %v1407 = vpop.f32.mrb[0].mxu0
    %1408 = vmatprep.mubr.f32.mxu0 0.0
    %1409 = vmatmul.mubr.f32.gmra.mrb[0].mxu0 %v952
    %v1410 = vpop.f32.mrb[0].mxu0
    %v1411 = vadd.f32 %v1337, %v1410
    %v1412 = vpop.f32.mrb[0].mxu0
    %1413 = vdwg.mxu0
    %1414 = vmatprep.subr.mxu0 0.0
    %1415 = vmatpush1.msra.mxu0 %v1316
    %1416 = vmatprep.subr.mxu0 0.0
    %1417 = vmatpush1.msra.mxu0 %v1317
    %1418 = vmatprep.subr.mxu0 0.0
    %1419 = vmatpush1.msra.mxu0 %v1318
    %1420 = vmatprep.subr.mxu0 0.0
    %1421 = vmatpush1.msra.mxu0 %v1319
    %1422 = vmatprep.subr.mxu0 0.0
    %1423 = vmatpush1.msra.mxu0 %v1320
    %1424 = vmatprep.subr.mxu0 0.0
    %1425 = vmatpush1.msra.mxu0 %v1321
    %1426 = vmatprep.subr.mxu0 0.0
    %1427 = vmatpush1.msra.mxu0 %v1322
    %1428 = vmatprep.subr.mxu0 0.0
    %1429 = vmatpush1.msra.mxu0 %v1323
    %1430 = vmatprep.subr.mxu0 0.0
    %1431 = vmatpush1.msra.mxu0 %v1324
    %1432 = vmatprep.subr.mxu0 0.0
    %1433 = vmatpush1.msra.mxu0 %v1325
    %1434 = vmatprep.subr.mxu0 0.0
    %1435 = vmatpush1.msra.mxu0 %v1326
    %1436 = vmatprep.subr.mxu0 0.0
    %1437 = vmatpush1.msra.mxu0 %v1327
    %1438 = vmatprep.subr.mxu0 0.0
    %1439 = vmatpush1.msra.mxu0 %v1328
    %1440 = vmatprep.subr.mxu0 0.0
    %1441 = vmatpush1.msra.mxu0 %v1329
    %1442 = vmatprep.subr.mxu0 0.0
    %1443 = vmatpush1.msra.mxu0 %v1330
    %1444 = vmatprep.subr.mxu0 0.0
    %1445 = vmatpush1.msra.mxu0 %v1331
    %1446 = vmatprep.subr.mxu0 0.0
    %1447 = vmatpush1.msra.mxu0 0.0
    %1448 = vmatprep.subr.mxu0 0.0
    %1449 = vmatpush1.msra.mxu0 0.0
    %1450 = vmatprep.subr.mxu0 0.0
    %1451 = vmatpush1.msra.mxu0 0.0
    %1452 = vmatprep.subr.mxu0 0.0
    %1453 = vmatpush1.msra.mxu0 0.0
    %1454 = vmatprep.subr.mxu0 0.0
    %1455 = vmatpush1.msra.mxu0 0.0
    %1456 = vmatprep.subr.mxu0 0.0
    %1457 = vmatpush1.msra.mxu0 0.0
    %1458 = vmatprep.subr.mxu0 0.0
    %1459 = vmatpush1.msra.mxu0 0.0
    %1460 = vmatprep.subr.mxu0 0.0
    %1461 = vmatpush1.msra.mxu0 0.0
    %1462 = vmatprep.subr.mxu0 0.0
    %1463 = vmatpush1.msra.mxu0 0.0
    %1464 = vmatprep.subr.mxu0 0.0
    %1465 = vmatpush1.msra.mxu0 0.0
    %1466 = vmatprep.subr.mxu0 0.0
    %1467 = vmatpush1.msra.mxu0 0.0
    %1468 = vmatprep.subr.mxu0 0.0
    %1469 = vmatpush1.msra.mxu0 0.0
    %1470 = vmatprep.subr.mxu0 0.0
    %1471 = vmatpush1.msra.mxu0 0.0
    %1472 = vmatprep.subr.mxu0 0.0
    %1473 = vmatpush1.msra.mxu0 0.0
    %1474 = vmatprep.subr.mxu0 0.0
    %1475 = vmatpush1.msra.mxu0 0.0
    %1476 = vmatprep.subr.mxu0 0.0
    %1477 = vmatpush1.msra.mxu0 0.0
    %1478 = vmatprep.mubr.f32.mxu0 0.0
    %1479 = vmatmul.mubr.f32.gmra.mrb[0].mxu0 %v1227
    %v1480 = vpop.f32.mrb[0].mxu0
    %v1481 = vadd.f32 %v1337, %v1480
    %v1482 = vpop.f32.mrb[0].mxu0
    %1483 = vmatprep.mubr.f32.mxu0 0.0
    %1484 = vmatmul.mubr.f32.gmra.mrb[0].mxu0 %v1232
    %v1485 = vpop.f32.mrb[0].mxu0
    %v1486 = vadd.f32 %v1337, %v1485
    %v1487 = vpop.f32.mrb[0].mxu0
    %1488 = vmatprep.mubr.f32.mxu0 0.0
    %1489 = vmatmul.mubr.f32.gmra.mrb[0].mxu0 %v1308
    %v1490 = vpop.f32.mrb[0].mxu0
    %v1491 = vadd.f32 %v1337, %v1490
    %v1492 = vpop.f32.mrb[0].mxu0
    %1493 = vmatprep.mubr.f32.mxu0 0.0
    %1494 = vmatmul.mubr.f32.gmra.mrb[0].mxu0 %v1313
    %v1495 = vpop.f32.mrb[0].mxu0
    %v1496 = vadd.f32 %v1337, %v1495
    %v1497 = vpop.f32.mrb[0].mxu0
    %1498 = vdwg.mxu0
    %v1499 = vld [vmem:[#allocation13] sm:$0xff]
    %v1500 = vld [vmem:[#allocation13 + $0x8] sm:$0xff]
    %v1501 = vld [vmem:[#allocation13 + $0x10] sm:$0xff]
    %v1502 = vld [vmem:[#allocation13 + $0x18] sm:$0xff]
    %v1503 = vld [vmem:[#allocation13 + $0x20] sm:$0xff]
    %v1504 = vld [vmem:[#allocation13 + $0x28] sm:$0xff]
    %v1505 = vld [vmem:[#allocation13 + $0x30] sm:$0xff]
    %v1506 = vld [vmem:[#allocation13 + $0x38] sm:$0xff]
    %v1507 = vld [vmem:[#allocation13 + $0x40] sm:$0xff]
    %v1508 = vld [vmem:[#allocation13 + $0x48] sm:$0xff]
    %v1509 = vld [vmem:[#allocation13 + $0x50] sm:$0xff]
    %v1510 = vld [vmem:[#allocation13 + $0x58] sm:$0xff]
    %v1511 = vld [vmem:[#allocation13 + $0x60] sm:$0xff]
    %v1512 = vld [vmem:[#allocation13 + $0x68] sm:$0xff]
    %v1513 = vld [vmem:[#allocation13 + $0x70] sm:$0xff]
    %v1514 = vld [vmem:[#allocation13 + $0x78] sm:$0xff]
    %v1515 = vld [vmem:[#allocation15] sm:$0x1]
    %v1517 = vlaneseq
    %v1518 = vshrl.u32 %v1517, 7
    %v1519 = vsub.s32 0, %v1518
    %v1520 = vrot.slane %v1515, %v1519
    %1522 = vmatprep.subr.mxu0 0.0
    %1523 = vmatpush1.msra.mxu0 %v1499
    %1524 = vmatprep.subr.mxu0 0.0
    %1525 = vmatpush1.msra.mxu0 %v1500
    %1526 = vmatprep.subr.mxu0 0.0
    %1527 = vmatpush1.msra.mxu0 %v1501
    %1528 = vmatprep.subr.mxu0 0.0
    %1529 = vmatpush1.msra.mxu0 %v1502
    %1530 = vmatprep.subr.mxu0 0.0
    %1531 = vmatpush1.msra.mxu0 %v1503
    %1532 = vmatprep.subr.mxu0 0.0
    %1533 = vmatpush1.msra.mxu0 %v1504
    %1534 = vmatprep.subr.mxu0 0.0
    %1535 = vmatpush1.msra.mxu0 %v1505
    %1536 = vmatprep.subr.mxu0 0.0
    %1537 = vmatpush1.msra.mxu0 %v1506
    %1538 = vmatprep.subr.mxu0 0.0
    %1539 = vmatpush1.msra.mxu0 %v1507
    %1540 = vmatprep.subr.mxu0 0.0
    %1541 = vmatpush1.msra.mxu0 %v1508
    %1542 = vmatprep.subr.mxu0 0.0
    %1543 = vmatpush1.msra.mxu0 %v1509
    %1544 = vmatprep.subr.mxu0 0.0
    %1545 = vmatpush1.msra.mxu0 %v1510
    %1546 = vmatprep.subr.mxu0 0.0
    %1547 = vmatpush1.msra.mxu0 %v1511
    %1548 = vmatprep.subr.mxu0 0.0
    %1549 = vmatpush1.msra.mxu0 %v1512
    %1550 = vmatprep.subr.mxu0 0.0
    %1551 = vmatpush1.msra.mxu0 %v1513
    %1552 = vmatprep.subr.mxu0 0.0
    %1553 = vmatpush1.msra.mxu0 %v1514
    %1554 = vmatprep.subr.mxu0 0.0
    %1555 = vmatpush1.msra.mxu0 0.0
    %1556 = vmatprep.subr.mxu0 0.0
    %1557 = vmatpush1.msra.mxu0 0.0
    %1558 = vmatprep.subr.mxu0 0.0
    %1559 = vmatpush1.msra.mxu0 0.0
    %1560 = vmatprep.subr.mxu0 0.0
    %1561 = vmatpush1.msra.mxu0 0.0
    %1562 = vmatprep.subr.mxu0 0.0
    %1563 = vmatpush1.msra.mxu0 0.0
    %1564 = vmatprep.subr.mxu0 0.0
    %1565 = vmatpush1.msra.mxu0 0.0
    %1566 = vmatprep.subr.mxu0 0.0
    %1567 = vmatpush1.msra.mxu0 0.0
    %1568 = vmatprep.subr.mxu0 0.0
    %1569 = vmatpush1.msra.mxu0 0.0
    %1570 = vmatprep.subr.mxu0 0.0
    %1571 = vmatpush1.msra.mxu0 0.0
    %1572 = vmatprep.subr.mxu0 0.0
    %1573 = vmatpush1.msra.mxu0 0.0
    %1574 = vmatprep.subr.mxu0 0.0
    %1575 = vmatpush1.msra.mxu0 0.0
    %1576 = vmatprep.subr.mxu0 0.0
    %1577 = vmatpush1.msra.mxu0 0.0
    %1578 = vmatprep.subr.mxu0 0.0
    %1579 = vmatpush1.msra.mxu0 0.0
    %1580 = vmatprep.subr.mxu0 0.0
    %1581 = vmatpush1.msra.mxu0 0.0
    %1582 = vmatprep.subr.mxu0 0.0
    %1583 = vmatpush1.msra.mxu0 0.0
    %1584 = vmatprep.subr.mxu0 0.0
    %1585 = vmatpush1.msra.mxu0 0.0
    %1586 = vmatprep.mubr.f32.mxu0 0.0
    %1587 = vmatmul.mubr.f32.gmra.mrb[0].mxu0 %v1406
    %v1588 = vpop.f32.mrb[0].mxu0
    %v1589 = vadd.f32 %v1520, %v1588
    %v1590 = vpop.f32.mrb[0].mxu0
    %1591 = vmatprep.mubr.f32.mxu0 0.0
    %1592 = vmatmul.mubr.f32.gmra.mrb[0].mxu0 %v1411
    %v1593 = vpop.f32.mrb[0].mxu0
    %v1594 = vadd.f32 %v1520, %v1593
    %v1595 = vpop.f32.mrb[0].mxu0
    %1596 = vdwg.mxu0
    %v1597 = vld [vmem:[#allocation16] sm:$0xff]
    %v1598 = vld [vmem:[#allocation16 + $0x8] sm:$0xff]
    %v1599 = vld [vmem:[#allocation16 + $0x10] sm:$0xff]
    %v1600 = vld [vmem:[#allocation16 + $0x18] sm:$0xff]
    %v1601 = vld [vmem:[#allocation16 + $0x20] sm:$0xff]
    %v1602 = vld [vmem:[#allocation16 + $0x28] sm:$0xff]
    %v1603 = vld [vmem:[#allocation16 + $0x30] sm:$0xff]
    %v1604 = vld [vmem:[#allocation16 + $0x38] sm:$0xff]
    %v1605 = vld [vmem:[#allocation16 + $0x40] sm:$0xff]
    %v1606 = vld [vmem:[#allocation16 + $0x48] sm:$0xff]
    %v1607 = vld [vmem:[#allocation16 + $0x50] sm:$0xff]
    %v1608 = vld [vmem:[#allocation16 + $0x58] sm:$0xff]
    %v1609 = vld [vmem:[#allocation16 + $0x60] sm:$0xff]
    %v1610 = vld [vmem:[#allocation16 + $0x68] sm:$0xff]
    %v1611 = vld [vmem:[#allocation16 + $0x70] sm:$0xff]
    %v1612 = vld [vmem:[#allocation16 + $0x78] sm:$0xff]
    %v1615 = vrot.slane %v1594, 7
    %vm1616 = vcmask 1041409
    %v1617 = vsel %vm1616, %v1615, %v1589
    %v1619 = vrot.slane %v1589, 7
    %v1620 = vrot.slane %v1594, 6
    %v1621 = vsel %vm1616, %v1620, %v1619
    %vm1623 = vcmask 523264
    %v1624 = vsel %vm1623, %v1617, %v1621
    %1625 = vmatprep.subr.mxu0 0.0
    %1626 = vmatpush1.msra.mxu0 %v1597
    %1627 = vmatprep.subr.mxu0 0.0
    %1628 = vmatpush1.msra.mxu0 %v1598
    %1629 = vmatprep.subr.mxu0 0.0
    %1630 = vmatpush1.msra.mxu0 %v1599
    %1631 = vmatprep.subr.mxu0 0.0
    %1632 = vmatpush1.msra.mxu0 %v1600
    %1633 = vmatprep.subr.mxu0 0.0
    %1634 = vmatpush1.msra.mxu0 %v1601
    %1635 = vmatprep.subr.mxu0 0.0
    %1636 = vmatpush1.msra.mxu0 %v1602
    %1637 = vmatprep.subr.mxu0 0.0
    %1638 = vmatpush1.msra.mxu0 %v1603
    %1639 = vmatprep.subr.mxu0 0.0
    %1640 = vmatpush1.msra.mxu0 %v1604
    %1641 = vmatprep.subr.mxu0 0.0
    %1642 = vmatpush1.msra.mxu0 %v1605
    %1643 = vmatprep.subr.mxu0 0.0
    %1644 = vmatpush1.msra.mxu0 %v1606
    %1645 = vmatprep.subr.mxu0 0.0
    %1646 = vmatpush1.msra.mxu0 %v1607
    %1647 = vmatprep.subr.mxu0 0.0
    %1648 = vmatpush1.msra.mxu0 %v1608
    %1649 = vmatprep.subr.mxu0 0.0
    %1650 = vmatpush1.msra.mxu0 %v1609
    %1651 = vmatprep.subr.mxu0 0.0
    %1652 = vmatpush1.msra.mxu0 %v1610
    %1653 = vmatprep.subr.mxu0 0.0
    %1654 = vmatpush1.msra.mxu0 %v1611
    %1655 = vmatprep.subr.mxu0 0.0
    %1656 = vmatpush1.msra.mxu0 %v1612
    %1657 = vmatprep.subr.mxu0 0.0
    %1658 = vmatpush1.msra.mxu0 0.0
    %1659 = vmatprep.subr.mxu0 0.0
    %1660 = vmatpush1.msra.mxu0 0.0
    %1661 = vmatprep.subr.mxu0 0.0
    %1662 = vmatpush1.msra.mxu0 0.0
    %1663 = vmatprep.subr.mxu0 0.0
    %1664 = vmatpush1.msra.mxu0 0.0
    %1665 = vmatprep.subr.mxu0 0.0
    %1666 = vmatpush1.msra.mxu0 0.0
    %1667 = vmatprep.subr.mxu0 0.0
    %1668 = vmatpush1.msra.mxu0 0.0
    %1669 = vmatprep.subr.mxu0 0.0
    %1670 = vmatpush1.msra.mxu0 0.0
    %1671 = vmatprep.subr.mxu0 0.0
    %1672 = vmatpush1.msra.mxu0 0.0
    %1673 = vmatprep.subr.mxu0 0.0
    %1674 = vmatpush1.msra.mxu0 0.0
    %1675 = vmatprep.subr.mxu0 0.0
    %1676 = vmatpush1.msra.mxu0 0.0
    %1677 = vmatprep.subr.mxu0 0.0
    %1678 = vmatpush1.msra.mxu0 0.0
    %1679 = vmatprep.subr.mxu0 0.0
    %1680 = vmatpush1.msra.mxu0 0.0
    %1681 = vmatprep.subr.mxu0 0.0
    %1682 = vmatpush1.msra.mxu0 0.0
    %1683 = vmatprep.subr.mxu0 0.0
    %1684 = vmatpush1.msra.mxu0 0.0
    %1685 = vmatprep.subr.mxu0 0.0
    %1686 = vmatpush1.msra.mxu0 0.0
    %1687 = vmatprep.subr.mxu0 0.0
    %1688 = vmatpush1.msra.mxu0 0.0
    %1689 = vmatprep.mubr.f32.mxu0 0.0
    %1690 = vmatmul.mubr.f32.gmra.mrb[0].mxu0 0.0
    %v1691 = vpop.f32.mrb[0].mxu0
    %v1692 = vadd.f32 0.0, %v1691
    %v1693 = vpop.f32.mrb[0].mxu0
    %1694 = vdwg.mxu0
    %v1695 = vadd.f32 %v1624, %v1692
    %v1696 = vtanh.pop %v1695
    %v1699 = vunpack.c.l.s4 1966171168
    %v1700 = vunpack.c.0.s8 %v1699
    %v1701 = vlaneseq
    %v1702 = vshrl.u32 %v1701, 7
    %v1703 = vsub.s32 %v1700, %v1702
    %v1704 = vrot.slane %v1696, %v1703
    %v1705 = vcombine.high %v1704, %v1704
    %v1707 = vunpack.c.l.s4 1966171168
    %v1708 = vunpack.c.0.s8 %v1707
    %v1709 = vlaneseq
    %v1710 = vshrl.u32 %v1709, 7
    %v1711 = vsub.s32 %v1708, %v1710
    %v1712 = vrot.slane %v1704, %v1711
    %v1714 = vunpack.c.l.s4 1966171168
    %v1715 = vunpack.c.0.s8 %v1714
    %v1716 = vlaneseq
    %v1717 = vshrl.u32 %v1716, 7
    %v1718 = vsub.s32 %v1715, %v1717
    %v1719 = vrot.slane %v1705, %v1718
    %vm1722 = vcmask 516096
    %1723 = vst.msk [vmem:[#allocation2] sm:$0x1] %vm1722, %v1712
    %1724 = vst.msk [vmem:[#allocation2 + $0x8] sm:$0x1] %vm1722, %v1719
    %vm1725 = vcmask 1040896
    %1726 = vst.msk [vmem:[#allocation2 + $0x7] sm:$0x1] %vm1725, %v1712
    %1727 = vst.msk [vmem:[#allocation2 + $0xf] sm:$0x1] %vm1725, %v1719
    %vm1728 = vcmask 1042434
    %v1729 = vsel %vm1728, %v1615, %v1589
    %v1731 = vrot.slane %v1589, 5
    %v1732 = vrot.slane %v1594, 4
    %v1733 = vsel %vm1728, %v1732, %v1731
    %v1735 = vsel %vm1623, %v1729, %v1733
    %1736 = vmatprep.subr.mxu0 0.0
    %1737 = vmatpush1.msra.mxu0 %v1597
    %1738 = vmatprep.subr.mxu0 0.0
    %1739 = vmatpush1.msra.mxu0 %v1598
    %1740 = vmatprep.subr.mxu0 0.0
    %1741 = vmatpush1.msra.mxu0 %v1599
    %1742 = vmatprep.subr.mxu0 0.0
    %1743 = vmatpush1.msra.mxu0 %v1600
    %1744 = vmatprep.subr.mxu0 0.0
    %1745 = vmatpush1.msra.mxu0 %v1601
    %1746 = vmatprep.subr.mxu0 0.0
    %1747 = vmatpush1.msra.mxu0 %v1602
    %1748 = vmatprep.subr.mxu0 0.0
    %1749 = vmatpush1.msra.mxu0 %v1603
    %1750 = vmatprep.subr.mxu0 0.0
    %1751 = vmatpush1.msra.mxu0 %v1604
    %1752 = vmatprep.subr.mxu0 0.0
    %1753 = vmatpush1.msra.mxu0 %v1605
    %1754 = vmatprep.subr.mxu0 0.0
    %1755 = vmatpush1.msra.mxu0 %v1606
    %1756 = vmatprep.subr.mxu0 0.0
    %1757 = vmatpush1.msra.mxu0 %v1607
    %1758 = vmatprep.subr.mxu0 0.0
    %1759 = vmatpush1.msra.mxu0 %v1608
    %1760 = vmatprep.subr.mxu0 0.0
    %1761 = vmatpush1.msra.mxu0 %v1609
    %1762 = vmatprep.subr.mxu0 0.0
    %1763 = vmatpush1.msra.mxu0 %v1610
    %1764 = vmatprep.subr.mxu0 0.0
    %1765 = vmatpush1.msra.mxu0 %v1611
    %1766 = vmatprep.subr.mxu0 0.0
    %1767 = vmatpush1.msra.mxu0 %v1612
    %1768 = vmatprep.subr.mxu0 0.0
    %1769 = vmatpush1.msra.mxu0 0.0
    %1770 = vmatprep.subr.mxu0 0.0
    %1771 = vmatpush1.msra.mxu0 0.0
    %1772 = vmatprep.subr.mxu0 0.0
    %1773 = vmatpush1.msra.mxu0 0.0
    %1774 = vmatprep.subr.mxu0 0.0
    %1775 = vmatpush1.msra.mxu0 0.0
    %1776 = vmatprep.subr.mxu0 0.0
    %1777 = vmatpush1.msra.mxu0 0.0
    %1778 = vmatprep.subr.mxu0 0.0
    %1779 = vmatpush1.msra.mxu0 0.0
    %1780 = vmatprep.subr.mxu0 0.0
    %1781 = vmatpush1.msra.mxu0 0.0
    %1782 = vmatprep.subr.mxu0 0.0
    %1783 = vmatpush1.msra.mxu0 0.0
    %1784 = vmatprep.subr.mxu0 0.0
    %1785 = vmatpush1.msra.mxu0 0.0
    %1786 = vmatprep.subr.mxu0 0.0
    %1787 = vmatpush1.msra.mxu0 0.0
    %1788 = vmatprep.subr.mxu0 0.0
    %1789 = vmatpush1.msra.mxu0 0.0
    %1790 = vmatprep.subr.mxu0 0.0
    %1791 = vmatpush1.msra.mxu0 0.0
    %1792 = vmatprep.subr.mxu0 0.0
    %1793 = vmatpush1.msra.mxu0 0.0
    %1794 = vmatprep.subr.mxu0 0.0
    %1795 = vmatpush1.msra.mxu0 0.0
    %1796 = vmatprep.subr.mxu0 0.0
    %1797 = vmatpush1.msra.mxu0 0.0
    %1798 = vmatprep.subr.mxu0 0.0
    %1799 = vmatpush1.msra.mxu0 0.0
    %1800 = vmatprep.mubr.f32.mxu0 0.0
    %1801 = vmatmul.mubr.f32.gmra.mrb[0].mxu0 %v1696
    %v1802 = vpop.f32.mrb[0].mxu0
    %v1803 = vadd.f32 0.0, %v1802
    %v1804 = vpop.f32.mrb[0].mxu0
    %1805 = vdwg.mxu0
    %v1807 = vrot.slane %v1803, 7
    %v1809 = vadd.f32 %v1735, %v1807
    %v1810 = vtanh.pop %v1809
    %v1813 = vunpack.c.l.s4 1966171168
    %v1814 = vunpack.c.0.s8 %v1813
    %v1815 = vlaneseq
    %v1816 = vshrl.u32 %v1815, 7
    %v1817 = vsub.s32 %v1814, %v1816
    %v1818 = vrot.slane %v1810, %v1817
    %v1819 = vcombine.high %v1818, %v1818
    %v1821 = vunpack.c.l.s4 1966171168
    %v1822 = vunpack.c.0.s8 %v1821
    %v1823 = vlaneseq
    %v1824 = vshrl.u32 %v1823, 7
    %v1825 = vsub.s32 %v1822, %v1824
    %v1826 = vrot.slane %v1818, %v1825
    %v1828 = vunpack.c.l.s4 1966171168
    %v1829 = vunpack.c.0.s8 %v1828
    %v1830 = vlaneseq
    %v1831 = vshrl.u32 %v1830, 7
    %v1832 = vsub.s32 %v1829, %v1831
    %v1833 = vrot.slane %v1819, %v1832
    %v1834 = vcombine.high %v1826, %v1826
    %1837 = vst.msk [vmem:[#allocation2 + $0x1] sm:$0x1] %vm1722, %v1833
    %1838 = vst.msk [vmem:[#allocation2 + $0x9] sm:$0x1] %vm1722, %v1834
    %1839 = vst.msk [vmem:[#allocation2 + $0x6] sm:$0x1] %vm1725, %v1833
    %1840 = vst.msk [vmem:[#allocation2 + $0xe] sm:$0x1] %vm1725, %v1834
    %vm1841 = vcmask 1043459
    %v1842 = vsel %vm1841, %v1615, %v1589
    %v1844 = vrot.slane %v1589, 3
    %v1845 = vrot.slane %v1594, 2
    %v1846 = vsel %vm1841, %v1845, %v1844
    %v1848 = vsel %vm1623, %v1842, %v1846
    %v1849 = vrot.slane %v1810, 1
    %1851 = vmatprep.subr.mxu0 0.0
    %1852 = vmatpush1.msra.mxu0 %v1597
    %1853 = vmatprep.subr.mxu0 0.0
    %1854 = vmatpush1.msra.mxu0 %v1598
    %1855 = vmatprep.subr.mxu0 0.0
    %1856 = vmatpush1.msra.mxu0 %v1599
    %1857 = vmatprep.subr.mxu0 0.0
    %1858 = vmatpush1.msra.mxu0 %v1600
    %1859 = vmatprep.subr.mxu0 0.0
    %1860 = vmatpush1.msra.mxu0 %v1601
    %1861 = vmatprep.subr.mxu0 0.0
    %1862 = vmatpush1.msra.mxu0 %v1602
    %1863 = vmatprep.subr.mxu0 0.0
    %1864 = vmatpush1.msra.mxu0 %v1603
    %1865 = vmatprep.subr.mxu0 0.0
    %1866 = vmatpush1.msra.mxu0 %v1604
    %1867 = vmatprep.subr.mxu0 0.0
    %1868 = vmatpush1.msra.mxu0 %v1605
    %1869 = vmatprep.subr.mxu0 0.0
    %1870 = vmatpush1.msra.mxu0 %v1606
    %1871 = vmatprep.subr.mxu0 0.0
    %1872 = vmatpush1.msra.mxu0 %v1607
    %1873 = vmatprep.subr.mxu0 0.0
    %1874 = vmatpush1.msra.mxu0 %v1608
    %1875 = vmatprep.subr.mxu0 0.0
    %1876 = vmatpush1.msra.mxu0 %v1609
    %1877 = vmatprep.subr.mxu0 0.0
    %1878 = vmatpush1.msra.mxu0 %v1610
    %1879 = vmatprep.subr.mxu0 0.0
    %1880 = vmatpush1.msra.mxu0 %v1611
    %1881 = vmatprep.subr.mxu0 0.0
    %1882 = vmatpush1.msra.mxu0 %v1612
    %1883 = vmatprep.subr.mxu0 0.0
    %1884 = vmatpush1.msra.mxu0 0.0
    %1885 = vmatprep.subr.mxu0 0.0
    %1886 = vmatpush1.msra.mxu0 0.0
    %1887 = vmatprep.subr.mxu0 0.0
    %1888 = vmatpush1.msra.mxu0 0.0
    %1889 = vmatprep.subr.mxu0 0.0
    %1890 = vmatpush1.msra.mxu0 0.0
    %1891 = vmatprep.subr.mxu0 0.0
    %1892 = vmatpush1.msra.mxu0 0.0
    %1893 = vmatprep.subr.mxu0 0.0
    %1894 = vmatpush1.msra.mxu0 0.0
    %1895 = vmatprep.subr.mxu0 0.0
    %1896 = vmatpush1.msra.mxu0 0.0
    %1897 = vmatprep.subr.mxu0 0.0
    %1898 = vmatpush1.msra.mxu0 0.0
    %1899 = vmatprep.subr.mxu0 0.0
    %1900 = vmatpush1.msra.mxu0 0.0
    %1901 = vmatprep.subr.mxu0 0.0
    %1902 = vmatpush1.msra.mxu0 0.0
    %1903 = vmatprep.subr.mxu0 0.0
    %1904 = vmatpush1.msra.mxu0 0.0
    %1905 = vmatprep.subr.mxu0 0.0
    %1906 = vmatpush1.msra.mxu0 0.0
    %1907 = vmatprep.subr.mxu0 0.0
    %1908 = vmatpush1.msra.mxu0 0.0
    %1909 = vmatprep.subr.mxu0 0.0
    %1910 = vmatpush1.msra.mxu0 0.0
    %1911 = vmatprep.subr.mxu0 0.0
    %1912 = vmatpush1.msra.mxu0 0.0
    %1913 = vmatprep.subr.mxu0 0.0
    %1914 = vmatpush1.msra.mxu0 0.0
    %1915 = vmatprep.mubr.f32.mxu0 0.0
    %1916 = vmatmul.mubr.f32.gmra.mrb[0].mxu0 %v1849
    %v1917 = vpop.f32.mrb[0].mxu0
    %v1918 = vadd.f32 0.0, %v1917
    %v1919 = vpop.f32.mrb[0].mxu0
    %1920 = vdwg.mxu0
    %v1922 = vrot.slane %v1918, 6
    %v1924 = vadd.f32 %v1848, %v1922
    %v1925 = vtanh.pop %v1924
    %v1928 = vunpack.c.l.s4 1966171168
    %v1929 = vunpack.c.0.s8 %v1928
    %v1930 = vlaneseq
    %v1931 = vshrl.u32 %v1930, 7
    %v1932 = vsub.s32 %v1929, %v1931
    %v1933 = vrot.slane %v1925, %v1932
    %v1934 = vcombine.high %v1933, %v1933
    %v1936 = vunpack.c.l.s4 1966171168
    %v1937 = vunpack.c.0.s8 %v1936
    %v1938 = vlaneseq
    %v1939 = vshrl.u32 %v1938, 7
    %v1940 = vsub.s32 %v1937, %v1939
    %v1941 = vrot.slane %v1933, %v1940
    %v1943 = vunpack.c.l.s4 1966171168
    %v1944 = vunpack.c.0.s8 %v1943
    %v1945 = vlaneseq
    %v1946 = vshrl.u32 %v1945, 7
    %v1947 = vsub.s32 %v1944, %v1946
    %v1948 = vrot.slane %v1934, %v1947
    %v1949 = vcombine.high %v1941, %v1941
    %v1950 = vcombine.high %v1948, %v1948
    %1953 = vst.msk [vmem:[#allocation2 + $0x2] sm:$0x1] %vm1722, %v1949
    %1954 = vst.msk [vmem:[#allocation2 + $0xa] sm:$0x1] %vm1722, %v1950
    %1955 = vst.msk [vmem:[#allocation2 + $0x5] sm:$0x1] %vm1725, %v1949
    %1956 = vst.msk [vmem:[#allocation2 + $0xd] sm:$0x1] %vm1725, %v1950
    %vm1957 = vcmask 1044484
    %v1958 = vsel %vm1957, %v1615, %v1589
    %v1960 = vrot.slane %v1589, 1
    %v1961 = vsel %vm1957, %v1594, %v1960
    %v1963 = vsel %vm1623, %v1958, %v1961
    %v1964 = vrot.slane %v1925, 2
    %1966 = vmatprep.subr.mxu0 0.0
    %1967 = vmatpush1.msra.mxu0 %v1597
    %1968 = vmatprep.subr.mxu0 0.0
    %1969 = vmatpush1.msra.mxu0 %v1598
    %1970 = vmatprep.subr.mxu0 0.0
    %1971 = vmatpush1.msra.mxu0 %v1599
    %1972 = vmatprep.subr.mxu0 0.0
    %1973 = vmatpush1.msra.mxu0 %v1600
    %1974 = vmatprep.subr.mxu0 0.0
    %1975 = vmatpush1.msra.mxu0 %v1601
    %1976 = vmatprep.subr.mxu0 0.0
    %1977 = vmatpush1.msra.mxu0 %v1602
    %1978 = vmatprep.subr.mxu0 0.0
    %1979 = vmatpush1.msra.mxu0 %v1603
    %1980 = vmatprep.subr.mxu0 0.0
    %1981 = vmatpush1.msra.mxu0 %v1604
    %1982 = vmatprep.subr.mxu0 0.0
    %1983 = vmatpush1.msra.mxu0 %v1605
    %1984 = vmatprep.subr.mxu0 0.0
    %1985 = vmatpush1.msra.mxu0 %v1606
    %1986 = vmatprep.subr.mxu0 0.0
    %1987 = vmatpush1.msra.mxu0 %v1607
    %1988 = vmatprep.subr.mxu0 0.0
    %1989 = vmatpush1.msra.mxu0 %v1608
    %1990 = vmatprep.subr.mxu0 0.0
    %1991 = vmatpush1.msra.mxu0 %v1609
    %1992 = vmatprep.subr.mxu0 0.0
    %1993 = vmatpush1.msra.mxu0 %v1610
    %1994 = vmatprep.subr.mxu0 0.0
    %1995 = vmatpush1.msra.mxu0 %v1611
    %1996 = vmatprep.subr.mxu0 0.0
    %1997 = vmatpush1.msra.mxu0 %v1612
    %1998 = vmatprep.subr.mxu0 0.0
    %1999 = vmatpush1.msra.mxu0 0.0
    %2000 = vmatprep.subr.mxu0 0.0
    %2001 = vmatpush1.msra.mxu0 0.0
    %2002 = vmatprep.subr.mxu0 0.0
    %2003 = vmatpush1.msra.mxu0 0.0
    %2004 = vmatprep.subr.mxu0 0.0
    %2005 = vmatpush1.msra.mxu0 0.0
    %2006 = vmatprep.subr.mxu0 0.0
    %2007 = vmatpush1.msra.mxu0 0.0
    %2008 = vmatprep.subr.mxu0 0.0
    %2009 = vmatpush1.msra.mxu0 0.0
    %2010 = vmatprep.subr.mxu0 0.0
    %2011 = vmatpush1.msra.mxu0 0.0
    %2012 = vmatprep.subr.mxu0 0.0
    %2013 = vmatpush1.msra.mxu0 0.0
    %2014 = vmatprep.subr.mxu0 0.0
    %2015 = vmatpush1.msra.mxu0 0.0
    %2016 = vmatprep.subr.mxu0 0.0
    %2017 = vmatpush1.msra.mxu0 0.0
    %2018 = vmatprep.subr.mxu0 0.0
    %2019 = vmatpush1.msra.mxu0 0.0
    %2020 = vmatprep.subr.mxu0 0.0
    %2021 = vmatpush1.msra.mxu0 0.0
    %2022 = vmatprep.subr.mxu0 0.0
    %2023 = vmatpush1.msra.mxu0 0.0
    %2024 = vmatprep.subr.mxu0 0.0
    %2025 = vmatpush1.msra.mxu0 0.0
    %2026 = vmatprep.subr.mxu0 0.0
    %2027 = vmatpush1.msra.mxu0 0.0
    %2028 = vmatprep.subr.mxu0 0.0
    %2029 = vmatpush1.msra.mxu0 0.0
    %2030 = vmatprep.mubr.f32.mxu0 0.0
    %2031 = vmatmul.mubr.f32.gmra.mrb[0].mxu0 %v1964
    %v2032 = vpop.f32.mrb[0].mxu0
    %v2033 = vadd.f32 0.0, %v2032
    %v2034 = vpop.f32.mrb[0].mxu0
    %2035 = vdwg.mxu0
    %v2037 = vrot.slane %v2033, 5
    %v2039 = vadd.f32 %v1963, %v2037
    %v2040 = vtanh.pop %v2039
    %v2042 = vcombine.high %v2040, %v2040
    %v2044 = vunpack.c.l.s4 1966171168
    %v2045 = vunpack.c.0.s8 %v2044
    %v2046 = vlaneseq
    %v2047 = vshrl.u32 %v2046, 7
    %v2048 = vsub.s32 %v2045, %v2047
    %v2049 = vrot.slane %v2040, %v2048
    %v2051 = vunpack.c.l.s4 1966171168
    %v2052 = vunpack.c.0.s8 %v2051
    %v2053 = vlaneseq
    %v2054 = vshrl.u32 %v2053, 7
    %v2055 = vsub.s32 %v2052, %v2054
    %v2056 = vrot.slane %v2042, %v2055
    %v2057 = vcombine.high %v2049, %v2049
    %v2059 = vunpack.c.l.s4 1966171168
    %v2060 = vunpack.c.0.s8 %v2059
    %v2061 = vlaneseq
    %v2062 = vshrl.u32 %v2061, 7
    %v2063 = vsub.s32 %v2060, %v2062
    %v2064 = vrot.slane %v2056, %v2063
    %v2066 = vunpack.c.l.s4 1966171168
    %v2067 = vunpack.c.0.s8 %v2066
    %v2068 = vlaneseq
    %v2069 = vshrl.u32 %v2068, 7
    %v2070 = vsub.s32 %v2067, %v2069
    %v2071 = vrot.slane %v2057, %v2070
    %v2072 = vcombine.high %v2071, %v2071
    %2075 = vst.msk [vmem:[#allocation2 + $0x3] sm:$0x1] %vm1722, %v2072
    %2076 = vst.msk [vmem:[#allocation2 + $0xb] sm:$0x1] %vm1722, %v2064
    %2077 = vst.msk [vmem:[#allocation2 + $0x4] sm:$0x1] %vm1725, %v2072
    %2078 = vst.msk [vmem:[#allocation2 + $0xc] sm:$0x1] %vm1725, %v2064
    %vm2079 = vcmask 1045509
    %v2080 = vsel %vm2079, %v1615, %v1589
    %v2082 = vsel %vm2079, %v1620, %v1619
    %v2084 = vsel %vm1623, %v2080, %v2082
    %v2085 = vrot.slane %v2040, 3
    %2087 = vmatprep.subr.mxu0 0.0
    %2088 = vmatpush1.msra.mxu0 %v1597
    %2089 = vmatprep.subr.mxu0 0.0
    %2090 = vmatpush1.msra.mxu0 %v1598
    %2091 = vmatprep.subr.mxu0 0.0
    %2092 = vmatpush1.msra.mxu0 %v1599
    %2093 = vmatprep.subr.mxu0 0.0
    %2094 = vmatpush1.msra.mxu0 %v1600
    %2095 = vmatprep.subr.mxu0 0.0
    %2096 = vmatpush1.msra.mxu0 %v1601
    %2097 = vmatprep.subr.mxu0 0.0
    %2098 = vmatpush1.msra.mxu0 %v1602
    %2099 = vmatprep.subr.mxu0 0.0
    %2100 = vmatpush1.msra.mxu0 %v1603
    %2101 = vmatprep.subr.mxu0 0.0
    %2102 = vmatpush1.msra.mxu0 %v1604
    %2103 = vmatprep.subr.mxu0 0.0
    %2104 = vmatpush1.msra.mxu0 %v1605
    %2105 = vmatprep.subr.mxu0 0.0
    %2106 = vmatpush1.msra.mxu0 %v1606
    %2107 = vmatprep.subr.mxu0 0.0
    %2108 = vmatpush1.msra.mxu0 %v1607
    %2109 = vmatprep.subr.mxu0 0.0
    %2110 = vmatpush1.msra.mxu0 %v1608
    %2111 = vmatprep.subr.mxu0 0.0
    %2112 = vmatpush1.msra.mxu0 %v1609
    %2113 = vmatprep.subr.mxu0 0.0
    %2114 = vmatpush1.msra.mxu0 %v1610
    %2115 = vmatprep.subr.mxu0 0.0
    %2116 = vmatpush1.msra.mxu0 %v1611
    %2117 = vmatprep.subr.mxu0 0.0
    %2118 = vmatpush1.msra.mxu0 %v1612
    %2119 = vmatprep.subr.mxu0 0.0
    %2120 = vmatpush1.msra.mxu0 0.0
    %2121 = vmatprep.subr.mxu0 0.0
    %2122 = vmatpush1.msra.mxu0 0.0
    %2123 = vmatprep.subr.mxu0 0.0
    %2124 = vmatpush1.msra.mxu0 0.0
    %2125 = vmatprep.subr.mxu0 0.0
    %2126 = vmatpush1.msra.mxu0 0.0
    %2127 = vmatprep.subr.mxu0 0.0
    %2128 = vmatpush1.msra.mxu0 0.0
    %2129 = vmatprep.subr.mxu0 0.0
    %2130 = vmatpush1.msra.mxu0 0.0
    %2131 = vmatprep.subr.mxu0 0.0
    %2132 = vmatpush1.msra.mxu0 0.0
    %2133 = vmatprep.subr.mxu0 0.0
    %2134 = vmatpush1.msra.mxu0 0.0
    %2135 = vmatprep.subr.mxu0 0.0
    %2136 = vmatpush1.msra.mxu0 0.0
    %2137 = vmatprep.subr.mxu0 0.0
    %2138 = vmatpush1.msra.mxu0 0.0
    %2139 = vmatprep.subr.mxu0 0.0
    %2140 = vmatpush1.msra.mxu0 0.0
    %2141 = vmatprep.subr.mxu0 0.0
    %2142 = vmatpush1.msra.mxu0 0.0
    %2143 = vmatprep.subr.mxu0 0.0
    %2144 = vmatpush1.msra.mxu0 0.0
    %2145 = vmatprep.subr.mxu0 0.0
    %2146 = vmatpush1.msra.mxu0 0.0
    %2147 = vmatprep.subr.mxu0 0.0
    %2148 = vmatpush1.msra.mxu0 0.0
    %2149 = vmatprep.subr.mxu0 0.0
    %2150 = vmatpush1.msra.mxu0 0.0
    %2151 = vmatprep.mubr.f32.mxu0 0.0
    %2152 = vmatmul.mubr.f32.gmra.mrb[0].mxu0 %v2085
    %v2153 = vpop.f32.mrb[0].mxu0
    %v2154 = vadd.f32 0.0, %v2153
    %v2155 = vpop.f32.mrb[0].mxu0
    %2156 = vdwg.mxu0
    %v2158 = vrot.slane %v2154, 4
    %v2160 = vadd.f32 %v2084, %v2158
    %v2161 = vtanh.pop %v2160
    %v2163 = vcombine.high %v2161, %v2161
    %v2165 = vunpack.c.l.s4 1966171168
    %v2166 = vunpack.c.0.s8 %v2165
    %v2167 = vlaneseq
    %v2168 = vshrl.u32 %v2167, 7
    %v2169 = vsub.s32 %v2166, %v2168
    %v2170 = vrot.slane %v2163, %v2169
    %v2171 = vcombine.high %v2170, %v2170
    %v2173 = vunpack.c.l.s4 1966171168
    %v2174 = vunpack.c.0.s8 %v2173
    %v2175 = vlaneseq
    %v2176 = vshrl.u32 %v2175, 7
    %v2177 = vsub.s32 %v2174, %v2176
    %v2178 = vrot.slane %v2170, %v2177
    %v2180 = vunpack.c.l.s4 1966171168
    %v2181 = vunpack.c.0.s8 %v2180
    %v2182 = vlaneseq
    %v2183 = vshrl.u32 %v2182, 7
    %v2184 = vsub.s32 %v2181, %v2183
    %v2185 = vrot.slane %v2171, %v2184
    %2188 = vst.msk [vmem:[#allocation2 + $0x4] sm:$0x1] %vm1722, %v2178
    %2189 = vst.msk [vmem:[#allocation2 + $0xc] sm:$0x1] %vm1722, %v2185
    %2190 = vst.msk [vmem:[#allocation2 + $0x3] sm:$0x1] %vm1725, %v2178
    %2191 = vst.msk [vmem:[#allocation2 + $0xb] sm:$0x1] %vm1725, %v2185
    %vm2192 = vcmask 1046534
    %v2193 = vsel %vm2192, %v1615, %v1589
    %v2195 = vsel %vm2192, %v1732, %v1731
    %v2197 = vsel %vm1623, %v2193, %v2195
    %v2198 = vrot.slane %v2161, 4
    %2200 = vmatprep.subr.mxu0 0.0
    %2201 = vmatpush1.msra.mxu0 %v1597
    %2202 = vmatprep.subr.mxu0 0.0
    %2203 = vmatpush1.msra.mxu0 %v1598
    %2204 = vmatprep.subr.mxu0 0.0
    %2205 = vmatpush1.msra.mxu0 %v1599
    %2206 = vmatprep.subr.mxu0 0.0
    %2207 = vmatpush1.msra.mxu0 %v1600
    %2208 = vmatprep.subr.mxu0 0.0
    %2209 = vmatpush1.msra.mxu0 %v1601
    %2210 = vmatprep.subr.mxu0 0.0
    %2211 = vmatpush1.msra.mxu0 %v1602
    %2212 = vmatprep.subr.mxu0 0.0
    %2213 = vmatpush1.msra.mxu0 %v1603
    %2214 = vmatprep.subr.mxu0 0.0
    %2215 = vmatpush1.msra.mxu0 %v1604
    %2216 = vmatprep.subr.mxu0 0.0
    %2217 = vmatpush1.msra.mxu0 %v1605
    %2218 = vmatprep.subr.mxu0 0.0
    %2219 = vmatpush1.msra.mxu0 %v1606
    %2220 = vmatprep.subr.mxu0 0.0
    %2221 = vmatpush1.msra.mxu0 %v1607
    %2222 = vmatprep.subr.mxu0 0.0
    %2223 = vmatpush1.msra.mxu0 %v1608
    %2224 = vmatprep.subr.mxu0 0.0
    %2225 = vmatpush1.msra.mxu0 %v1609
    %2226 = vmatprep.subr.mxu0 0.0
    %2227 = vmatpush1.msra.mxu0 %v1610
    %2228 = vmatprep.subr.mxu0 0.0
    %2229 = vmatpush1.msra.mxu0 %v1611
    %2230 = vmatprep.subr.mxu0 0.0
    %2231 = vmatpush1.msra.mxu0 %v1612
    %2232 = vmatprep.subr.mxu0 0.0
    %2233 = vmatpush1.msra.mxu0 0.0
    %2234 = vmatprep.subr.mxu0 0.0
    %2235 = vmatpush1.msra.mxu0 0.0
    %2236 = vmatprep.subr.mxu0 0.0
    %2237 = vmatpush1.msra.mxu0 0.0
    %2238 = vmatprep.subr.mxu0 0.0
    %2239 = vmatpush1.msra.mxu0 0.0
    %2240 = vmatprep.subr.mxu0 0.0
    %2241 = vmatpush1.msra.mxu0 0.0
    %2242 = vmatprep.subr.mxu0 0.0
    %2243 = vmatpush1.msra.mxu0 0.0
    %2244 = vmatprep.subr.mxu0 0.0
    %2245 = vmatpush1.msra.mxu0 0.0
    %2246 = vmatprep.subr.mxu0 0.0
    %2247 = vmatpush1.msra.mxu0 0.0
    %2248 = vmatprep.subr.mxu0 0.0
    %2249 = vmatpush1.msra.mxu0 0.0
    %2250 = vmatprep.subr.mxu0 0.0
    %2251 = vmatpush1.msra.mxu0 0.0
    %2252 = vmatprep.subr.mxu0 0.0
    %2253 = vmatpush1.msra.mxu0 0.0
    %2254 = vmatprep.subr.mxu0 0.0
    %2255 = vmatpush1.msra.mxu0 0.0
    %2256 = vmatprep.subr.mxu0 0.0
    %2257 = vmatpush1.msra.mxu0 0.0
    %2258 = vmatprep.subr.mxu0 0.0
    %2259 = vmatpush1.msra.mxu0 0.0
    %2260 = vmatprep.subr.mxu0 0.0
    %2261 = vmatpush1.msra.mxu0 0.0
    %2262 = vmatprep.subr.mxu0 0.0
    %2263 = vmatpush1.msra.mxu0 0.0
    %2264 = vmatprep.mubr.f32.mxu0 0.0
    %2265 = vmatmul.mubr.f32.gmra.mrb[0].mxu0 %v2198
    %v2266 = vpop.f32.mrb[0].mxu0
    %v2267 = vadd.f32 0.0, %v2266
    %v2268 = vpop.f32.mrb[0].mxu0
    %2269 = vdwg.mxu0
    %v2271 = vrot.slane %v2267, 3
    %v2273 = vadd.f32 %v2197, %v2271
    %v2274 = vtanh.pop %v2273
    %v2276 = vcombine.high %v2274, %v2274
    %v2278 = vunpack.c.l.s4 1966171168
    %v2279 = vunpack.c.0.s8 %v2278
    %v2280 = vlaneseq
    %v2281 = vshrl.u32 %v2280, 7
    %v2282 = vsub.s32 %v2279, %v2281
    %v2283 = vrot.slane %v2276, %v2282
    %v2284 = vcombine.high %v2283, %v2283
    %v2286 = vunpack.c.l.s4 1966171168
    %v2287 = vunpack.c.0.s8 %v2286
    %v2288 = vlaneseq
    %v2289 = vshrl.u32 %v2288, 7
    %v2290 = vsub.s32 %v2287, %v2289
    %v2291 = vrot.slane %v2283, %v2290
    %v2293 = vunpack.c.l.s4 1966171168
    %v2294 = vunpack.c.0.s8 %v2293
    %v2295 = vlaneseq
    %v2296 = vshrl.u32 %v2295, 7
    %v2297 = vsub.s32 %v2294, %v2296
    %v2298 = vrot.slane %v2284, %v2297
    %v2299 = vcombine.high %v2291, %v2291
    %2302 = vst.msk [vmem:[#allocation2 + $0x5] sm:$0x1] %vm1722, %v2298
    %2303 = vst.msk [vmem:[#allocation2 + $0xd] sm:$0x1] %vm1722, %v2299
    %2304 = vst.msk [vmem:[#allocation2 + $0x2] sm:$0x1] %vm1725, %v2298
    %2305 = vst.msk [vmem:[#allocation2 + $0xa] sm:$0x1] %vm1725, %v2299
    %vm2306 = vcmask 1047559
    %v2307 = vsel %vm2306, %v1615, %v1589
    %v2309 = vsel %vm2306, %v1845, %v1844
    %v2311 = vsel %vm1623, %v2307, %v2309
    %v2312 = vrot.slane %v2274, 5
    %2314 = vmatprep.subr.mxu0 0.0
    %2315 = vmatpush1.msra.mxu0 %v1597
    %2316 = vmatprep.subr.mxu0 0.0
    %2317 = vmatpush1.msra.mxu0 %v1598
    %2318 = vmatprep.subr.mxu0 0.0
    %2319 = vmatpush1.msra.mxu0 %v1599
    %2320 = vmatprep.subr.mxu0 0.0
    %2321 = vmatpush1.msra.mxu0 %v1600
    %2322 = vmatprep.subr.mxu0 0.0
    %2323 = vmatpush1.msra.mxu0 %v1601
    %2324 = vmatprep.subr.mxu0 0.0
    %2325 = vmatpush1.msra.mxu0 %v1602
    %2326 = vmatprep.subr.mxu0 0.0
    %2327 = vmatpush1.msra.mxu0 %v1603
    %2328 = vmatprep.subr.mxu0 0.0
    %2329 = vmatpush1.msra.mxu0 %v1604
    %2330 = vmatprep.subr.mxu0 0.0
    %2331 = vmatpush1.msra.mxu0 %v1605
    %2332 = vmatprep.subr.mxu0 0.0
    %2333 = vmatpush1.msra.mxu0 %v1606
    %2334 = vmatprep.subr.mxu0 0.0
    %2335 = vmatpush1.msra.mxu0 %v1607
    %2336 = vmatprep.subr.mxu0 0.0
    %2337 = vmatpush1.msra.mxu0 %v1608
    %2338 = vmatprep.subr.mxu0 0.0
    %2339 = vmatpush1.msra.mxu0 %v1609
    %2340 = vmatprep.subr.mxu0 0.0
    %2341 = vmatpush1.msra.mxu0 %v1610
    %2342 = vmatprep.subr.mxu0 0.0
    %2343 = vmatpush1.msra.mxu0 %v1611
    %2344 = vmatprep.subr.mxu0 0.0
    %2345 = vmatpush1.msra.mxu0 %v1612
    %2346 = vmatprep.subr.mxu0 0.0
    %2347 = vmatpush1.msra.mxu0 0.0
    %2348 = vmatprep.subr.mxu0 0.0
    %2349 = vmatpush1.msra.mxu0 0.0
    %2350 = vmatprep.subr.mxu0 0.0
    %2351 = vmatpush1.msra.mxu0 0.0
    %2352 = vmatprep.subr.mxu0 0.0
    %2353 = vmatpush1.msra.mxu0 0.0
    %2354 = vmatprep.subr.mxu0 0.0
    %2355 = vmatpush1.msra.mxu0 0.0
    %2356 = vmatprep.subr.mxu0 0.0
    %2357 = vmatpush1.msra.mxu0 0.0
    %2358 = vmatprep.subr.mxu0 0.0
    %2359 = vmatpush1.msra.mxu0 0.0
    %2360 = vmatprep.subr.mxu0 0.0
    %2361 = vmatpush1.msra.mxu0 0.0
    %2362 = vmatprep.subr.mxu0 0.0
    %2363 = vmatpush1.msra.mxu0 0.0
    %2364 = vmatprep.subr.mxu0 0.0
    %2365 = vmatpush1.msra.mxu0 0.0
    %2366 = vmatprep.subr.mxu0 0.0
    %2367 = vmatpush1.msra.mxu0 0.0
    %2368 = vmatprep.subr.mxu0 0.0
    %2369 = vmatpush1.msra.mxu0 0.0
    %2370 = vmatprep.subr.mxu0 0.0
    %2371 = vmatpush1.msra.mxu0 0.0
    %2372 = vmatprep.subr.mxu0 0.0
    %2373 = vmatpush1.msra.mxu0 0.0
    %2374 = vmatprep.subr.mxu0 0.0
    %2375 = vmatpush1.msra.mxu0 0.0
    %2376 = vmatprep.subr.mxu0 0.0
    %2377 = vmatpush1.msra.mxu0 0.0
    %2378 = vmatprep.mubr.f32.mxu0 0.0
    %2379 = vmatmul.mubr.f32.gmra.mrb[0].mxu0 %v2312
    %v2380 = vpop.f32.mrb[0].mxu0
    %v2381 = vadd.f32 0.0, %v2380
    %v2382 = vpop.f32.mrb[0].mxu0
    %2383 = vdwg.mxu0
    %v2385 = vrot.slane %v2381, 2
    %v2387 = vadd.f32 %v2311, %v2385
    %v2388 = vtanh.pop %v2387
    %v2390 = vcombine.high %v2388, %v2388
    %v2392 = vunpack.c.l.s4 1966171168
    %v2393 = vunpack.c.0.s8 %v2392
    %v2394 = vlaneseq
    %v2395 = vshrl.u32 %v2394, 7
    %v2396 = vsub.s32 %v2393, %v2395
    %v2397 = vrot.slane %v2390, %v2396
    %v2398 = vcombine.high %v2397, %v2397
    %v2400 = vunpack.c.l.s4 1966171168
    %v2401 = vunpack.c.0.s8 %v2400
    %v2402 = vlaneseq
    %v2403 = vshrl.u32 %v2402, 7
    %v2404 = vsub.s32 %v2401, %v2403
    %v2405 = vrot.slane %v2397, %v2404
    %v2407 = vunpack.c.l.s4 1966171168
    %v2408 = vunpack.c.0.s8 %v2407
    %v2409 = vlaneseq
    %v2410 = vshrl.u32 %v2409, 7
    %v2411 = vsub.s32 %v2408, %v2410
    %v2412 = vrot.slane %v2398, %v2411
    %v2413 = vcombine.high %v2405, %v2405
    %v2414 = vcombine.high %v2412, %v2412
    %2417 = vst.msk [vmem:[#allocation2 + $0x6] sm:$0x1] %vm1722, %v2413
    %2418 = vst.msk [vmem:[#allocation2 + $0xe] sm:$0x1] %vm1722, %v2414
    %2419 = vst.msk [vmem:[#allocation2 + $0x1] sm:$0x1] %vm1725, %v2413
    %2420 = vst.msk [vmem:[#allocation2 + $0x9] sm:$0x1] %vm1725, %v2414
    %v2425 = vsel %vm1623, %v1589, %v1960
    %v2426 = vsel %vm1623, %v1615, %v1594
    %v2427 = vrot.slane %v2388, 6
    %2429 = vmatprep.subr.mxu0 0.0
    %2430 = vmatpush1.msra.mxu0 %v1597
    %2431 = vmatprep.subr.mxu0 0.0
    %2432 = vmatpush1.msra.mxu0 %v1598
    %2433 = vmatprep.subr.mxu0 0.0
    %2434 = vmatpush1.msra.mxu0 %v1599
    %2435 = vmatprep.subr.mxu0 0.0
    %2436 = vmatpush1.msra.mxu0 %v1600
    %2437 = vmatprep.subr.mxu0 0.0
    %2438 = vmatpush1.msra.mxu0 %v1601
    %2439 = vmatprep.subr.mxu0 0.0
    %2440 = vmatpush1.msra.mxu0 %v1602
    %2441 = vmatprep.subr.mxu0 0.0
    %2442 = vmatpush1.msra.mxu0 %v1603
    %2443 = vmatprep.subr.mxu0 0.0
    %2444 = vmatpush1.msra.mxu0 %v1604
    %2445 = vmatprep.subr.mxu0 0.0
    %2446 = vmatpush1.msra.mxu0 %v1605
    %2447 = vmatprep.subr.mxu0 0.0
    %2448 = vmatpush1.msra.mxu0 %v1606
    %2449 = vmatprep.subr.mxu0 0.0
    %2450 = vmatpush1.msra.mxu0 %v1607
    %2451 = vmatprep.subr.mxu0 0.0
    %2452 = vmatpush1.msra.mxu0 %v1608
    %2453 = vmatprep.subr.mxu0 0.0
    %2454 = vmatpush1.msra.mxu0 %v1609
    %2455 = vmatprep.subr.mxu0 0.0
    %2456 = vmatpush1.msra.mxu0 %v1610
    %2457 = vmatprep.subr.mxu0 0.0
    %2458 = vmatpush1.msra.mxu0 %v1611
    %2459 = vmatprep.subr.mxu0 0.0
    %2460 = vmatpush1.msra.mxu0 %v1612
    %2461 = vmatprep.subr.mxu0 0.0
    %2462 = vmatpush1.msra.mxu0 0.0
    %2463 = vmatprep.subr.mxu0 0.0
    %2464 = vmatpush1.msra.mxu0 0.0
    %2465 = vmatprep.subr.mxu0 0.0
    %2466 = vmatpush1.msra.mxu0 0.0
    %2467 = vmatprep.subr.mxu0 0.0
    %2468 = vmatpush1.msra.mxu0 0.0
    %2469 = vmatprep.subr.mxu0 0.0
    %2470 = vmatpush1.msra.mxu0 0.0
    %2471 = vmatprep.subr.mxu0 0.0
    %2472 = vmatpush1.msra.mxu0 0.0
    %2473 = vmatprep.subr.mxu0 0.0
    %2474 = vmatpush1.msra.mxu0 0.0
    %2475 = vmatprep.subr.mxu0 0.0
    %2476 = vmatpush1.msra.mxu0 0.0
    %2477 = vmatprep.subr.mxu0 0.0
    %2478 = vmatpush1.msra.mxu0 0.0
    %2479 = vmatprep.subr.mxu0 0.0
    %2480 = vmatpush1.msra.mxu0 0.0
    %2481 = vmatprep.subr.mxu0 0.0
    %2482 = vmatpush1.msra.mxu0 0.0
    %2483 = vmatprep.subr.mxu0 0.0
    %2484 = vmatpush1.msra.mxu0 0.0
    %2485 = vmatprep.subr.mxu0 0.0
    %2486 = vmatpush1.msra.mxu0 0.0
    %2487 = vmatprep.subr.mxu0 0.0
    %2488 = vmatpush1.msra.mxu0 0.0
    %2489 = vmatprep.subr.mxu0 0.0
    %2490 = vmatpush1.msra.mxu0 0.0
    %2491 = vmatprep.subr.mxu0 0.0
    %2492 = vmatpush1.msra.mxu0 0.0
    %2493 = vmatprep.mubr.f32.mxu0 0.0
    %2494 = vmatmul.mubr.f32.gmra.mrb[0].mxu0 %v2427
    %v2495 = vpop.f32.mrb[0].mxu0
    %v2496 = vadd.f32 0.0, %v2495
    %v2497 = vpop.f32.mrb[0].mxu0
    %2498 = vdwg.mxu0
    %v2500 = vrot.slane %v2496, 1
    %v2502 = vadd.f32 %v2425, %v2500
    %v2503 = vadd.f32 %v2426, %v2500
    %v2504 = vtanh.pop %v2502
    %v2505 = vtanh.pop %v2503
    %v2508 = vcombine.high %v2504, %v2504
    %v2510 = vunpack.c.l.s4 1966171168
    %v2511 = vunpack.c.0.s8 %v2510
    %v2512 = vlaneseq
    %v2513 = vshrl.u32 %v2512, 7
    %v2514 = vsub.s32 %v2511, %v2513
    %v2515 = vrot.slane %v2508, %v2514
    %v2516 = vcombine.high %v2515, %v2515
    %v2518 = vunpack.c.l.s4 1966171168
    %v2519 = vunpack.c.0.s8 %v2518
    %v2520 = vlaneseq
    %v2521 = vshrl.u32 %v2520, 7
    %v2522 = vsub.s32 %v2519, %v2521
    %v2523 = vrot.slane %v2516, %v2522
    %v2524 = vcombine.high %v2523, %v2523
    %v2526 = vunpack.c.l.s4 1966171168
    %v2527 = vunpack.c.0.s8 %v2526
    %v2528 = vlaneseq
    %v2529 = vshrl.u32 %v2528, 7
    %v2530 = vsub.s32 %v2527, %v2529
    %v2531 = vrot.slane %v2505, %v2530
    %v2533 = vunpack.c.l.s4 1966171168
    %v2534 = vunpack.c.0.s8 %v2533
    %v2535 = vlaneseq
    %v2536 = vshrl.u32 %v2535, 7
    %v2537 = vsub.s32 %v2534, %v2536
    %v2538 = vrot.slane %v2531, %v2537
    %2541 = vst.msk [vmem:[#allocation2 + $0x7] sm:$0x1] %vm1722, %v2524
    %2542 = vst.msk [vmem:[#allocation2 + $0xf] sm:$0x1] %vm1722, %v2538
    %2543 = vst.msk [vmem:[#allocation2] sm:$0x1] %vm1725, %v2524
    %2544 = vst.msk [vmem:[#allocation2 + $0x8] sm:$0x1] %vm1725, %v2538
    %v2545 = vld [vmem:[#allocation2] sm:$0xff]
    %v2546 = vld [vmem:[#allocation2 + $0x8] sm:$0xff]
    %v2547 = vld [vmem:[#allocation18] sm:$0xff]
    %v2548 = vld [vmem:[#allocation18 + $0x8] sm:$0xff]
    %v2549 = vld [vmem:[#allocation18 + $0x10] sm:$0xff]
    %v2550 = vld [vmem:[#allocation18 + $0x18] sm:$0xff]
    %v2551 = vld [vmem:[#allocation18 + $0x20] sm:$0xff]
    %v2552 = vld [vmem:[#allocation18 + $0x28] sm:$0xff]
    %v2553 = vld [vmem:[#allocation18 + $0x30] sm:$0xff]
    %v2554 = vld [vmem:[#allocation18 + $0x38] sm:$0xff]
    %v2555 = vld [vmem:[#allocation18 + $0x40] sm:$0xff]
    %v2556 = vld [vmem:[#allocation18 + $0x48] sm:$0xff]
    %v2557 = vld [vmem:[#allocation18 + $0x50] sm:$0xff]
    %v2558 = vld [vmem:[#allocation18 + $0x58] sm:$0xff]
    %v2559 = vld [vmem:[#allocation18 + $0x60] sm:$0xff]
    %v2560 = vld [vmem:[#allocation18 + $0x68] sm:$0xff]
    %v2561 = vld [vmem:[#allocation18 + $0x70] sm:$0xff]
    %v2562 = vld [vmem:[#allocation18 + $0x78] sm:$0xff]
    %v2563 = vld [vmem:[%s12] sm:$0x1]
    %v2565 = vlaneseq
    %v2566 = vshrl.u32 %v2565, 7
    %v2567 = vsub.s32 0, %v2566
    %v2568 = vrot.slane %v2563, %v2567
    %2570 = vmatprep.subr.mxu0 0.0
    %2571 = vmatpush1.msra.mxu0 %v2547
    %2572 = vmatprep.subr.mxu0 0.0
    %2573 = vmatpush1.msra.mxu0 %v2548
    %2574 = vmatprep.subr.mxu0 0.0
    %2575 = vmatpush1.msra.mxu0 %v2549
    %2576 = vmatprep.subr.mxu0 0.0
    %2577 = vmatpush1.msra.mxu0 %v2550
    %2578 = vmatprep.subr.mxu0 0.0
    %2579 = vmatpush1.msra.mxu0 %v2551
    %2580 = vmatprep.subr.mxu0 0.0
    %2581 = vmatpush1.msra.mxu0 %v2552
    %2582 = vmatprep.subr.mxu0 0.0
    %2583 = vmatpush1.msra.mxu0 %v2553
    %2584 = vmatprep.subr.mxu0 0.0
    %2585 = vmatpush1.msra.mxu0 %v2554
    %2586 = vmatprep.subr.mxu0 0.0
    %2587 = vmatpush1.msra.mxu0 %v2555
    %2588 = vmatprep.subr.mxu0 0.0
    %2589 = vmatpush1.msra.mxu0 %v2556
    %2590 = vmatprep.subr.mxu0 0.0
    %2591 = vmatpush1.msra.mxu0 %v2557
    %2592 = vmatprep.subr.mxu0 0.0
    %2593 = vmatpush1.msra.mxu0 %v2558
    %2594 = vmatprep.subr.mxu0 0.0
    %2595 = vmatpush1.msra.mxu0 %v2559
    %2596 = vmatprep.subr.mxu0 0.0
    %2597 = vmatpush1.msra.mxu0 %v2560
    %2598 = vmatprep.subr.mxu0 0.0
    %2599 = vmatpush1.msra.mxu0 %v2561
    %2600 = vmatprep.subr.mxu0 0.0
    %2601 = vmatpush1.msra.mxu0 %v2562
    %2602 = vmatprep.subr.mxu0 0.0
    %2603 = vmatpush1.msra.mxu0 0.0
    %2604 = vmatprep.subr.mxu0 0.0
    %2605 = vmatpush1.msra.mxu0 0.0
    %2606 = vmatprep.subr.mxu0 0.0
    %2607 = vmatpush1.msra.mxu0 0.0
    %2608 = vmatprep.subr.mxu0 0.0
    %2609 = vmatpush1.msra.mxu0 0.0
    %2610 = vmatprep.subr.mxu0 0.0
    %2611 = vmatpush1.msra.mxu0 0.0
    %2612 = vmatprep.subr.mxu0 0.0
    %2613 = vmatpush1.msra.mxu0 0.0
    %2614 = vmatprep.subr.mxu0 0.0
    %2615 = vmatpush1.msra.mxu0 0.0
    %2616 = vmatprep.subr.mxu0 0.0
    %2617 = vmatpush1.msra.mxu0 0.0
    %2618 = vmatprep.subr.mxu0 0.0
    %2619 = vmatpush1.msra.mxu0 0.0
    %2620 = vmatprep.subr.mxu0 0.0
    %2621 = vmatpush1.msra.mxu0 0.0
    %2622 = vmatprep.subr.mxu0 0.0
    %2623 = vmatpush1.msra.mxu0 0.0
    %2624 = vmatprep.subr.mxu0 0.0
    %2625 = vmatpush1.msra.mxu0 0.0
    %2626 = vmatprep.subr.mxu0 0.0
    %2627 = vmatpush1.msra.mxu0 0.0
    %2628 = vmatprep.subr.mxu0 0.0
    %2629 = vmatpush1.msra.mxu0 0.0
    %2630 = vmatprep.subr.mxu0 0.0
    %2631 = vmatpush1.msra.mxu0 0.0
    %2632 = vmatprep.subr.mxu0 0.0
    %2633 = vmatpush1.msra.mxu0 0.0
    %2634 = vmatprep.mubr.f32.mxu0 0.0
    %2635 = vmatmul.mubr.f32.gmra.mrb[0].mxu0 %v1481
    %v2636 = vpop.f32.mrb[0].mxu0
    %v2637 = vadd.f32 %v2568, %v2636
    %v2638 = vpop.f32.mrb[0].mxu0
    %2639 = vmatprep.mubr.f32.mxu0 0.0
    %2640 = vmatmul.mubr.f32.gmra.mrb[0].mxu0 %v1486
    %v2641 = vpop.f32.mrb[0].mxu0
    %v2642 = vadd.f32 %v2568, %v2641
    %v2643 = vpop.f32.mrb[0].mxu0
    %2644 = vmatprep.mubr.f32.mxu0 0.0
    %2645 = vmatmul.mubr.f32.gmra.mrb[0].mxu0 %v1491
    %v2646 = vpop.f32.mrb[0].mxu0
    %v2647 = vadd.f32 %v2568, %v2646
    %v2648 = vpop.f32.mrb[0].mxu0
    %2649 = vmatprep.mubr.f32.mxu0 0.0
    %2650 = vmatmul.mubr.f32.gmra.mrb[0].mxu0 %v1496
    %v2651 = vpop.f32.mrb[0].mxu0
    %v2652 = vadd.f32 %v2568, %v2651
    %v2653 = vpop.f32.mrb[0].mxu0
    %2654 = vdwg.mxu0
    %v2655 = vld [vmem:[#allocation19] sm:$0xff]
    %v2656 = vld [vmem:[#allocation19 + $0x8] sm:$0xff]
    %v2657 = vld [vmem:[#allocation19 + $0x10] sm:$0xff]
    %v2658 = vld [vmem:[#allocation19 + $0x18] sm:$0xff]
    %v2659 = vld [vmem:[#allocation19 + $0x20] sm:$0xff]
    %v2660 = vld [vmem:[#allocation19 + $0x28] sm:$0xff]
    %v2661 = vld [vmem:[#allocation19 + $0x30] sm:$0xff]
    %v2662 = vld [vmem:[#allocation19 + $0x38] sm:$0xff]
    %v2663 = vld [vmem:[#allocation19 + $0x40] sm:$0xff]
    %v2664 = vld [vmem:[#allocation19 + $0x48] sm:$0xff]
    %v2665 = vld [vmem:[#allocation19 + $0x50] sm:$0xff]
    %v2666 = vld [vmem:[#allocation19 + $0x58] sm:$0xff]
    %v2667 = vld [vmem:[#allocation19 + $0x60] sm:$0xff]
    %v2668 = vld [vmem:[#allocation19 + $0x68] sm:$0xff]
    %v2669 = vld [vmem:[#allocation19 + $0x70] sm:$0xff]
    %v2670 = vld [vmem:[#allocation19 + $0x78] sm:$0xff]
    %v2673 = vrot.slane %v2647, 7
    %v2674 = vsel %vm1616, %v2673, %v2637
    %v2678 = vrot.slane %v2642, 7
    %v2679 = vrot.slane %v2652, 6
    %v2680 = vsel %vm1616, %v2679, %v2678
    %v2682 = vsel %vm1623, %v2674, %v2680
    %2683 = vmatprep.subr.mxu0 0.0
    %2684 = vmatpush1.msra.mxu0 %v2655
    %2685 = vmatprep.subr.mxu0 0.0
    %2686 = vmatpush1.msra.mxu0 %v2656
    %2687 = vmatprep.subr.mxu0 0.0
    %2688 = vmatpush1.msra.mxu0 %v2657
    %2689 = vmatprep.subr.mxu0 0.0
    %2690 = vmatpush1.msra.mxu0 %v2658
    %2691 = vmatprep.subr.mxu0 0.0
    %2692 = vmatpush1.msra.mxu0 %v2659
    %2693 = vmatprep.subr.mxu0 0.0
    %2694 = vmatpush1.msra.mxu0 %v2660
    %2695 = vmatprep.subr.mxu0 0.0
    %2696 = vmatpush1.msra.mxu0 %v2661
    %2697 = vmatprep.subr.mxu0 0.0
    %2698 = vmatpush1.msra.mxu0 %v2662
    %2699 = vmatprep.subr.mxu0 0.0
    %2700 = vmatpush1.msra.mxu0 %v2663
    %2701 = vmatprep.subr.mxu0 0.0
    %2702 = vmatpush1.msra.mxu0 %v2664
    %2703 = vmatprep.subr.mxu0 0.0
    %2704 = vmatpush1.msra.mxu0 %v2665
    %2705 = vmatprep.subr.mxu0 0.0
    %2706 = vmatpush1.msra.mxu0 %v2666
    %2707 = vmatprep.subr.mxu0 0.0
    %2708 = vmatpush1.msra.mxu0 %v2667
    %2709 = vmatprep.subr.mxu0 0.0
    %2710 = vmatpush1.msra.mxu0 %v2668
    %2711 = vmatprep.subr.mxu0 0.0
    %2712 = vmatpush1.msra.mxu0 %v2669
    %2713 = vmatprep.subr.mxu0 0.0
    %2714 = vmatpush1.msra.mxu0 %v2670
    %2715 = vmatprep.subr.mxu0 0.0
    %2716 = vmatpush1.msra.mxu0 0.0
    %2717 = vmatprep.subr.mxu0 0.0
    %2718 = vmatpush1.msra.mxu0 0.0
    %2719 = vmatprep.subr.mxu0 0.0
    %2720 = vmatpush1.msra.mxu0 0.0
    %2721 = vmatprep.subr.mxu0 0.0
    %2722 = vmatpush1.msra.mxu0 0.0
    %2723 = vmatprep.subr.mxu0 0.0
    %2724 = vmatpush1.msra.mxu0 0.0
    %2725 = vmatprep.subr.mxu0 0.0
    %2726 = vmatpush1.msra.mxu0 0.0
    %2727 = vmatprep.subr.mxu0 0.0
    %2728 = vmatpush1.msra.mxu0 0.0
    %2729 = vmatprep.subr.mxu0 0.0
    %2730 = vmatpush1.msra.mxu0 0.0
    %2731 = vmatprep.subr.mxu0 0.0
    %2732 = vmatpush1.msra.mxu0 0.0
    %2733 = vmatprep.subr.mxu0 0.0
    %2734 = vmatpush1.msra.mxu0 0.0
    %2735 = vmatprep.subr.mxu0 0.0
    %2736 = vmatpush1.msra.mxu0 0.0
    %2737 = vmatprep.subr.mxu0 0.0
    %2738 = vmatpush1.msra.mxu0 0.0
    %2739 = vmatprep.subr.mxu0 0.0
    %2740 = vmatpush1.msra.mxu0 0.0
    %2741 = vmatprep.subr.mxu0 0.0
    %2742 = vmatpush1.msra.mxu0 0.0
    %2743 = vmatprep.subr.mxu0 0.0
    %2744 = vmatpush1.msra.mxu0 0.0
    %2745 = vmatprep.subr.mxu0 0.0
    %2746 = vmatpush1.msra.mxu0 0.0
    %2747 = vmatprep.mubr.f32.mxu0 0.0
    %2748 = vmatmul.mubr.f32.gmra.mrb[0].mxu0 0.0
    %v2749 = vpop.f32.mrb[0].mxu0
    %v2750 = vadd.f32 0.0, %v2749
    %v2751 = vpop.f32.mrb[0].mxu0
    %2752 = vdwg.mxu0
    %v2753 = vadd.f32 %v2682, %v2750
    %v2754 = vtanh.pop %v2753
    %v2757 = vunpack.c.l.s4 1966171168
    %v2758 = vunpack.c.0.s8 %v2757
    %v2759 = vlaneseq
    %v2760 = vshrl.u32 %v2759, 7
    %v2761 = vsub.s32 %v2758, %v2760
    %v2762 = vrot.slane %v2754, %v2761
    %v2763 = vcombine.high %v2762, %v2762
    %v2765 = vunpack.c.l.s4 1966171168
    %v2766 = vunpack.c.0.s8 %v2765
    %v2767 = vlaneseq
    %v2768 = vshrl.u32 %v2767, 7
    %v2769 = vsub.s32 %v2766, %v2768
    %v2770 = vrot.slane %v2762, %v2769
    %v2772 = vunpack.c.l.s4 1966171168
    %v2773 = vunpack.c.0.s8 %v2772
    %v2774 = vlaneseq
    %v2775 = vshrl.u32 %v2774, 7
    %v2776 = vsub.s32 %v2773, %v2775
    %v2777 = vrot.slane %v2763, %v2776
    %2780 = vst.msk [vmem:[#allocation3] sm:$0x1] %vm1722, %v2770
    %2781 = vst.msk [vmem:[#allocation3 + $0x10] sm:$0x1] %vm1722, %v2777
    %2782 = vst.msk [vmem:[#allocation3 + $0xf] sm:$0x1] %vm1725, %v2770
    %2783 = vst.msk [vmem:[#allocation3 + $0x1f] sm:$0x1] %vm1725, %v2777
    %v2784 = vsel %vm1728, %v2673, %v2637
    %v2786 = vrot.slane %v2642, 5
    %v2787 = vrot.slane %v2652, 4
    %v2788 = vsel %vm1728, %v2787, %v2786
    %v2790 = vsel %vm1623, %v2784, %v2788
    %2791 = vmatprep.subr.mxu0 0.0
    %2792 = vmatpush1.msra.mxu0 %v2655
    %2793 = vmatprep.subr.mxu0 0.0
    %2794 = vmatpush1.msra.mxu0 %v2656
    %2795 = vmatprep.subr.mxu0 0.0
    %2796 = vmatpush1.msra.mxu0 %v2657
    %2797 = vmatprep.subr.mxu0 0.0
    %2798 = vmatpush1.msra.mxu0 %v2658
    %2799 = vmatprep.subr.mxu0 0.0
    %2800 = vmatpush1.msra.mxu0 %v2659
    %2801 = vmatprep.subr.mxu0 0.0
    %2802 = vmatpush1.msra.mxu0 %v2660
    %2803 = vmatprep.subr.mxu0 0.0
    %2804 = vmatpush1.msra.mxu0 %v2661
    %2805 = vmatprep.subr.mxu0 0.0
    %2806 = vmatpush1.msra.mxu0 %v2662
    %2807 = vmatprep.subr.mxu0 0.0
    %2808 = vmatpush1.msra.mxu0 %v2663
    %2809 = vmatprep.subr.mxu0 0.0
    %2810 = vmatpush1.msra.mxu0 %v2664
    %2811 = vmatprep.subr.mxu0 0.0
    %2812 = vmatpush1.msra.mxu0 %v2665
    %2813 = vmatprep.subr.mxu0 0.0
    %2814 = vmatpush1.msra.mxu0 %v2666
    %2815 = vmatprep.subr.mxu0 0.0
    %2816 = vmatpush1.msra.mxu0 %v2667
    %2817 = vmatprep.subr.mxu0 0.0
    %2818 = vmatpush1.msra.mxu0 %v2668
    %2819 = vmatprep.subr.mxu0 0.0
    %2820 = vmatpush1.msra.mxu0 %v2669
    %2821 = vmatprep.subr.mxu0 0.0
    %2822 = vmatpush1.msra.mxu0 %v2670
    %2823 = vmatprep.subr.mxu0 0.0
    %2824 = vmatpush1.msra.mxu0 0.0
    %2825 = vmatprep.subr.mxu0 0.0
    %2826 = vmatpush1.msra.mxu0 0.0
    %2827 = vmatprep.subr.mxu0 0.0
    %2828 = vmatpush1.msra.mxu0 0.0
    %2829 = vmatprep.subr.mxu0 0.0
    %2830 = vmatpush1.msra.mxu0 0.0
    %2831 = vmatprep.subr.mxu0 0.0
    %2832 = vmatpush1.msra.mxu0 0.0
    %2833 = vmatprep.subr.mxu0 0.0
    %2834 = vmatpush1.msra.mxu0 0.0
    %2835 = vmatprep.subr.mxu0 0.0
    %2836 = vmatpush1.msra.mxu0 0.0
    %2837 = vmatprep.subr.mxu0 0.0
    %2838 = vmatpush1.msra.mxu0 0.0
    %2839 = vmatprep.subr.mxu0 0.0
    %2840 = vmatpush1.msra.mxu0 0.0
    %2841 = vmatprep.subr.mxu0 0.0
    %2842 = vmatpush1.msra.mxu0 0.0
    %2843 = vmatprep.subr.mxu0 0.0
    %2844 = vmatpush1.msra.mxu0 0.0
    %2845 = vmatprep.subr.mxu0 0.0
    %2846 = vmatpush1.msra.mxu0 0.0
    %2847 = vmatprep.subr.mxu0 0.0
    %2848 = vmatpush1.msra.mxu0 0.0
    %2849 = vmatprep.subr.mxu0 0.0
    %2850 = vmatpush1.msra.mxu0 0.0
    %2851 = vmatprep.subr.mxu0 0.0
    %2852 = vmatpush1.msra.mxu0 0.0
    %2853 = vmatprep.subr.mxu0 0.0
    %2854 = vmatpush1.msra.mxu0 0.0
    %2855 = vmatprep.mubr.f32.mxu0 0.0
    %2856 = vmatmul.mubr.f32.gmra.mrb[0].mxu0 %v2754
    %v2857 = vpop.f32.mrb[0].mxu0
    %v2858 = vadd.f32 0.0, %v2857
    %v2859 = vpop.f32.mrb[0].mxu0
    %2860 = vdwg.mxu0
    %v2862 = vrot.slane %v2858, 7
    %v2864 = vadd.f32 %v2790, %v2862
    %v2865 = vtanh.pop %v2864
    %v2868 = vunpack.c.l.s4 1966171168
    %v2869 = vunpack.c.0.s8 %v2868
    %v2870 = vlaneseq
    %v2871 = vshrl.u32 %v2870, 7
    %v2872 = vsub.s32 %v2869, %v2871
    %v2873 = vrot.slane %v2865, %v2872
    %v2874 = vcombine.high %v2873, %v2873
    %v2876 = vunpack.c.l.s4 1966171168
    %v2877 = vunpack.c.0.s8 %v2876
    %v2878 = vlaneseq
    %v2879 = vshrl.u32 %v2878, 7
    %v2880 = vsub.s32 %v2877, %v2879
    %v2881 = vrot.slane %v2873, %v2880
    %v2883 = vunpack.c.l.s4 1966171168
    %v2884 = vunpack.c.0.s8 %v2883
    %v2885 = vlaneseq
    %v2886 = vshrl.u32 %v2885, 7
    %v2887 = vsub.s32 %v2884, %v2886
    %v2888 = vrot.slane %v2874, %v2887
    %v2889 = vcombine.high %v2881, %v2881
    %2892 = vst.msk [vmem:[#allocation3 + $0x1] sm:$0x1] %vm1722, %v2888
    %2893 = vst.msk [vmem:[#allocation3 + $0x11] sm:$0x1] %vm1722, %v2889
    %2894 = vst.msk [vmem:[#allocation3 + $0xe] sm:$0x1] %vm1725, %v2888
    %2895 = vst.msk [vmem:[#allocation3 + $0x1e] sm:$0x1] %vm1725, %v2889
    %v2896 = vsel %vm1841, %v2673, %v2637
    %v2898 = vrot.slane %v2642, 3
    %v2899 = vrot.slane %v2652, 2
    %v2900 = vsel %vm1841, %v2899, %v2898
    %v2902 = vsel %vm1623, %v2896, %v2900
    %v2903 = vrot.slane %v2865, 1
    %2905 = vmatprep.subr.mxu0 0.0
    %2906 = vmatpush1.msra.mxu0 %v2655
    %2907 = vmatprep.subr.mxu0 0.0
    %2908 = vmatpush1.msra.mxu0 %v2656
    %2909 = vmatprep.subr.mxu0 0.0
    %2910 = vmatpush1.msra.mxu0 %v2657
    %2911 = vmatprep.subr.mxu0 0.0
    %2912 = vmatpush1.msra.mxu0 %v2658
    %2913 = vmatprep.subr.mxu0 0.0
    %2914 = vmatpush1.msra.mxu0 %v2659
    %2915 = vmatprep.subr.mxu0 0.0
    %2916 = vmatpush1.msra.mxu0 %v2660
    %2917 = vmatprep.subr.mxu0 0.0
    %2918 = vmatpush1.msra.mxu0 %v2661
    %2919 = vmatprep.subr.mxu0 0.0
    %2920 = vmatpush1.msra.mxu0 %v2662
    %2921 = vmatprep.subr.mxu0 0.0
    %2922 = vmatpush1.msra.mxu0 %v2663
    %2923 = vmatprep.subr.mxu0 0.0
    %2924 = vmatpush1.msra.mxu0 %v2664
    %2925 = vmatprep.subr.mxu0 0.0
    %2926 = vmatpush1.msra.mxu0 %v2665
    %2927 = vmatprep.subr.mxu0 0.0
    %2928 = vmatpush1.msra.mxu0 %v2666
    %2929 = vmatprep.subr.mxu0 0.0
    %2930 = vmatpush1.msra.mxu0 %v2667
    %2931 = vmatprep.subr.mxu0 0.0
    %2932 = vmatpush1.msra.mxu0 %v2668
    %2933 = vmatprep.subr.mxu0 0.0
    %2934 = vmatpush1.msra.mxu0 %v2669
    %2935 = vmatprep.subr.mxu0 0.0
    %2936 = vmatpush1.msra.mxu0 %v2670
    %2937 = vmatprep.subr.mxu0 0.0
    %2938 = vmatpush1.msra.mxu0 0.0
    %2939 = vmatprep.subr.mxu0 0.0
    %2940 = vmatpush1.msra.mxu0 0.0
    %2941 = vmatprep.subr.mxu0 0.0
    %2942 = vmatpush1.msra.mxu0 0.0
    %2943 = vmatprep.subr.mxu0 0.0
    %2944 = vmatpush1.msra.mxu0 0.0
    %2945 = vmatprep.subr.mxu0 0.0
    %2946 = vmatpush1.msra.mxu0 0.0
    %2947 = vmatprep.subr.mxu0 0.0
    %2948 = vmatpush1.msra.mxu0 0.0
    %2949 = vmatprep.subr.mxu0 0.0
    %2950 = vmatpush1.msra.mxu0 0.0
    %2951 = vmatprep.subr.mxu0 0.0
    %2952 = vmatpush1.msra.mxu0 0.0
    %2953 = vmatprep.subr.mxu0 0.0
    %2954 = vmatpush1.msra.mxu0 0.0
    %2955 = vmatprep.subr.mxu0 0.0
    %2956 = vmatpush1.msra.mxu0 0.0
    %2957 = vmatprep.subr.mxu0 0.0
    %2958 = vmatpush1.msra.mxu0 0.0
    %2959 = vmatprep.subr.mxu0 0.0
    %2960 = vmatpush1.msra.mxu0 0.0
    %2961 = vmatprep.subr.mxu0 0.0
    %2962 = vmatpush1.msra.mxu0 0.0
    %2963 = vmatprep.subr.mxu0 0.0
    %2964 = vmatpush1.msra.mxu0 0.0
    %2965 = vmatprep.subr.mxu0 0.0
    %2966 = vmatpush1.msra.mxu0 0.0
    %2967 = vmatprep.subr.mxu0 0.0
    %2968 = vmatpush1.msra.mxu0 0.0
    %2969 = vmatprep.mubr.f32.mxu0 0.0
    %2970 = vmatmul.mubr.f32.gmra.mrb[0].mxu0 %v2903
    %v2971 = vpop.f32.mrb[0].mxu0
    %v2972 = vadd.f32 0.0, %v2971
    %v2973 = vpop.f32.mrb[0].mxu0
    %2974 = vdwg.mxu0
    %v2976 = vrot.slane %v2972, 6
    %v2978 = vadd.f32 %v2902, %v2976
    %v2979 = vtanh.pop %v2978
    %v2982 = vunpack.c.l.s4 1966171168
    %v2983 = vunpack.c.0.s8 %v2982
    %v2984 = vlaneseq
    %v2985 = vshrl.u32 %v2984, 7
    %v2986 = vsub.s32 %v2983, %v2985
    %v2987 = vrot.slane %v2979, %v2986
    %v2988 = vcombine.high %v2987, %v2987
    %v2990 = vunpack.c.l.s4 1966171168
    %v2991 = vunpack.c.0.s8 %v2990
    %v2992 = vlaneseq
    %v2993 = vshrl.u32 %v2992, 7
    %v2994 = vsub.s32 %v2991, %v2993
    %v2995 = vrot.slane %v2987, %v2994
    %v2997 = vunpack.c.l.s4 1966171168
    %v2998 = vunpack.c.0.s8 %v2997
    %v2999 = vlaneseq
    %v3000 = vshrl.u32 %v2999, 7
    %v3001 = vsub.s32 %v2998, %v3000
    %v3002 = vrot.slane %v2988, %v3001
    %v3003 = vcombine.high %v2995, %v2995
    %v3004 = vcombine.high %v3002, %v3002
    %3007 = vst.msk [vmem:[#allocation3 + $0x2] sm:$0x1] %vm1722, %v3003
    %3008 = vst.msk [vmem:[#allocation3 + $0x12] sm:$0x1] %vm1722, %v3004
    %3009 = vst.msk [vmem:[#allocation3 + $0xd] sm:$0x1] %vm1725, %v3003
    %3010 = vst.msk [vmem:[#allocation3 + $0x1d] sm:$0x1] %vm1725, %v3004
    %v3011 = vsel %vm1957, %v2673, %v2637
    %v3013 = vrot.slane %v2642, 1
    %v3014 = vsel %vm1957, %v2652, %v3013
    %v3016 = vsel %vm1623, %v3011, %v3014
    %v3017 = vrot.slane %v2979, 2
    %3019 = vmatprep.subr.mxu0 0.0
    %3020 = vmatpush1.msra.mxu0 %v2655
    %3021 = vmatprep.subr.mxu0 0.0
    %3022 = vmatpush1.msra.mxu0 %v2656
    %3023 = vmatprep.subr.mxu0 0.0
    %3024 = vmatpush1.msra.mxu0 %v2657
    %3025 = vmatprep.subr.mxu0 0.0
    %3026 = vmatpush1.msra.mxu0 %v2658
    %3027 = vmatprep.subr.mxu0 0.0
    %3028 = vmatpush1.msra.mxu0 %v2659
    %3029 = vmatprep.subr.mxu0 0.0
    %3030 = vmatpush1.msra.mxu0 %v2660
    %3031 = vmatprep.subr.mxu0 0.0
    %3032 = vmatpush1.msra.mxu0 %v2661
    %3033 = vmatprep.subr.mxu0 0.0
    %3034 = vmatpush1.msra.mxu0 %v2662
    %3035 = vmatprep.subr.mxu0 0.0
    %3036 = vmatpush1.msra.mxu0 %v2663
    %3037 = vmatprep.subr.mxu0 0.0
    %3038 = vmatpush1.msra.mxu0 %v2664
    %3039 = vmatprep.subr.mxu0 0.0
    %3040 = vmatpush1.msra.mxu0 %v2665
    %3041 = vmatprep.subr.mxu0 0.0
    %3042 = vmatpush1.msra.mxu0 %v2666
    %3043 = vmatprep.subr.mxu0 0.0
    %3044 = vmatpush1.msra.mxu0 %v2667
    %3045 = vmatprep.subr.mxu0 0.0
    %3046 = vmatpush1.msra.mxu0 %v2668
    %3047 = vmatprep.subr.mxu0 0.0
    %3048 = vmatpush1.msra.mxu0 %v2669
    %3049 = vmatprep.subr.mxu0 0.0
    %3050 = vmatpush1.msra.mxu0 %v2670
    %3051 = vmatprep.subr.mxu0 0.0
    %3052 = vmatpush1.msra.mxu0 0.0
    %3053 = vmatprep.subr.mxu0 0.0
    %3054 = vmatpush1.msra.mxu0 0.0
    %3055 = vmatprep.subr.mxu0 0.0
    %3056 = vmatpush1.msra.mxu0 0.0
    %3057 = vmatprep.subr.mxu0 0.0
    %3058 = vmatpush1.msra.mxu0 0.0
    %3059 = vmatprep.subr.mxu0 0.0
    %3060 = vmatpush1.msra.mxu0 0.0
    %3061 = vmatprep.subr.mxu0 0.0
    %3062 = vmatpush1.msra.mxu0 0.0
    %3063 = vmatprep.subr.mxu0 0.0
    %3064 = vmatpush1.msra.mxu0 0.0
    %3065 = vmatprep.subr.mxu0 0.0
    %3066 = vmatpush1.msra.mxu0 0.0
    %3067 = vmatprep.subr.mxu0 0.0
    %3068 = vmatpush1.msra.mxu0 0.0
    %3069 = vmatprep.subr.mxu0 0.0
    %3070 = vmatpush1.msra.mxu0 0.0
    %3071 = vmatprep.subr.mxu0 0.0
    %3072 = vmatpush1.msra.mxu0 0.0
    %3073 = vmatprep.subr.mxu0 0.0
    %3074 = vmatpush1.msra.mxu0 0.0
    %3075 = vmatprep.subr.mxu0 0.0
    %3076 = vmatpush1.msra.mxu0 0.0
    %3077 = vmatprep.subr.mxu0 0.0
    %3078 = vmatpush1.msra.mxu0 0.0
    %3079 = vmatprep.subr.mxu0 0.0
    %3080 = vmatpush1.msra.mxu0 0.0
    %3081 = vmatprep.subr.mxu0 0.0
    %3082 = vmatpush1.msra.mxu0 0.0
    %3083 = vmatprep.mubr.f32.mxu0 0.0
    %3084 = vmatmul.mubr.f32.gmra.mrb[0].mxu0 %v3017
    %v3085 = vpop.f32.mrb[0].mxu0
    %v3086 = vadd.f32 0.0, %v3085
    %v3087 = vpop.f32.mrb[0].mxu0
    %3088 = vdwg.mxu0
    %v3090 = vrot.slane %v3086, 5
    %v3092 = vadd.f32 %v3016, %v3090
    %v3093 = vtanh.pop %v3092
    %v3095 = vcombine.high %v3093, %v3093
    %v3097 = vunpack.c.l.s4 1966171168
    %v3098 = vunpack.c.0.s8 %v3097
    %v3099 = vlaneseq
    %v3100 = vshrl.u32 %v3099, 7
    %v3101 = vsub.s32 %v3098, %v3100
    %v3102 = vrot.slane %v3093, %v3101
    %v3104 = vunpack.c.l.s4 1966171168
    %v3105 = vunpack.c.0.s8 %v3104
    %v3106 = vlaneseq
    %v3107 = vshrl.u32 %v3106, 7
    %v3108 = vsub.s32 %v3105, %v3107
    %v3109 = vrot.slane %v3095, %v3108
    %v3110 = vcombine.high %v3102, %v3102
    %v3112 = vunpack.c.l.s4 1966171168
    %v3113 = vunpack.c.0.s8 %v3112
    %v3114 = vlaneseq
    %v3115 = vshrl.u32 %v3114, 7
    %v3116 = vsub.s32 %v3113, %v3115
    %v3117 = vrot.slane %v3109, %v3116
    %v3119 = vunpack.c.l.s4 1966171168
    %v3120 = vunpack.c.0.s8 %v3119
    %v3121 = vlaneseq
    %v3122 = vshrl.u32 %v3121, 7
    %v3123 = vsub.s32 %v3120, %v3122
    %v3124 = vrot.slane %v3110, %v3123
    %v3125 = vcombine.high %v3124, %v3124
    %3128 = vst.msk [vmem:[#allocation3 + $0x3] sm:$0x1] %vm1722, %v3125
    %3129 = vst.msk [vmem:[#allocation3 + $0x13] sm:$0x1] %vm1722, %v3117
    %3130 = vst.msk [vmem:[#allocation3 + $0xc] sm:$0x1] %vm1725, %v3125
    %3131 = vst.msk [vmem:[#allocation3 + $0x1c] sm:$0x1] %vm1725, %v3117
    %v3132 = vsel %vm2079, %v2673, %v2637
    %v3134 = vsel %vm2079, %v2679, %v2678
    %v3136 = vsel %vm1623, %v3132, %v3134
    %v3137 = vrot.slane %v3093, 3
    %3139 = vmatprep.subr.mxu0 0.0
    %3140 = vmatpush1.msra.mxu0 %v2655
    %3141 = vmatprep.subr.mxu0 0.0
    %3142 = vmatpush1.msra.mxu0 %v2656
    %3143 = vmatprep.subr.mxu0 0.0
    %3144 = vmatpush1.msra.mxu0 %v2657
    %3145 = vmatprep.subr.mxu0 0.0
    %3146 = vmatpush1.msra.mxu0 %v2658
    %3147 = vmatprep.subr.mxu0 0.0
    %3148 = vmatpush1.msra.mxu0 %v2659
    %3149 = vmatprep.subr.mxu0 0.0
    %3150 = vmatpush1.msra.mxu0 %v2660
    %3151 = vmatprep.subr.mxu0 0.0
    %3152 = vmatpush1.msra.mxu0 %v2661
    %3153 = vmatprep.subr.mxu0 0.0
    %3154 = vmatpush1.msra.mxu0 %v2662
    %3155 = vmatprep.subr.mxu0 0.0
    %3156 = vmatpush1.msra.mxu0 %v2663
    %3157 = vmatprep.subr.mxu0 0.0
    %3158 = vmatpush1.msra.mxu0 %v2664
    %3159 = vmatprep.subr.mxu0 0.0
    %3160 = vmatpush1.msra.mxu0 %v2665
    %3161 = vmatprep.subr.mxu0 0.0
    %3162 = vmatpush1.msra.mxu0 %v2666
    %3163 = vmatprep.subr.mxu0 0.0
    %3164 = vmatpush1.msra.mxu0 %v2667
    %3165 = vmatprep.subr.mxu0 0.0
    %3166 = vmatpush1.msra.mxu0 %v2668
    %3167 = vmatprep.subr.mxu0 0.0
    %3168 = vmatpush1.msra.mxu0 %v2669
    %3169 = vmatprep.subr.mxu0 0.0
    %3170 = vmatpush1.msra.mxu0 %v2670
    %3171 = vmatprep.subr.mxu0 0.0
    %3172 = vmatpush1.msra.mxu0 0.0
    %3173 = vmatprep.subr.mxu0 0.0
    %3174 = vmatpush1.msra.mxu0 0.0
    %3175 = vmatprep.subr.mxu0 0.0
    %3176 = vmatpush1.msra.mxu0 0.0
    %3177 = vmatprep.subr.mxu0 0.0
    %3178 = vmatpush1.msra.mxu0 0.0
    %3179 = vmatprep.subr.mxu0 0.0
    %3180 = vmatpush1.msra.mxu0 0.0
    %3181 = vmatprep.subr.mxu0 0.0
    %3182 = vmatpush1.msra.mxu0 0.0
    %3183 = vmatprep.subr.mxu0 0.0
    %3184 = vmatpush1.msra.mxu0 0.0
    %3185 = vmatprep.subr.mxu0 0.0
    %3186 = vmatpush1.msra.mxu0 0.0
    %3187 = vmatprep.subr.mxu0 0.0
    %3188 = vmatpush1.msra.mxu0 0.0
    %3189 = vmatprep.subr.mxu0 0.0
    %3190 = vmatpush1.msra.mxu0 0.0
    %3191 = vmatprep.subr.mxu0 0.0
    %3192 = vmatpush1.msra.mxu0 0.0
    %3193 = vmatprep.subr.mxu0 0.0
    %3194 = vmatpush1.msra.mxu0 0.0
    %3195 = vmatprep.subr.mxu0 0.0
    %3196 = vmatpush1.msra.mxu0 0.0
    %3197 = vmatprep.subr.mxu0 0.0
    %3198 = vmatpush1.msra.mxu0 0.0
    %3199 = vmatprep.subr.mxu0 0.0
    %3200 = vmatpush1.msra.mxu0 0.0
    %3201 = vmatprep.subr.mxu0 0.0
    %3202 = vmatpush1.msra.mxu0 0.0
    %3203 = vmatprep.mubr.f32.mxu0 0.0
    %3204 = vmatmul.mubr.f32.gmra.mrb[0].mxu0 %v3137
    %v3205 = vpop.f32.mrb[0].mxu0
    %v3206 = vadd.f32 0.0, %v3205
    %v3207 = vpop.f32.mrb[0].mxu0
    %3208 = vdwg.mxu0
    %v3210 = vrot.slane %v3206, 4
    %v3212 = vadd.f32 %v3136, %v3210
    %v3213 = vtanh.pop %v3212
    %v3215 = vcombine.high %v3213, %v3213
    %v3217 = vunpack.c.l.s4 1966171168
    %v3218 = vunpack.c.0.s8 %v3217
    %v3219 = vlaneseq
    %v3220 = vshrl.u32 %v3219, 7
    %v3221 = vsub.s32 %v3218, %v3220
    %v3222 = vrot.slane %v3215, %v3221
    %v3223 = vcombine.high %v3222, %v3222
    %v3225 = vunpack.c.l.s4 1966171168
    %v3226 = vunpack.c.0.s8 %v3225
    %v3227 = vlaneseq
    %v3228 = vshrl.u32 %v3227, 7
    %v3229 = vsub.s32 %v3226, %v3228
    %v3230 = vrot.slane %v3222, %v3229
    %v3232 = vunpack.c.l.s4 1966171168
    %v3233 = vunpack.c.0.s8 %v3232
    %v3234 = vlaneseq
    %v3235 = vshrl.u32 %v3234, 7
    %v3236 = vsub.s32 %v3233, %v3235
    %v3237 = vrot.slane %v3223, %v3236
    %3240 = vst.msk [vmem:[#allocation3 + $0x4] sm:$0x1] %vm1722, %v3230
    %3241 = vst.msk [vmem:[#allocation3 + $0x14] sm:$0x1] %vm1722, %v3237
    %3242 = vst.msk [vmem:[#allocation3 + $0xb] sm:$0x1] %vm1725, %v3230
    %3243 = vst.msk [vmem:[#allocation3 + $0x1b] sm:$0x1] %vm1725, %v3237
    %v3244 = vsel %vm2192, %v2673, %v2637
    %v3246 = vsel %vm2192, %v2787, %v2786
    %v3248 = vsel %vm1623, %v3244, %v3246
    %v3249 = vrot.slane %v3213, 4
    %3251 = vmatprep.subr.mxu0 0.0
    %3252 = vmatpush1.msra.mxu0 %v2655
    %3253 = vmatprep.subr.mxu0 0.0
    %3254 = vmatpush1.msra.mxu0 %v2656
    %3255 = vmatprep.subr.mxu0 0.0
    %3256 = vmatpush1.msra.mxu0 %v2657
    %3257 = vmatprep.subr.mxu0 0.0
    %3258 = vmatpush1.msra.mxu0 %v2658
    %3259 = vmatprep.subr.mxu0 0.0
    %3260 = vmatpush1.msra.mxu0 %v2659
    %3261 = vmatprep.subr.mxu0 0.0
    %3262 = vmatpush1.msra.mxu0 %v2660
    %3263 = vmatprep.subr.mxu0 0.0
    %3264 = vmatpush1.msra.mxu0 %v2661
    %3265 = vmatprep.subr.mxu0 0.0
    %3266 = vmatpush1.msra.mxu0 %v2662
    %3267 = vmatprep.subr.mxu0 0.0
    %3268 = vmatpush1.msra.mxu0 %v2663
    %3269 = vmatprep.subr.mxu0 0.0
    %3270 = vmatpush1.msra.mxu0 %v2664
    %3271 = vmatprep.subr.mxu0 0.0
    %3272 = vmatpush1.msra.mxu0 %v2665
    %3273 = vmatprep.subr.mxu0 0.0
    %3274 = vmatpush1.msra.mxu0 %v2666
    %3275 = vmatprep.subr.mxu0 0.0
    %3276 = vmatpush1.msra.mxu0 %v2667
    %3277 = vmatprep.subr.mxu0 0.0
    %3278 = vmatpush1.msra.mxu0 %v2668
    %3279 = vmatprep.subr.mxu0 0.0
    %3280 = vmatpush1.msra.mxu0 %v2669
    %3281 = vmatprep.subr.mxu0 0.0
    %3282 = vmatpush1.msra.mxu0 %v2670
    %3283 = vmatprep.subr.mxu0 0.0
    %3284 = vmatpush1.msra.mxu0 0.0
    %3285 = vmatprep.subr.mxu0 0.0
    %3286 = vmatpush1.msra.mxu0 0.0
    %3287 = vmatprep.subr.mxu0 0.0
    %3288 = vmatpush1.msra.mxu0 0.0
    %3289 = vmatprep.subr.mxu0 0.0
    %3290 = vmatpush1.msra.mxu0 0.0
    %3291 = vmatprep.subr.mxu0 0.0
    %3292 = vmatpush1.msra.mxu0 0.0
    %3293 = vmatprep.subr.mxu0 0.0
    %3294 = vmatpush1.msra.mxu0 0.0
    %3295 = vmatprep.subr.mxu0 0.0
    %3296 = vmatpush1.msra.mxu0 0.0
    %3297 = vmatprep.subr.mxu0 0.0
    %3298 = vmatpush1.msra.mxu0 0.0
    %3299 = vmatprep.subr.mxu0 0.0
    %3300 = vmatpush1.msra.mxu0 0.0
    %3301 = vmatprep.subr.mxu0 0.0
    %3302 = vmatpush1.msra.mxu0 0.0
    %3303 = vmatprep.subr.mxu0 0.0
    %3304 = vmatpush1.msra.mxu0 0.0
    %3305 = vmatprep.subr.mxu0 0.0
    %3306 = vmatpush1.msra.mxu0 0.0
    %3307 = vmatprep.subr.mxu0 0.0
    %3308 = vmatpush1.msra.mxu0 0.0
    %3309 = vmatprep.subr.mxu0 0.0
    %3310 = vmatpush1.msra.mxu0 0.0
    %3311 = vmatprep.subr.mxu0 0.0
    %3312 = vmatpush1.msra.mxu0 0.0
    %3313 = vmatprep.subr.mxu0 0.0
    %3314 = vmatpush1.msra.mxu0 0.0
    %3315 = vmatprep.mubr.f32.mxu0 0.0
    %3316 = vmatmul.mubr.f32.gmra.mrb[0].mxu0 %v3249
    %v3317 = vpop.f32.mrb[0].mxu0
    %v3318 = vadd.f32 0.0, %v3317
    %v3319 = vpop.f32.mrb[0].mxu0
    %3320 = vdwg.mxu0
    %v3322 = vrot.slane %v3318, 3
    %v3324 = vadd.f32 %v3248, %v3322
    %v3325 = vtanh.pop %v3324
    %v3327 = vcombine.high %v3325, %v3325
    %v3329 = vunpack.c.l.s4 1966171168
    %v3330 = vunpack.c.0.s8 %v3329
    %v3331 = vlaneseq
    %v3332 = vshrl.u32 %v3331, 7
    %v3333 = vsub.s32 %v3330, %v3332
    %v3334 = vrot.slane %v3327, %v3333
    %v3335 = vcombine.high %v3334, %v3334
    %v3337 = vunpack.c.l.s4 1966171168
    %v3338 = vunpack.c.0.s8 %v3337
    %v3339 = vlaneseq
    %v3340 = vshrl.u32 %v3339, 7
    %v3341 = vsub.s32 %v3338, %v3340
    %v3342 = vrot.slane %v3334, %v3341
    %v3344 = vunpack.c.l.s4 1966171168
    %v3345 = vunpack.c.0.s8 %v3344
    %v3346 = vlaneseq
    %v3347 = vshrl.u32 %v3346, 7
    %v3348 = vsub.s32 %v3345, %v3347
    %v3349 = vrot.slane %v3335, %v3348
    %v3350 = vcombine.high %v3342, %v3342
    %3353 = vst.msk [vmem:[#allocation3 + $0x5] sm:$0x1] %vm1722, %v3349
    %3354 = vst.msk [vmem:[#allocation3 + $0x15] sm:$0x1] %vm1722, %v3350
    %3355 = vst.msk [vmem:[#allocation3 + $0xa] sm:$0x1] %vm1725, %v3349
    %3356 = vst.msk [vmem:[#allocation3 + $0x1a] sm:$0x1] %vm1725, %v3350
    %v3357 = vsel %vm2306, %v2673, %v2637
    %v3359 = vsel %vm2306, %v2899, %v2898
    %v3361 = vsel %vm1623, %v3357, %v3359
    %v3362 = vrot.slane %v3325, 5
    %3364 = vmatprep.subr.mxu0 0.0
    %3365 = vmatpush1.msra.mxu0 %v2655
    %3366 = vmatprep.subr.mxu0 0.0
    %3367 = vmatpush1.msra.mxu0 %v2656
    %3368 = vmatprep.subr.mxu0 0.0
    %3369 = vmatpush1.msra.mxu0 %v2657
    %3370 = vmatprep.subr.mxu0 0.0
    %3371 = vmatpush1.msra.mxu0 %v2658
    %3372 = vmatprep.subr.mxu0 0.0
    %3373 = vmatpush1.msra.mxu0 %v2659
    %3374 = vmatprep.subr.mxu0 0.0
    %3375 = vmatpush1.msra.mxu0 %v2660
    %3376 = vmatprep.subr.mxu0 0.0
    %3377 = vmatpush1.msra.mxu0 %v2661
    %3378 = vmatprep.subr.mxu0 0.0
    %3379 = vmatpush1.msra.mxu0 %v2662
    %3380 = vmatprep.subr.mxu0 0.0
    %3381 = vmatpush1.msra.mxu0 %v2663
    %3382 = vmatprep.subr.mxu0 0.0
    %3383 = vmatpush1.msra.mxu0 %v2664
    %3384 = vmatprep.subr.mxu0 0.0
    %3385 = vmatpush1.msra.mxu0 %v2665
    %3386 = vmatprep.subr.mxu0 0.0
    %3387 = vmatpush1.msra.mxu0 %v2666
    %3388 = vmatprep.subr.mxu0 0.0
    %3389 = vmatpush1.msra.mxu0 %v2667
    %3390 = vmatprep.subr.mxu0 0.0
    %3391 = vmatpush1.msra.mxu0 %v2668
    %3392 = vmatprep.subr.mxu0 0.0
    %3393 = vmatpush1.msra.mxu0 %v2669
    %3394 = vmatprep.subr.mxu0 0.0
    %3395 = vmatpush1.msra.mxu0 %v2670
    %3396 = vmatprep.subr.mxu0 0.0
    %3397 = vmatpush1.msra.mxu0 0.0
    %3398 = vmatprep.subr.mxu0 0.0
    %3399 = vmatpush1.msra.mxu0 0.0
    %3400 = vmatprep.subr.mxu0 0.0
    %3401 = vmatpush1.msra.mxu0 0.0
    %3402 = vmatprep.subr.mxu0 0.0
    %3403 = vmatpush1.msra.mxu0 0.0
    %3404 = vmatprep.subr.mxu0 0.0
    %3405 = vmatpush1.msra.mxu0 0.0
    %3406 = vmatprep.subr.mxu0 0.0
    %3407 = vmatpush1.msra.mxu0 0.0
    %3408 = vmatprep.subr.mxu0 0.0
    %3409 = vmatpush1.msra.mxu0 0.0
    %3410 = vmatprep.subr.mxu0 0.0
    %3411 = vmatpush1.msra.mxu0 0.0
    %3412 = vmatprep.subr.mxu0 0.0
    %3413 = vmatpush1.msra.mxu0 0.0
    %3414 = vmatprep.subr.mxu0 0.0
    %3415 = vmatpush1.msra.mxu0 0.0
    %3416 = vmatprep.subr.mxu0 0.0
    %3417 = vmatpush1.msra.mxu0 0.0
    %3418 = vmatprep.subr.mxu0 0.0
    %3419 = vmatpush1.msra.mxu0 0.0
    %3420 = vmatprep.subr.mxu0 0.0
    %3421 = vmatpush1.msra.mxu0 0.0
    %3422 = vmatprep.subr.mxu0 0.0
    %3423 = vmatpush1.msra.mxu0 0.0
    %3424 = vmatprep.subr.mxu0 0.0
    %3425 = vmatpush1.msra.mxu0 0.0
    %3426 = vmatprep.subr.mxu0 0.0
    %3427 = vmatpush1.msra.mxu0 0.0
    %3428 = vmatprep.mubr.f32.mxu0 0.0
    %3429 = vmatmul.mubr.f32.gmra.mrb[0].mxu0 %v3362
    %v3430 = vpop.f32.mrb[0].mxu0
    %v3431 = vadd.f32 0.0, %v3430
    %v3432 = vpop.f32.mrb[0].mxu0
    %3433 = vdwg.mxu0
    %v3435 = vrot.slane %v3431, 2
    %v3437 = vadd.f32 %v3361, %v3435
    %v3438 = vtanh.pop %v3437
    %v3440 = vcombine.high %v3438, %v3438
    %v3442 = vunpack.c.l.s4 1966171168
    %v3443 = vunpack.c.0.s8 %v3442
    %v3444 = vlaneseq
    %v3445 = vshrl.u32 %v3444, 7
    %v3446 = vsub.s32 %v3443, %v3445
    %v3447 = vrot.slane %v3440, %v3446
    %v3448 = vcombine.high %v3447, %v3447
    %v3450 = vunpack.c.l.s4 1966171168
    %v3451 = vunpack.c.0.s8 %v3450
    %v3452 = vlaneseq
    %v3453 = vshrl.u32 %v3452, 7
    %v3454 = vsub.s32 %v3451, %v3453
    %v3455 = vrot.slane %v3447, %v3454
    %v3457 = vunpack.c.l.s4 1966171168
    %v3458 = vunpack.c.0.s8 %v3457
    %v3459 = vlaneseq
    %v3460 = vshrl.u32 %v3459, 7
    %v3461 = vsub.s32 %v3458, %v3460
    %v3462 = vrot.slane %v3448, %v3461
    %v3463 = vcombine.high %v3455, %v3455
    %v3464 = vcombine.high %v3462, %v3462
    %3467 = vst.msk [vmem:[#allocation3 + $0x6] sm:$0x1] %vm1722, %v3463
    %3468 = vst.msk [vmem:[#allocation3 + $0x16] sm:$0x1] %vm1722, %v3464
    %3469 = vst.msk [vmem:[#allocation3 + $0x9] sm:$0x1] %vm1725, %v3463
    %3470 = vst.msk [vmem:[#allocation3 + $0x19] sm:$0x1] %vm1725, %v3464
    %v3475 = vsel %vm1623, %v2637, %v3013
    %v3476 = vsel %vm1623, %v2673, %v2652
    %v3477 = vrot.slane %v3438, 6
    %3479 = vmatprep.subr.mxu0 0.0
    %3480 = vmatpush1.msra.mxu0 %v2655
    %3481 = vmatprep.subr.mxu0 0.0
    %3482 = vmatpush1.msra.mxu0 %v2656
    %3483 = vmatprep.subr.mxu0 0.0
    %3484 = vmatpush1.msra.mxu0 %v2657
    %3485 = vmatprep.subr.mxu0 0.0
    %3486 = vmatpush1.msra.mxu0 %v2658
    %3487 = vmatprep.subr.mxu0 0.0
    %3488 = vmatpush1.msra.mxu0 %v2659
    %3489 = vmatprep.subr.mxu0 0.0
    %3490 = vmatpush1.msra.mxu0 %v2660
    %3491 = vmatprep.subr.mxu0 0.0
    %3492 = vmatpush1.msra.mxu0 %v2661
    %3493 = vmatprep.subr.mxu0 0.0
    %3494 = vmatpush1.msra.mxu0 %v2662
    %3495 = vmatprep.subr.mxu0 0.0
    %3496 = vmatpush1.msra.mxu0 %v2663
    %3497 = vmatprep.subr.mxu0 0.0
    %3498 = vmatpush1.msra.mxu0 %v2664
    %3499 = vmatprep.subr.mxu0 0.0
    %3500 = vmatpush1.msra.mxu0 %v2665
    %3501 = vmatprep.subr.mxu0 0.0
    %3502 = vmatpush1.msra.mxu0 %v2666
    %3503 = vmatprep.subr.mxu0 0.0
    %3504 = vmatpush1.msra.mxu0 %v2667
    %3505 = vmatprep.subr.mxu0 0.0
    %3506 = vmatpush1.msra.mxu0 %v2668
    %3507 = vmatprep.subr.mxu0 0.0
    %3508 = vmatpush1.msra.mxu0 %v2669
    %3509 = vmatprep.subr.mxu0 0.0
    %3510 = vmatpush1.msra.mxu0 %v2670
    %3511 = vmatprep.subr.mxu0 0.0
    %3512 = vmatpush1.msra.mxu0 0.0
    %3513 = vmatprep.subr.mxu0 0.0
    %3514 = vmatpush1.msra.mxu0 0.0
    %3515 = vmatprep.subr.mxu0 0.0
    %3516 = vmatpush1.msra.mxu0 0.0
    %3517 = vmatprep.subr.mxu0 0.0
    %3518 = vmatpush1.msra.mxu0 0.0
    %3519 = vmatprep.subr.mxu0 0.0
    %3520 = vmatpush1.msra.mxu0 0.0
    %3521 = vmatprep.subr.mxu0 0.0
    %3522 = vmatpush1.msra.mxu0 0.0
    %3523 = vmatprep.subr.mxu0 0.0
    %3524 = vmatpush1.msra.mxu0 0.0
    %3525 = vmatprep.subr.mxu0 0.0
    %3526 = vmatpush1.msra.mxu0 0.0
    %3527 = vmatprep.subr.mxu0 0.0
    %3528 = vmatpush1.msra.mxu0 0.0
    %3529 = vmatprep.subr.mxu0 0.0
    %3530 = vmatpush1.msra.mxu0 0.0
    %3531 = vmatprep.subr.mxu0 0.0
    %3532 = vmatpush1.msra.mxu0 0.0
    %3533 = vmatprep.subr.mxu0 0.0
    %3534 = vmatpush1.msra.mxu0 0.0
    %3535 = vmatprep.subr.mxu0 0.0
    %3536 = vmatpush1.msra.mxu0 0.0
    %3537 = vmatprep.subr.mxu0 0.0
    %3538 = vmatpush1.msra.mxu0 0.0
    %3539 = vmatprep.subr.mxu0 0.0
    %3540 = vmatpush1.msra.mxu0 0.0
    %3541 = vmatprep.subr.mxu0 0.0
    %3542 = vmatpush1.msra.mxu0 0.0
    %3543 = vmatprep.mubr.f32.mxu0 0.0
    %3544 = vmatmul.mubr.f32.gmra.mrb[0].mxu0 %v3477
    %v3545 = vpop.f32.mrb[0].mxu0
    %v3546 = vadd.f32 0.0, %v3545
    %v3547 = vpop.f32.mrb[0].mxu0
    %3548 = vdwg.mxu0
    %v3550 = vrot.slane %v3546, 1
    %v3552 = vadd.f32 %v3475, %v3550
    %v3553 = vadd.f32 %v3476, %v3550
    %v3554 = vtanh.pop %v3552
    %v3555 = vtanh.pop %v3553
    %v3558 = vcombine.high %v3554, %v3554
    %v3560 = vunpack.c.l.s4 1966171168
    %v3561 = vunpack.c.0.s8 %v3560
    %v3562 = vlaneseq
    %v3563 = vshrl.u32 %v3562, 7
    %v3564 = vsub.s32 %v3561, %v3563
    %v3565 = vrot.slane %v3558, %v3564
    %v3566 = vcombine.high %v3565, %v3565
    %v3568 = vunpack.c.l.s4 1966171168
    %v3569 = vunpack.c.0.s8 %v3568
    %v3570 = vlaneseq
    %v3571 = vshrl.u32 %v3570, 7
    %v3572 = vsub.s32 %v3569, %v3571
    %v3573 = vrot.slane %v3566, %v3572
    %v3574 = vcombine.high %v3573, %v3573
    %v3576 = vunpack.c.l.s4 1966171168
    %v3577 = vunpack.c.0.s8 %v3576
    %v3578 = vlaneseq
    %v3579 = vshrl.u32 %v3578, 7
    %v3580 = vsub.s32 %v3577, %v3579
    %v3581 = vrot.slane %v3555, %v3580
    %v3583 = vunpack.c.l.s4 1966171168
    %v3584 = vunpack.c.0.s8 %v3583
    %v3585 = vlaneseq
    %v3586 = vshrl.u32 %v3585, 7
    %v3587 = vsub.s32 %v3584, %v3586
    %v3588 = vrot.slane %v3581, %v3587
    %3591 = vst.msk [vmem:[#allocation3 + $0x7] sm:$0x1] %vm1722, %v3574
    %3592 = vst.msk [vmem:[#allocation3 + $0x17] sm:$0x1] %vm1722, %v3588
    %3593 = vst.msk [vmem:[#allocation3 + $0x8] sm:$0x1] %vm1725, %v3574
    %3594 = vst.msk [vmem:[#allocation3 + $0x18] sm:$0x1] %vm1725, %v3588
    %v3595 = vrot.slane %v2652, 7
    %v3596 = vsel %vm1616, %v3595, %v2642
    %v3598 = vrot.slane %v2637, 7
    %v3599 = vrot.slane %v2647, 6
    %v3600 = vsel %vm1616, %v3599, %v3598
    %v3602 = vsel %vm1623, %v3596, %v3600
    %vm3603 = vcmask 1040384
    %v3604 = vrot.slane %v3554, 7
    %v3605 = vrot.slane %v3555, 7
    %v3606 = vsel %vm3603, %v3604, %v3605
    %3608 = vmatprep.subr.mxu0 0.0
    %3609 = vmatpush1.msra.mxu0 %v2655
    %3610 = vmatprep.subr.mxu0 0.0
    %3611 = vmatpush1.msra.mxu0 %v2656
    %3612 = vmatprep.subr.mxu0 0.0
    %3613 = vmatpush1.msra.mxu0 %v2657
    %3614 = vmatprep.subr.mxu0 0.0
    %3615 = vmatpush1.msra.mxu0 %v2658
    %3616 = vmatprep.subr.mxu0 0.0
    %3617 = vmatpush1.msra.mxu0 %v2659
    %3618 = vmatprep.subr.mxu0 0.0
    %3619 = vmatpush1.msra.mxu0 %v2660
    %3620 = vmatprep.subr.mxu0 0.0
    %3621 = vmatpush1.msra.mxu0 %v2661
    %3622 = vmatprep.subr.mxu0 0.0
    %3623 = vmatpush1.msra.mxu0 %v2662
    %3624 = vmatprep.subr.mxu0 0.0
    %3625 = vmatpush1.msra.mxu0 %v2663
    %3626 = vmatprep.subr.mxu0 0.0
    %3627 = vmatpush1.msra.mxu0 %v2664
    %3628 = vmatprep.subr.mxu0 0.0
    %3629 = vmatpush1.msra.mxu0 %v2665
    %3630 = vmatprep.subr.mxu0 0.0
    %3631 = vmatpush1.msra.mxu0 %v2666
    %3632 = vmatprep.subr.mxu0 0.0
    %3633 = vmatpush1.msra.mxu0 %v2667
    %3634 = vmatprep.subr.mxu0 0.0
    %3635 = vmatpush1.msra.mxu0 %v2668
    %3636 = vmatprep.subr.mxu0 0.0
    %3637 = vmatpush1.msra.mxu0 %v2669
    %3638 = vmatprep.subr.mxu0 0.0
    %3639 = vmatpush1.msra.mxu0 %v2670
    %3640 = vmatprep.subr.mxu0 0.0
    %3641 = vmatpush1.msra.mxu0 0.0
    %3642 = vmatprep.subr.mxu0 0.0
    %3643 = vmatpush1.msra.mxu0 0.0
    %3644 = vmatprep.subr.mxu0 0.0
    %3645 = vmatpush1.msra.mxu0 0.0
    %3646 = vmatprep.subr.mxu0 0.0
    %3647 = vmatpush1.msra.mxu0 0.0
    %3648 = vmatprep.subr.mxu0 0.0
    %3649 = vmatpush1.msra.mxu0 0.0
    %3650 = vmatprep.subr.mxu0 0.0
    %3651 = vmatpush1.msra.mxu0 0.0
    %3652 = vmatprep.subr.mxu0 0.0
    %3653 = vmatpush1.msra.mxu0 0.0
    %3654 = vmatprep.subr.mxu0 0.0
    %3655 = vmatpush1.msra.mxu0 0.0
    %3656 = vmatprep.subr.mxu0 0.0
    %3657 = vmatpush1.msra.mxu0 0.0
    %3658 = vmatprep.subr.mxu0 0.0
    %3659 = vmatpush1.msra.mxu0 0.0
    %3660 = vmatprep.subr.mxu0 0.0
    %3661 = vmatpush1.msra.mxu0 0.0
    %3662 = vmatprep.subr.mxu0 0.0
    %3663 = vmatpush1.msra.mxu0 0.0
    %3664 = vmatprep.subr.mxu0 0.0
    %3665 = vmatpush1.msra.mxu0 0.0
    %3666 = vmatprep.subr.mxu0 0.0
    %3667 = vmatpush1.msra.mxu0 0.0
    %3668 = vmatprep.subr.mxu0 0.0
    %3669 = vmatpush1.msra.mxu0 0.0
    %3670 = vmatprep.subr.mxu0 0.0
    %3671 = vmatpush1.msra.mxu0 0.0
    %3672 = vmatprep.mubr.f32.mxu0 0.0
    %3673 = vmatmul.mubr.f32.gmra.mrb[0].mxu0 %v3606
    %v3674 = vpop.f32.mrb[0].mxu0
    %v3675 = vadd.f32 0.0, %v3674
    %v3676 = vpop.f32.mrb[0].mxu0
    %3677 = vdwg.mxu0
    %v3678 = vadd.f32 %v3602, %v3675
    %v3679 = vtanh.pop %v3678
    %v3682 = vunpack.c.l.s4 1966171168
    %v3683 = vunpack.c.0.s8 %v3682
    %v3684 = vlaneseq
    %v3685 = vshrl.u32 %v3684, 7
    %v3686 = vsub.s32 %v3683, %v3685
    %v3687 = vrot.slane %v3679, %v3686
    %v3688 = vcombine.high %v3687, %v3687
    %v3690 = vunpack.c.l.s4 1966171168
    %v3691 = vunpack.c.0.s8 %v3690
    %v3692 = vlaneseq
    %v3693 = vshrl.u32 %v3692, 7
    %v3694 = vsub.s32 %v3691, %v3693
    %v3695 = vrot.slane %v3687, %v3694
    %v3697 = vunpack.c.l.s4 1966171168
    %v3698 = vunpack.c.0.s8 %v3697
    %v3699 = vlaneseq
    %v3700 = vshrl.u32 %v3699, 7
    %v3701 = vsub.s32 %v3698, %v3700
    %v3702 = vrot.slane %v3688, %v3701
    %3705 = vst.msk [vmem:[#allocation3 + $0x8] sm:$0x1] %vm1722, %v3695
    %3706 = vst.msk [vmem:[#allocation3 + $0x18] sm:$0x1] %vm1722, %v3702
    %3707 = vst.msk [vmem:[#allocation3 + $0x7] sm:$0x1] %vm1725, %v3695
    %3708 = vst.msk [vmem:[#allocation3 + $0x17] sm:$0x1] %vm1725, %v3702
    %v3709 = vsel %vm1728, %v3595, %v2642
    %v3711 = vrot.slane %v2637, 5
    %v3712 = vrot.slane %v2647, 4
    %v3713 = vsel %vm1728, %v3712, %v3711
    %v3715 = vsel %vm1623, %v3709, %v3713
    %3716 = vmatprep.subr.mxu0 0.0
    %3717 = vmatpush1.msra.mxu0 %v2655
    %3718 = vmatprep.subr.mxu0 0.0
    %3719 = vmatpush1.msra.mxu0 %v2656
    %3720 = vmatprep.subr.mxu0 0.0
    %3721 = vmatpush1.msra.mxu0 %v2657
    %3722 = vmatprep.subr.mxu0 0.0
    %3723 = vmatpush1.msra.mxu0 %v2658
    %3724 = vmatprep.subr.mxu0 0.0
    %3725 = vmatpush1.msra.mxu0 %v2659
    %3726 = vmatprep.subr.mxu0 0.0
    %3727 = vmatpush1.msra.mxu0 %v2660
    %3728 = vmatprep.subr.mxu0 0.0
    %3729 = vmatpush1.msra.mxu0 %v2661
    %3730 = vmatprep.subr.mxu0 0.0
    %3731 = vmatpush1.msra.mxu0 %v2662
    %3732 = vmatprep.subr.mxu0 0.0
    %3733 = vmatpush1.msra.mxu0 %v2663
    %3734 = vmatprep.subr.mxu0 0.0
    %3735 = vmatpush1.msra.mxu0 %v2664
    %3736 = vmatprep.subr.mxu0 0.0
    %3737 = vmatpush1.msra.mxu0 %v2665
    %3738 = vmatprep.subr.mxu0 0.0
    %3739 = vmatpush1.msra.mxu0 %v2666
    %3740 = vmatprep.subr.mxu0 0.0
    %3741 = vmatpush1.msra.mxu0 %v2667
    %3742 = vmatprep.subr.mxu0 0.0
    %3743 = vmatpush1.msra.mxu0 %v2668
    %3744 = vmatprep.subr.mxu0 0.0
    %3745 = vmatpush1.msra.mxu0 %v2669
    %3746 = vmatprep.subr.mxu0 0.0
    %3747 = vmatpush1.msra.mxu0 %v2670
    %3748 = vmatprep.subr.mxu0 0.0
    %3749 = vmatpush1.msra.mxu0 0.0
    %3750 = vmatprep.subr.mxu0 0.0
    %3751 = vmatpush1.msra.mxu0 0.0
    %3752 = vmatprep.subr.mxu0 0.0
    %3753 = vmatpush1.msra.mxu0 0.0
    %3754 = vmatprep.subr.mxu0 0.0
    %3755 = vmatpush1.msra.mxu0 0.0
    %3756 = vmatprep.subr.mxu0 0.0
    %3757 = vmatpush1.msra.mxu0 0.0
    %3758 = vmatprep.subr.mxu0 0.0
    %3759 = vmatpush1.msra.mxu0 0.0
    %3760 = vmatprep.subr.mxu0 0.0
    %3761 = vmatpush1.msra.mxu0 0.0
    %3762 = vmatprep.subr.mxu0 0.0
    %3763 = vmatpush1.msra.mxu0 0.0
    %3764 = vmatprep.subr.mxu0 0.0
    %3765 = vmatpush1.msra.mxu0 0.0
    %3766 = vmatprep.subr.mxu0 0.0
    %3767 = vmatpush1.msra.mxu0 0.0
    %3768 = vmatprep.subr.mxu0 0.0
    %3769 = vmatpush1.msra.mxu0 0.0
    %3770 = vmatprep.subr.mxu0 0.0
    %3771 = vmatpush1.msra.mxu0 0.0
    %3772 = vmatprep.subr.mxu0 0.0
    %3773 = vmatpush1.msra.mxu0 0.0
    %3774 = vmatprep.subr.mxu0 0.0
    %3775 = vmatpush1.msra.mxu0 0.0
    %3776 = vmatprep.subr.mxu0 0.0
    %3777 = vmatpush1.msra.mxu0 0.0
    %3778 = vmatprep.subr.mxu0 0.0
    %3779 = vmatpush1.msra.mxu0 0.0
    %3780 = vmatprep.mubr.f32.mxu0 0.0
    %3781 = vmatmul.mubr.f32.gmra.mrb[0].mxu0 %v3679
    %v3782 = vpop.f32.mrb[0].mxu0
    %v3783 = vadd.f32 0.0, %v3782
    %v3784 = vpop.f32.mrb[0].mxu0
    %3785 = vdwg.mxu0
    %v3787 = vrot.slane %v3783, 7
    %v3789 = vadd.f32 %v3715, %v3787
    %v3790 = vtanh.pop %v3789
    %v3793 = vunpack.c.l.s4 1966171168
    %v3794 = vunpack.c.0.s8 %v3793
    %v3795 = vlaneseq
    %v3796 = vshrl.u32 %v3795, 7
    %v3797 = vsub.s32 %v3794, %v3796
    %v3798 = vrot.slane %v3790, %v3797
    %v3799 = vcombine.high %v3798, %v3798
    %v3801 = vunpack.c.l.s4 1966171168
    %v3802 = vunpack.c.0.s8 %v3801
    %v3803 = vlaneseq
    %v3804 = vshrl.u32 %v3803, 7
    %v3805 = vsub.s32 %v3802, %v3804
    %v3806 = vrot.slane %v3798, %v3805
    %v3808 = vunpack.c.l.s4 1966171168
    %v3809 = vunpack.c.0.s8 %v3808
    %v3810 = vlaneseq
    %v3811 = vshrl.u32 %v3810, 7
    %v3812 = vsub.s32 %v3809, %v3811
    %v3813 = vrot.slane %v3799, %v3812
    %v3814 = vcombine.high %v3806, %v3806
    %3817 = vst.msk [vmem:[#allocation3 + $0x9] sm:$0x1] %vm1722, %v3813
    %3818 = vst.msk [vmem:[#allocation3 + $0x19] sm:$0x1] %vm1722, %v3814
    %3819 = vst.msk [vmem:[#allocation3 + $0x6] sm:$0x1] %vm1725, %v3813
    %3820 = vst.msk [vmem:[#allocation3 + $0x16] sm:$0x1] %vm1725, %v3814
    %v3821 = vsel %vm1841, %v3595, %v2642
    %v3823 = vrot.slane %v2637, 3
    %v3824 = vrot.slane %v2647, 2
    %v3825 = vsel %vm1841, %v3824, %v3823
    %v3827 = vsel %vm1623, %v3821, %v3825
    %v3828 = vrot.slane %v3790, 1
    %3830 = vmatprep.subr.mxu0 0.0
    %3831 = vmatpush1.msra.mxu0 %v2655
    %3832 = vmatprep.subr.mxu0 0.0
    %3833 = vmatpush1.msra.mxu0 %v2656
    %3834 = vmatprep.subr.mxu0 0.0
    %3835 = vmatpush1.msra.mxu0 %v2657
    %3836 = vmatprep.subr.mxu0 0.0
    %3837 = vmatpush1.msra.mxu0 %v2658
    %3838 = vmatprep.subr.mxu0 0.0
    %3839 = vmatpush1.msra.mxu0 %v2659
    %3840 = vmatprep.subr.mxu0 0.0
    %3841 = vmatpush1.msra.mxu0 %v2660
    %3842 = vmatprep.subr.mxu0 0.0
    %3843 = vmatpush1.msra.mxu0 %v2661
    %3844 = vmatprep.subr.mxu0 0.0
    %3845 = vmatpush1.msra.mxu0 %v2662
    %3846 = vmatprep.subr.mxu0 0.0
    %3847 = vmatpush1.msra.mxu0 %v2663
    %3848 = vmatprep.subr.mxu0 0.0
    %3849 = vmatpush1.msra.mxu0 %v2664
    %3850 = vmatprep.subr.mxu0 0.0
    %3851 = vmatpush1.msra.mxu0 %v2665
    %3852 = vmatprep.subr.mxu0 0.0
    %3853 = vmatpush1.msra.mxu0 %v2666
    %3854 = vmatprep.subr.mxu0 0.0
    %3855 = vmatpush1.msra.mxu0 %v2667
    %3856 = vmatprep.subr.mxu0 0.0
    %3857 = vmatpush1.msra.mxu0 %v2668
    %3858 = vmatprep.subr.mxu0 0.0
    %3859 = vmatpush1.msra.mxu0 %v2669
    %3860 = vmatprep.subr.mxu0 0.0
    %3861 = vmatpush1.msra.mxu0 %v2670
    %3862 = vmatprep.subr.mxu0 0.0
    %3863 = vmatpush1.msra.mxu0 0.0
    %3864 = vmatprep.subr.mxu0 0.0
    %3865 = vmatpush1.msra.mxu0 0.0
    %3866 = vmatprep.subr.mxu0 0.0
    %3867 = vmatpush1.msra.mxu0 0.0
    %3868 = vmatprep.subr.mxu0 0.0
    %3869 = vmatpush1.msra.mxu0 0.0
    %3870 = vmatprep.subr.mxu0 0.0
    %3871 = vmatpush1.msra.mxu0 0.0
    %3872 = vmatprep.subr.mxu0 0.0
    %3873 = vmatpush1.msra.mxu0 0.0
    %3874 = vmatprep.subr.mxu0 0.0
    %3875 = vmatpush1.msra.mxu0 0.0
    %3876 = vmatprep.subr.mxu0 0.0
    %3877 = vmatpush1.msra.mxu0 0.0
    %3878 = vmatprep.subr.mxu0 0.0
    %3879 = vmatpush1.msra.mxu0 0.0
    %3880 = vmatprep.subr.mxu0 0.0
    %3881 = vmatpush1.msra.mxu0 0.0
    %3882 = vmatprep.subr.mxu0 0.0
    %3883 = vmatpush1.msra.mxu0 0.0
    %3884 = vmatprep.subr.mxu0 0.0
    %3885 = vmatpush1.msra.mxu0 0.0
    %3886 = vmatprep.subr.mxu0 0.0
    %3887 = vmatpush1.msra.mxu0 0.0
    %3888 = vmatprep.subr.mxu0 0.0
    %3889 = vmatpush1.msra.mxu0 0.0
    %3890 = vmatprep.subr.mxu0 0.0
    %3891 = vmatpush1.msra.mxu0 0.0
    %3892 = vmatprep.subr.mxu0 0.0
    %3893 = vmatpush1.msra.mxu0 0.0
    %3894 = vmatprep.mubr.f32.mxu0 0.0
    %3895 = vmatmul.mubr.f32.gmra.mrb[0].mxu0 %v3828
    %v3896 = vpop.f32.mrb[0].mxu0
    %v3897 = vadd.f32 0.0, %v3896
    %v3898 = vpop.f32.mrb[0].mxu0
    %3899 = vdwg.mxu0
    %v3901 = vrot.slane %v3897, 6
    %v3903 = vadd.f32 %v3827, %v3901
    %v3904 = vtanh.pop %v3903
    %v3907 = vunpack.c.l.s4 1966171168
    %v3908 = vunpack.c.0.s8 %v3907
    %v3909 = vlaneseq
    %v3910 = vshrl.u32 %v3909, 7
    %v3911 = vsub.s32 %v3908, %v3910
    %v3912 = vrot.slane %v3904, %v3911
    %v3913 = vcombine.high %v3912, %v3912
    %v3915 = vunpack.c.l.s4 1966171168
    %v3916 = vunpack.c.0.s8 %v3915
    %v3917 = vlaneseq
    %v3918 = vshrl.u32 %v3917, 7
    %v3919 = vsub.s32 %v3916, %v3918
    %v3920 = vrot.slane %v3912, %v3919
    %v3922 = vunpack.c.l.s4 1966171168
    %v3923 = vunpack.c.0.s8 %v3922
    %v3924 = vlaneseq
    %v3925 = vshrl.u32 %v3924, 7
    %v3926 = vsub.s32 %v3923, %v3925
    %v3927 = vrot.slane %v3913, %v3926
    %v3928 = vcombine.high %v3920, %v3920
    %v3929 = vcombine.high %v3927, %v3927
    %3932 = vst.msk [vmem:[#allocation3 + $0xa] sm:$0x1] %vm1722, %v3928
    %3933 = vst.msk [vmem:[#allocation3 + $0x1a] sm:$0x1] %vm1722, %v3929
    %3934 = vst.msk [vmem:[#allocation3 + $0x5] sm:$0x1] %vm1725, %v3928
    %3935 = vst.msk [vmem:[#allocation3 + $0x15] sm:$0x1] %vm1725, %v3929
    %v3936 = vsel %vm1957, %v3595, %v2642
    %v3938 = vrot.slane %v2637, 1
    %v3939 = vsel %vm1957, %v2647, %v3938
    %v3941 = vsel %vm1623, %v3936, %v3939
    %v3942 = vrot.slane %v3904, 2
    %3944 = vmatprep.subr.mxu0 0.0
    %3945 = vmatpush1.msra.mxu0 %v2655
    %3946 = vmatprep.subr.mxu0 0.0
    %3947 = vmatpush1.msra.mxu0 %v2656
    %3948 = vmatprep.subr.mxu0 0.0
    %3949 = vmatpush1.msra.mxu0 %v2657
    %3950 = vmatprep.subr.mxu0 0.0
    %3951 = vmatpush1.msra.mxu0 %v2658
    %3952 = vmatprep.subr.mxu0 0.0
    %3953 = vmatpush1.msra.mxu0 %v2659
    %3954 = vmatprep.subr.mxu0 0.0
    %3955 = vmatpush1.msra.mxu0 %v2660
    %3956 = vmatprep.subr.mxu0 0.0
    %3957 = vmatpush1.msra.mxu0 %v2661
    %3958 = vmatprep.subr.mxu0 0.0
    %3959 = vmatpush1.msra.mxu0 %v2662
    %3960 = vmatprep.subr.mxu0 0.0
    %3961 = vmatpush1.msra.mxu0 %v2663
    %3962 = vmatprep.subr.mxu0 0.0
    %3963 = vmatpush1.msra.mxu0 %v2664
    %3964 = vmatprep.subr.mxu0 0.0
    %3965 = vmatpush1.msra.mxu0 %v2665
    %3966 = vmatprep.subr.mxu0 0.0
    %3967 = vmatpush1.msra.mxu0 %v2666
    %3968 = vmatprep.subr.mxu0 0.0
    %3969 = vmatpush1.msra.mxu0 %v2667
    %3970 = vmatprep.subr.mxu0 0.0
    %3971 = vmatpush1.msra.mxu0 %v2668
    %3972 = vmatprep.subr.mxu0 0.0
    %3973 = vmatpush1.msra.mxu0 %v2669
    %3974 = vmatprep.subr.mxu0 0.0
    %3975 = vmatpush1.msra.mxu0 %v2670
    %3976 = vmatprep.subr.mxu0 0.0
    %3977 = vmatpush1.msra.mxu0 0.0
    %3978 = vmatprep.subr.mxu0 0.0
    %3979 = vmatpush1.msra.mxu0 0.0
    %3980 = vmatprep.subr.mxu0 0.0
    %3981 = vmatpush1.msra.mxu0 0.0
    %3982 = vmatprep.subr.mxu0 0.0
    %3983 = vmatpush1.msra.mxu0 0.0
    %3984 = vmatprep.subr.mxu0 0.0
    %3985 = vmatpush1.msra.mxu0 0.0
    %3986 = vmatprep.subr.mxu0 0.0
    %3987 = vmatpush1.msra.mxu0 0.0
    %3988 = vmatprep.subr.mxu0 0.0
    %3989 = vmatpush1.msra.mxu0 0.0
    %3990 = vmatprep.subr.mxu0 0.0
    %3991 = vmatpush1.msra.mxu0 0.0
    %3992 = vmatprep.subr.mxu0 0.0
    %3993 = vmatpush1.msra.mxu0 0.0
    %3994 = vmatprep.subr.mxu0 0.0
    %3995 = vmatpush1.msra.mxu0 0.0
    %3996 = vmatprep.subr.mxu0 0.0
    %3997 = vmatpush1.msra.mxu0 0.0
    %3998 = vmatprep.subr.mxu0 0.0
    %3999 = vmatpush1.msra.mxu0 0.0
    %4000 = vmatprep.subr.mxu0 0.0
    %4001 = vmatpush1.msra.mxu0 0.0
    %4002 = vmatprep.subr.mxu0 0.0
    %4003 = vmatpush1.msra.mxu0 0.0
    %4004 = vmatprep.subr.mxu0 0.0
    %4005 = vmatpush1.msra.mxu0 0.0
    %4006 = vmatprep.subr.mxu0 0.0
    %4007 = vmatpush1.msra.mxu0 0.0
    %4008 = vmatprep.mubr.f32.mxu0 0.0
    %4009 = vmatmul.mubr.f32.gmra.mrb[0].mxu0 %v3942
    %v4010 = vpop.f32.mrb[0].mxu0
    %v4011 = vadd.f32 0.0, %v4010
    %v4012 = vpop.f32.mrb[0].mxu0
    %4013 = vdwg.mxu0
    %v4015 = vrot.slane %v4011, 5
    %v4017 = vadd.f32 %v3941, %v4015
    %v4018 = vtanh.pop %v4017
    %v4020 = vcombine.high %v4018, %v4018
    %v4022 = vunpack.c.l.s4 1966171168
    %v4023 = vunpack.c.0.s8 %v4022
    %v4024 = vlaneseq
    %v4025 = vshrl.u32 %v4024, 7
    %v4026 = vsub.s32 %v4023, %v4025
    %v4027 = vrot.slane %v4018, %v4026
    %v4029 = vunpack.c.l.s4 1966171168
    %v4030 = vunpack.c.0.s8 %v4029
    %v4031 = vlaneseq
    %v4032 = vshrl.u32 %v4031, 7
    %v4033 = vsub.s32 %v4030, %v4032
    %v4034 = vrot.slane %v4020, %v4033
    %v4035 = vcombine.high %v4027, %v4027
    %v4037 = vunpack.c.l.s4 1966171168
    %v4038 = vunpack.c.0.s8 %v4037
    %v4039 = vlaneseq
    %v4040 = vshrl.u32 %v4039, 7
    %v4041 = vsub.s32 %v4038, %v4040
    %v4042 = vrot.slane %v4034, %v4041
    %v4044 = vunpack.c.l.s4 1966171168
    %v4045 = vunpack.c.0.s8 %v4044
    %v4046 = vlaneseq
    %v4047 = vshrl.u32 %v4046, 7
    %v4048 = vsub.s32 %v4045, %v4047
    %v4049 = vrot.slane %v4035, %v4048
    %v4050 = vcombine.high %v4049, %v4049
    %4053 = vst.msk [vmem:[#allocation3 + $0xb] sm:$0x1] %vm1722, %v4050
    %4054 = vst.msk [vmem:[#allocation3 + $0x1b] sm:$0x1] %vm1722, %v4042
    %4055 = vst.msk [vmem:[#allocation3 + $0x4] sm:$0x1] %vm1725, %v4050
    %4056 = vst.msk [vmem:[#allocation3 + $0x14] sm:$0x1] %vm1725, %v4042
    %v4057 = vsel %vm2079, %v3595, %v2642
    %v4059 = vsel %vm2079, %v3599, %v3598
    %v4061 = vsel %vm1623, %v4057, %v4059
    %v4062 = vrot.slane %v4018, 3
    %4064 = vmatprep.subr.mxu0 0.0
    %4065 = vmatpush1.msra.mxu0 %v2655
    %4066 = vmatprep.subr.mxu0 0.0
    %4067 = vmatpush1.msra.mxu0 %v2656
    %4068 = vmatprep.subr.mxu0 0.0
    %4069 = vmatpush1.msra.mxu0 %v2657
    %4070 = vmatprep.subr.mxu0 0.0
    %4071 = vmatpush1.msra.mxu0 %v2658
    %4072 = vmatprep.subr.mxu0 0.0
    %4073 = vmatpush1.msra.mxu0 %v2659
    %4074 = vmatprep.subr.mxu0 0.0
    %4075 = vmatpush1.msra.mxu0 %v2660
    %4076 = vmatprep.subr.mxu0 0.0
    %4077 = vmatpush1.msra.mxu0 %v2661
    %4078 = vmatprep.subr.mxu0 0.0
    %4079 = vmatpush1.msra.mxu0 %v2662
    %4080 = vmatprep.subr.mxu0 0.0
    %4081 = vmatpush1.msra.mxu0 %v2663
    %4082 = vmatprep.subr.mxu0 0.0
    %4083 = vmatpush1.msra.mxu0 %v2664
    %4084 = vmatprep.subr.mxu0 0.0
    %4085 = vmatpush1.msra.mxu0 %v2665
    %4086 = vmatprep.subr.mxu0 0.0
    %4087 = vmatpush1.msra.mxu0 %v2666
    %4088 = vmatprep.subr.mxu0 0.0
    %4089 = vmatpush1.msra.mxu0 %v2667
    %4090 = vmatprep.subr.mxu0 0.0
    %4091 = vmatpush1.msra.mxu0 %v2668
    %4092 = vmatprep.subr.mxu0 0.0
    %4093 = vmatpush1.msra.mxu0 %v2669
    %4094 = vmatprep.subr.mxu0 0.0
    %4095 = vmatpush1.msra.mxu0 %v2670
    %4096 = vmatprep.subr.mxu0 0.0
    %4097 = vmatpush1.msra.mxu0 0.0
    %4098 = vmatprep.subr.mxu0 0.0
    %4099 = vmatpush1.msra.mxu0 0.0
    %4100 = vmatprep.subr.mxu0 0.0
    %4101 = vmatpush1.msra.mxu0 0.0
    %4102 = vmatprep.subr.mxu0 0.0
    %4103 = vmatpush1.msra.mxu0 0.0
    %4104 = vmatprep.subr.mxu0 0.0
    %4105 = vmatpush1.msra.mxu0 0.0
    %4106 = vmatprep.subr.mxu0 0.0
    %4107 = vmatpush1.msra.mxu0 0.0
    %4108 = vmatprep.subr.mxu0 0.0
    %4109 = vmatpush1.msra.mxu0 0.0
    %4110 = vmatprep.subr.mxu0 0.0
    %4111 = vmatpush1.msra.mxu0 0.0
    %4112 = vmatprep.subr.mxu0 0.0
    %4113 = vmatpush1.msra.mxu0 0.0
    %4114 = vmatprep.subr.mxu0 0.0
    %4115 = vmatpush1.msra.mxu0 0.0
    %4116 = vmatprep.subr.mxu0 0.0
    %4117 = vmatpush1.msra.mxu0 0.0
    %4118 = vmatprep.subr.mxu0 0.0
    %4119 = vmatpush1.msra.mxu0 0.0
    %4120 = vmatprep.subr.mxu0 0.0
    %4121 = vmatpush1.msra.mxu0 0.0
    %4122 = vmatprep.subr.mxu0 0.0
    %4123 = vmatpush1.msra.mxu0 0.0
    %4124 = vmatprep.subr.mxu0 0.0
    %4125 = vmatpush1.msra.mxu0 0.0
    %4126 = vmatprep.subr.mxu0 0.0
    %4127 = vmatpush1.msra.mxu0 0.0
    %4128 = vmatprep.mubr.f32.mxu0 0.0
    %4129 = vmatmul.mubr.f32.gmra.mrb[0].mxu0 %v4062
    %v4130 = vpop.f32.mrb[0].mxu0
    %v4131 = vadd.f32 0.0, %v4130
    %v4132 = vpop.f32.mrb[0].mxu0
    %4133 = vdwg.mxu0
    %v4135 = vrot.slane %v4131, 4
    %v4137 = vadd.f32 %v4061, %v4135
    %v4138 = vtanh.pop %v4137
    %v4140 = vcombine.high %v4138, %v4138
    %v4142 = vunpack.c.l.s4 1966171168
    %v4143 = vunpack.c.0.s8 %v4142
    %v4144 = vlaneseq
    %v4145 = vshrl.u32 %v4144, 7
    %v4146 = vsub.s32 %v4143, %v4145
    %v4147 = vrot.slane %v4140, %v4146
    %v4148 = vcombine.high %v4147, %v4147
    %v4150 = vunpack.c.l.s4 1966171168
    %v4151 = vunpack.c.0.s8 %v4150
    %v4152 = vlaneseq
    %v4153 = vshrl.u32 %v4152, 7
    %v4154 = vsub.s32 %v4151, %v4153
    %v4155 = vrot.slane %v4147, %v4154
    %v4157 = vunpack.c.l.s4 1966171168
    %v4158 = vunpack.c.0.s8 %v4157
    %v4159 = vlaneseq
    %v4160 = vshrl.u32 %v4159, 7
    %v4161 = vsub.s32 %v4158, %v4160
    %v4162 = vrot.slane %v4148, %v4161
    %4165 = vst.msk [vmem:[#allocation3 + $0xc] sm:$0x1] %vm1722, %v4155
    %4166 = vst.msk [vmem:[#allocation3 + $0x1c] sm:$0x1] %vm1722, %v4162
    %4167 = vst.msk [vmem:[#allocation3 + $0x3] sm:$0x1] %vm1725, %v4155
    %4168 = vst.msk [vmem:[#allocation3 + $0x13] sm:$0x1] %vm1725, %v4162
    %v4169 = vsel %vm2192, %v3595, %v2642
    %v4171 = vsel %vm2192, %v3712, %v3711
    %v4173 = vsel %vm1623, %v4169, %v4171
    %v4174 = vrot.slane %v4138, 4
    %4176 = vmatprep.subr.mxu0 0.0
    %4177 = vmatpush1.msra.mxu0 %v2655
    %4178 = vmatprep.subr.mxu0 0.0
    %4179 = vmatpush1.msra.mxu0 %v2656
    %4180 = vmatprep.subr.mxu0 0.0
    %4181 = vmatpush1.msra.mxu0 %v2657
    %4182 = vmatprep.subr.mxu0 0.0
    %4183 = vmatpush1.msra.mxu0 %v2658
    %4184 = vmatprep.subr.mxu0 0.0
    %4185 = vmatpush1.msra.mxu0 %v2659
    %4186 = vmatprep.subr.mxu0 0.0
    %4187 = vmatpush1.msra.mxu0 %v2660
    %4188 = vmatprep.subr.mxu0 0.0
    %4189 = vmatpush1.msra.mxu0 %v2661
    %4190 = vmatprep.subr.mxu0 0.0
    %4191 = vmatpush1.msra.mxu0 %v2662
    %4192 = vmatprep.subr.mxu0 0.0
    %4193 = vmatpush1.msra.mxu0 %v2663
    %4194 = vmatprep.subr.mxu0 0.0
    %4195 = vmatpush1.msra.mxu0 %v2664
    %4196 = vmatprep.subr.mxu0 0.0
    %4197 = vmatpush1.msra.mxu0 %v2665
    %4198 = vmatprep.subr.mxu0 0.0
    %4199 = vmatpush1.msra.mxu0 %v2666
    %4200 = vmatprep.subr.mxu0 0.0
    %4201 = vmatpush1.msra.mxu0 %v2667
    %4202 = vmatprep.subr.mxu0 0.0
    %4203 = vmatpush1.msra.mxu0 %v2668
    %4204 = vmatprep.subr.mxu0 0.0
    %4205 = vmatpush1.msra.mxu0 %v2669
    %4206 = vmatprep.subr.mxu0 0.0
    %4207 = vmatpush1.msra.mxu0 %v2670
    %4208 = vmatprep.subr.mxu0 0.0
    %4209 = vmatpush1.msra.mxu0 0.0
    %4210 = vmatprep.subr.mxu0 0.0
    %4211 = vmatpush1.msra.mxu0 0.0
    %4212 = vmatprep.subr.mxu0 0.0
    %4213 = vmatpush1.msra.mxu0 0.0
    %4214 = vmatprep.subr.mxu0 0.0
    %4215 = vmatpush1.msra.mxu0 0.0
    %4216 = vmatprep.subr.mxu0 0.0
    %4217 = vmatpush1.msra.mxu0 0.0
    %4218 = vmatprep.subr.mxu0 0.0
    %4219 = vmatpush1.msra.mxu0 0.0
    %4220 = vmatprep.subr.mxu0 0.0
    %4221 = vmatpush1.msra.mxu0 0.0
    %4222 = vmatprep.subr.mxu0 0.0
    %4223 = vmatpush1.msra.mxu0 0.0
    %4224 = vmatprep.subr.mxu0 0.0
    %4225 = vmatpush1.msra.mxu0 0.0
    %4226 = vmatprep.subr.mxu0 0.0
    %4227 = vmatpush1.msra.mxu0 0.0
    %4228 = vmatprep.subr.mxu0 0.0
    %4229 = vmatpush1.msra.mxu0 0.0
    %4230 = vmatprep.subr.mxu0 0.0
    %4231 = vmatpush1.msra.mxu0 0.0
    %4232 = vmatprep.subr.mxu0 0.0
    %4233 = vmatpush1.msra.mxu0 0.0
    %4234 = vmatprep.subr.mxu0 0.0
    %4235 = vmatpush1.msra.mxu0 0.0
    %4236 = vmatprep.subr.mxu0 0.0
    %4237 = vmatpush1.msra.mxu0 0.0
    %4238 = vmatprep.subr.mxu0 0.0
    %4239 = vmatpush1.msra.mxu0 0.0
    %4240 = vmatprep.mubr.f32.mxu0 0.0
    %4241 = vmatmul.mubr.f32.gmra.mrb[0].mxu0 %v4174
    %v4242 = vpop.f32.mrb[0].mxu0
    %v4243 = vadd.f32 0.0, %v4242
    %v4244 = vpop.f32.mrb[0].mxu0
    %4245 = vdwg.mxu0
    %v4247 = vrot.slane %v4243, 3
    %v4249 = vadd.f32 %v4173, %v4247
    %v4250 = vtanh.pop %v4249
    %v4252 = vcombine.high %v4250, %v4250
    %v4254 = vunpack.c.l.s4 1966171168
    %v4255 = vunpack.c.0.s8 %v4254
    %v4256 = vlaneseq
    %v4257 = vshrl.u32 %v4256, 7
    %v4258 = vsub.s32 %v4255, %v4257
    %v4259 = vrot.slane %v4252, %v4258
    %v4260 = vcombine.high %v4259, %v4259
    %v4262 = vunpack.c.l.s4 1966171168
    %v4263 = vunpack.c.0.s8 %v4262
    %v4264 = vlaneseq
    %v4265 = vshrl.u32 %v4264, 7
    %v4266 = vsub.s32 %v4263, %v4265
    %v4267 = vrot.slane %v4259, %v4266
    %v4269 = vunpack.c.l.s4 1966171168
    %v4270 = vunpack.c.0.s8 %v4269
    %v4271 = vlaneseq
    %v4272 = vshrl.u32 %v4271, 7
    %v4273 = vsub.s32 %v4270, %v4272
    %v4274 = vrot.slane %v4260, %v4273
    %v4275 = vcombine.high %v4267, %v4267
    %4278 = vst.msk [vmem:[#allocation3 + $0xd] sm:$0x1] %vm1722, %v4274
    %4279 = vst.msk [vmem:[#allocation3 + $0x1d] sm:$0x1] %vm1722, %v4275
    %4280 = vst.msk [vmem:[#allocation3 + $0x2] sm:$0x1] %vm1725, %v4274
    %4281 = vst.msk [vmem:[#allocation3 + $0x12] sm:$0x1] %vm1725, %v4275
    %v4282 = vsel %vm2306, %v3595, %v2642
    %v4284 = vsel %vm2306, %v3824, %v3823
    %v4286 = vsel %vm1623, %v4282, %v4284
    %v4287 = vrot.slane %v4250, 5
    %4289 = vmatprep.subr.mxu0 0.0
    %4290 = vmatpush1.msra.mxu0 %v2655
    %4291 = vmatprep.subr.mxu0 0.0
    %4292 = vmatpush1.msra.mxu0 %v2656
    %4293 = vmatprep.subr.mxu0 0.0
    %4294 = vmatpush1.msra.mxu0 %v2657
    %4295 = vmatprep.subr.mxu0 0.0
    %4296 = vmatpush1.msra.mxu0 %v2658
    %4297 = vmatprep.subr.mxu0 0.0
    %4298 = vmatpush1.msra.mxu0 %v2659
    %4299 = vmatprep.subr.mxu0 0.0
    %4300 = vmatpush1.msra.mxu0 %v2660
    %4301 = vmatprep.subr.mxu0 0.0
    %4302 = vmatpush1.msra.mxu0 %v2661
    %4303 = vmatprep.subr.mxu0 0.0
    %4304 = vmatpush1.msra.mxu0 %v2662
    %4305 = vmatprep.subr.mxu0 0.0
    %4306 = vmatpush1.msra.mxu0 %v2663
    %4307 = vmatprep.subr.mxu0 0.0
    %4308 = vmatpush1.msra.mxu0 %v2664
    %4309 = vmatprep.subr.mxu0 0.0
    %4310 = vmatpush1.msra.mxu0 %v2665
    %4311 = vmatprep.subr.mxu0 0.0
    %4312 = vmatpush1.msra.mxu0 %v2666
    %4313 = vmatprep.subr.mxu0 0.0
    %4314 = vmatpush1.msra.mxu0 %v2667
    %4315 = vmatprep.subr.mxu0 0.0
    %4316 = vmatpush1.msra.mxu0 %v2668
    %4317 = vmatprep.subr.mxu0 0.0
    %4318 = vmatpush1.msra.mxu0 %v2669
    %4319 = vmatprep.subr.mxu0 0.0
    %4320 = vmatpush1.msra.mxu0 %v2670
    %4321 = vmatprep.subr.mxu0 0.0
    %4322 = vmatpush1.msra.mxu0 0.0
    %4323 = vmatprep.subr.mxu0 0.0
    %4324 = vmatpush1.msra.mxu0 0.0
    %4325 = vmatprep.subr.mxu0 0.0
    %4326 = vmatpush1.msra.mxu0 0.0
    %4327 = vmatprep.subr.mxu0 0.0
    %4328 = vmatpush1.msra.mxu0 0.0
    %4329 = vmatprep.subr.mxu0 0.0
    %4330 = vmatpush1.msra.mxu0 0.0
    %4331 = vmatprep.subr.mxu0 0.0
    %4332 = vmatpush1.msra.mxu0 0.0
    %4333 = vmatprep.subr.mxu0 0.0
    %4334 = vmatpush1.msra.mxu0 0.0
    %4335 = vmatprep.subr.mxu0 0.0
    %4336 = vmatpush1.msra.mxu0 0.0
    %4337 = vmatprep.subr.mxu0 0.0
    %4338 = vmatpush1.msra.mxu0 0.0
    %4339 = vmatprep.subr.mxu0 0.0
    %4340 = vmatpush1.msra.mxu0 0.0
    %4341 = vmatprep.subr.mxu0 0.0
    %4342 = vmatpush1.msra.mxu0 0.0
    %4343 = vmatprep.subr.mxu0 0.0
    %4344 = vmatpush1.msra.mxu0 0.0
    %4345 = vmatprep.subr.mxu0 0.0
    %4346 = vmatpush1.msra.mxu0 0.0
    %4347 = vmatprep.subr.mxu0 0.0
    %4348 = vmatpush1.msra.mxu0 0.0
    %4349 = vmatprep.subr.mxu0 0.0
    %4350 = vmatpush1.msra.mxu0 0.0
    %4351 = vmatprep.subr.mxu0 0.0
    %4352 = vmatpush1.msra.mxu0 0.0
    %4353 = vmatprep.mubr.f32.mxu0 0.0
    %4354 = vmatmul.mubr.f32.gmra.mrb[0].mxu0 %v4287
    %v4355 = vpop.f32.mrb[0].mxu0
    %v4356 = vadd.f32 0.0, %v4355
    %v4357 = vpop.f32.mrb[0].mxu0
    %4358 = vdwg.mxu0
    %v4360 = vrot.slane %v4356, 2
    %v4362 = vadd.f32 %v4286, %v4360
    %v4363 = vtanh.pop %v4362
    %v4365 = vcombine.high %v4363, %v4363
    %v4367 = vunpack.c.l.s4 1966171168
    %v4368 = vunpack.c.0.s8 %v4367
    %v4369 = vlaneseq
    %v4370 = vshrl.u32 %v4369, 7
    %v4371 = vsub.s32 %v4368, %v4370
    %v4372 = vrot.slane %v4365, %v4371
    %v4373 = vcombine.high %v4372, %v4372
    %v4375 = vunpack.c.l.s4 1966171168
    %v4376 = vunpack.c.0.s8 %v4375
    %v4377 = vlaneseq
    %v4378 = vshrl.u32 %v4377, 7
    %v4379 = vsub.s32 %v4376, %v4378
    %v4380 = vrot.slane %v4372, %v4379
    %v4382 = vunpack.c.l.s4 1966171168
    %v4383 = vunpack.c.0.s8 %v4382
    %v4384 = vlaneseq
    %v4385 = vshrl.u32 %v4384, 7
    %v4386 = vsub.s32 %v4383, %v4385
    %v4387 = vrot.slane %v4373, %v4386
    %v4388 = vcombine.high %v4380, %v4380
    %v4389 = vcombine.high %v4387, %v4387
    %4392 = vst.msk [vmem:[#allocation3 + $0xe] sm:$0x1] %vm1722, %v4388
    %4393 = vst.msk [vmem:[#allocation3 + $0x1e] sm:$0x1] %vm1722, %v4389
    %4394 = vst.msk [vmem:[#allocation3 + $0x1] sm:$0x1] %vm1725, %v4388
    %4395 = vst.msk [vmem:[#allocation3 + $0x11] sm:$0x1] %vm1725, %v4389
    %v4400 = vsel %vm1623, %v2642, %v3938
    %v4401 = vsel %vm1623, %v3595, %v2647
    %v4402 = vrot.slane %v4363, 6
    %4404 = vmatprep.subr.mxu0 0.0
    %4405 = vmatpush1.msra.mxu0 %v2655
    %4406 = vmatprep.subr.mxu0 0.0
    %4407 = vmatpush1.msra.mxu0 %v2656
    %4408 = vmatprep.subr.mxu0 0.0
    %4409 = vmatpush1.msra.mxu0 %v2657
    %4410 = vmatprep.subr.mxu0 0.0
    %4411 = vmatpush1.msra.mxu0 %v2658
    %4412 = vmatprep.subr.mxu0 0.0
    %4413 = vmatpush1.msra.mxu0 %v2659
    %4414 = vmatprep.subr.mxu0 0.0
    %4415 = vmatpush1.msra.mxu0 %v2660
    %4416 = vmatprep.subr.mxu0 0.0
    %4417 = vmatpush1.msra.mxu0 %v2661
    %4418 = vmatprep.subr.mxu0 0.0
    %4419 = vmatpush1.msra.mxu0 %v2662
    %4420 = vmatprep.subr.mxu0 0.0
    %4421 = vmatpush1.msra.mxu0 %v2663
    %4422 = vmatprep.subr.mxu0 0.0
    %4423 = vmatpush1.msra.mxu0 %v2664
    %4424 = vmatprep.subr.mxu0 0.0
    %4425 = vmatpush1.msra.mxu0 %v2665
    %4426 = vmatprep.subr.mxu0 0.0
    %4427 = vmatpush1.msra.mxu0 %v2666
    %4428 = vmatprep.subr.mxu0 0.0
    %4429 = vmatpush1.msra.mxu0 %v2667
    %4430 = vmatprep.subr.mxu0 0.0
    %4431 = vmatpush1.msra.mxu0 %v2668
    %4432 = vmatprep.subr.mxu0 0.0
    %4433 = vmatpush1.msra.mxu0 %v2669
    %4434 = vmatprep.subr.mxu0 0.0
    %4435 = vmatpush1.msra.mxu0 %v2670
    %4436 = vmatprep.subr.mxu0 0.0
    %4437 = vmatpush1.msra.mxu0 0.0
    %4438 = vmatprep.subr.mxu0 0.0
    %4439 = vmatpush1.msra.mxu0 0.0
    %4440 = vmatprep.subr.mxu0 0.0
    %4441 = vmatpush1.msra.mxu0 0.0
    %4442 = vmatprep.subr.mxu0 0.0
    %4443 = vmatpush1.msra.mxu0 0.0
    %4444 = vmatprep.subr.mxu0 0.0
    %4445 = vmatpush1.msra.mxu0 0.0
    %4446 = vmatprep.subr.mxu0 0.0
    %4447 = vmatpush1.msra.mxu0 0.0
    %4448 = vmatprep.subr.mxu0 0.0
    %4449 = vmatpush1.msra.mxu0 0.0
    %4450 = vmatprep.subr.mxu0 0.0
    %4451 = vmatpush1.msra.mxu0 0.0
    %4452 = vmatprep.subr.mxu0 0.0
    %4453 = vmatpush1.msra.mxu0 0.0
    %4454 = vmatprep.subr.mxu0 0.0
    %4455 = vmatpush1.msra.mxu0 0.0
    %4456 = vmatprep.subr.mxu0 0.0
    %4457 = vmatpush1.msra.mxu0 0.0
    %4458 = vmatprep.subr.mxu0 0.0
    %4459 = vmatpush1.msra.mxu0 0.0
    %4460 = vmatprep.subr.mxu0 0.0
    %4461 = vmatpush1.msra.mxu0 0.0
    %4462 = vmatprep.subr.mxu0 0.0
    %4463 = vmatpush1.msra.mxu0 0.0
    %4464 = vmatprep.subr.mxu0 0.0
    %4465 = vmatpush1.msra.mxu0 0.0
    %4466 = vmatprep.subr.mxu0 0.0
    %4467 = vmatpush1.msra.mxu0 0.0
    %4468 = vmatprep.mubr.f32.mxu0 0.0
    %4469 = vmatmul.mubr.f32.gmra.mrb[0].mxu0 %v4402
    %v4470 = vpop.f32.mrb[0].mxu0
    %v4471 = vadd.f32 0.0, %v4470
    %v4472 = vpop.f32.mrb[0].mxu0
    %4473 = vdwg.mxu0
    %v4475 = vrot.slane %v4471, 1
    %v4477 = vadd.f32 %v4400, %v4475
    %v4478 = vadd.f32 %v4401, %v4475
    %v4479 = vtanh.pop %v4477
    %v4480 = vtanh.pop %v4478
    %v4483 = vcombine.high %v4479, %v4479
    %v4485 = vunpack.c.l.s4 1966171168
    %v4486 = vunpack.c.0.s8 %v4485
    %v4487 = vlaneseq
    %v4488 = vshrl.u32 %v4487, 7
    %v4489 = vsub.s32 %v4486, %v4488
    %v4490 = vrot.slane %v4483, %v4489
    %v4491 = vcombine.high %v4490, %v4490
    %v4493 = vunpack.c.l.s4 1966171168
    %v4494 = vunpack.c.0.s8 %v4493
    %v4495 = vlaneseq
    %v4496 = vshrl.u32 %v4495, 7
    %v4497 = vsub.s32 %v4494, %v4496
    %v4498 = vrot.slane %v4491, %v4497
    %v4499 = vcombine.high %v4498, %v4498
    %v4501 = vunpack.c.l.s4 1966171168
    %v4502 = vunpack.c.0.s8 %v4501
    %v4503 = vlaneseq
    %v4504 = vshrl.u32 %v4503, 7
    %v4505 = vsub.s32 %v4502, %v4504
    %v4506 = vrot.slane %v4480, %v4505
    %v4508 = vunpack.c.l.s4 1966171168
    %v4509 = vunpack.c.0.s8 %v4508
    %v4510 = vlaneseq
    %v4511 = vshrl.u32 %v4510, 7
    %v4512 = vsub.s32 %v4509, %v4511
    %v4513 = vrot.slane %v4506, %v4512
    %4516 = vst.msk [vmem:[#allocation3 + $0xf] sm:$0x1] %vm1722, %v4499
    %4517 = vst.msk [vmem:[#allocation3 + $0x1f] sm:$0x1] %vm1722, %v4513
    %4518 = vst.msk [vmem:[#allocation3] sm:$0x1] %vm1725, %v4499
    %4519 = vst.msk [vmem:[#allocation3 + $0x10] sm:$0x1] %vm1725, %v4513
    %v4520 = vld [vmem:[#allocation3] sm:$0xff]
    %v4521 = vld [vmem:[#allocation3 + $0x8] sm:$0xff]
    %v4522 = vld [vmem:[#allocation3 + $0x10] sm:$0xff]
    %v4523 = vld [vmem:[#allocation3 + $0x18] sm:$0xff]
    %4524 = vmatprep.subr.mxu0 0.0
    %4525 = vmatpush1.xpose.msra.mxu0 %v4520
    %4526 = vmatprep.subr.mxu0 0.0
    %4527 = vmatpush1.xpose.msra.mxu0 %v4521
    %4528 = vmatprep.subr.mxu0 0.0
    %4529 = vmatpush1.xpose.msra.mxu0 0.0
    %4530 = vmatprep.subr.mxu0 0.0
    %4531 = vmatpush1.xpose.msra.mxu0 0.0
    %4532 = vmatprep.subr.mxu0 0.0
    %4533 = vmatpush1.xpose.msra.mxu0 0.0
    %4534 = vmatprep.subr.mxu0 0.0
    %4535 = vmatpush1.xpose.msra.mxu0 0.0
    %4536 = vmatprep.subr.mxu0 0.0
    %4537 = vmatpush1.xpose.msra.mxu0 0.0
    %4538 = vmatprep.subr.mxu0 0.0
    %4539 = vmatpush1.xpose.msra.mxu0 0.0
    %4540 = vmatprep.subr.mxu0 0.0
    %4541 = vmatpush1.xpose.msra.mxu0 0.0
    %4542 = vmatprep.subr.mxu0 0.0
    %4543 = vmatpush1.xpose.msra.mxu0 0.0
    %4544 = vmatprep.subr.mxu0 0.0
    %4545 = vmatpush1.xpose.msra.mxu0 0.0
    %4546 = vmatprep.subr.mxu0 0.0
    %4547 = vmatpush1.xpose.msra.mxu0 0.0
    %4548 = vmatprep.subr.mxu0 0.0
    %4549 = vmatpush1.xpose.msra.mxu0 0.0
    %4550 = vmatprep.subr.mxu0 0.0
    %4551 = vmatpush1.xpose.msra.mxu0 0.0
    %4552 = vmatprep.subr.mxu0 0.0
    %4553 = vmatpush1.xpose.msra.mxu0 0.0
    %4554 = vmatprep.subr.mxu0 0.0
    %4555 = vmatpush1.xpose.msra.mxu0 0.0
    %4556 = vmatprep.subr.mxu0 0.0
    %4557 = vmatpush1.xpose.msra.mxu0 0.0
    %4558 = vmatprep.subr.mxu0 0.0
    %4559 = vmatpush1.xpose.msra.mxu0 0.0
    %4560 = vmatprep.subr.mxu0 0.0
    %4561 = vmatpush1.xpose.msra.mxu0 0.0
    %4562 = vmatprep.subr.mxu0 0.0
    %4563 = vmatpush1.xpose.msra.mxu0 0.0
    %4564 = vmatprep.subr.mxu0 0.0
    %4565 = vmatpush1.xpose.msra.mxu0 0.0
    %4566 = vmatprep.subr.mxu0 0.0
    %4567 = vmatpush1.xpose.msra.mxu0 0.0
    %4568 = vmatprep.subr.mxu0 0.0
    %4569 = vmatpush1.xpose.msra.mxu0 0.0
    %4570 = vmatprep.subr.mxu0 0.0
    %4571 = vmatpush1.xpose.msra.mxu0 0.0
    %4572 = vmatprep.subr.mxu0 0.0
    %4573 = vmatpush1.xpose.msra.mxu0 0.0
    %4574 = vmatprep.subr.mxu0 0.0
    %4575 = vmatpush1.xpose.msra.mxu0 0.0
    %4576 = vmatprep.subr.mxu0 0.0
    %4577 = vmatpush1.xpose.msra.mxu0 0.0
    %4578 = vmatprep.subr.mxu0 0.0
    %4579 = vmatpush1.xpose.msra.mxu0 0.0
    %4580 = vmatprep.subr.mxu0 0.0
    %4581 = vmatpush1.xpose.msra.mxu0 0.0
    %4582 = vmatprep.subr.mxu0 0.0
    %4583 = vmatpush1.xpose.msra.mxu0 0.0
    %4584 = vmatprep.subr.mxu0 0.0
    %4585 = vmatpush1.xpose.msra.mxu0 0.0
    %4586 = vmatprep.subr.mxu0 0.0
    %4587 = vmatpush1.xpose.msra.mxu0 0.0
    %4588 = vmatprep.mubr.f32.mxu0 0.0
    %4589 = vmatmul.mubr.f32.gmra.mrb[0].mxu0 %v2545
    %v4590 = vpop.f32.mrb[0].mxu0
    %v4591 = vadd.f32 0.0, %v4590
    %v4592 = vpop.f32.mrb[0].mxu0
    %4593 = vdwg.mxu0
    %4594 = vmatprep.subr.mxu0 0.0
    %4595 = vmatpush1.xpose.msra.mxu0 %v4522
    %4596 = vmatprep.subr.mxu0 0.0
    %4597 = vmatpush1.xpose.msra.mxu0 %v4523
    %4598 = vmatprep.subr.mxu0 0.0
    %4599 = vmatpush1.xpose.msra.mxu0 0.0
    %4600 = vmatprep.subr.mxu0 0.0
    %4601 = vmatpush1.xpose.msra.mxu0 0.0
    %4602 = vmatprep.subr.mxu0 0.0
    %4603 = vmatpush1.xpose.msra.mxu0 0.0
    %4604 = vmatprep.subr.mxu0 0.0
    %4605 = vmatpush1.xpose.msra.mxu0 0.0
    %4606 = vmatprep.subr.mxu0 0.0
    %4607 = vmatpush1.xpose.msra.mxu0 0.0
    %4608 = vmatprep.subr.mxu0 0.0
    %4609 = vmatpush1.xpose.msra.mxu0 0.0
    %4610 = vmatprep.subr.mxu0 0.0
    %4611 = vmatpush1.xpose.msra.mxu0 0.0
    %4612 = vmatprep.subr.mxu0 0.0
    %4613 = vmatpush1.xpose.msra.mxu0 0.0
    %4614 = vmatprep.subr.mxu0 0.0
    %4615 = vmatpush1.xpose.msra.mxu0 0.0
    %4616 = vmatprep.subr.mxu0 0.0
    %4617 = vmatpush1.xpose.msra.mxu0 0.0
    %4618 = vmatprep.subr.mxu0 0.0
    %4619 = vmatpush1.xpose.msra.mxu0 0.0
    %4620 = vmatprep.subr.mxu0 0.0
    %4621 = vmatpush1.xpose.msra.mxu0 0.0
    %4622 = vmatprep.subr.mxu0 0.0
    %4623 = vmatpush1.xpose.msra.mxu0 0.0
    %4624 = vmatprep.subr.mxu0 0.0
    %4625 = vmatpush1.xpose.msra.mxu0 0.0
    %4626 = vmatprep.subr.mxu0 0.0
    %4627 = vmatpush1.xpose.msra.mxu0 0.0
    %4628 = vmatprep.subr.mxu0 0.0
    %4629 = vmatpush1.xpose.msra.mxu0 0.0
    %4630 = vmatprep.subr.mxu0 0.0
    %4631 = vmatpush1.xpose.msra.mxu0 0.0
    %4632 = vmatprep.subr.mxu0 0.0
    %4633 = vmatpush1.xpose.msra.mxu0 0.0
    %4634 = vmatprep.subr.mxu0 0.0
    %4635 = vmatpush1.xpose.msra.mxu0 0.0
    %4636 = vmatprep.subr.mxu0 0.0
    %4637 = vmatpush1.xpose.msra.mxu0 0.0
    %4638 = vmatprep.subr.mxu0 0.0
    %4639 = vmatpush1.xpose.msra.mxu0 0.0
    %4640 = vmatprep.subr.mxu0 0.0
    %4641 = vmatpush1.xpose.msra.mxu0 0.0
    %4642 = vmatprep.subr.mxu0 0.0
    %4643 = vmatpush1.xpose.msra.mxu0 0.0
    %4644 = vmatprep.subr.mxu0 0.0
    %4645 = vmatpush1.xpose.msra.mxu0 0.0
    %4646 = vmatprep.subr.mxu0 0.0
    %4647 = vmatpush1.xpose.msra.mxu0 0.0
    %4648 = vmatprep.subr.mxu0 0.0
    %4649 = vmatpush1.xpose.msra.mxu0 0.0
    %4650 = vmatprep.subr.mxu0 0.0
    %4651 = vmatpush1.xpose.msra.mxu0 0.0
    %4652 = vmatprep.subr.mxu0 0.0
    %4653 = vmatpush1.xpose.msra.mxu0 0.0
    %4654 = vmatprep.subr.mxu0 0.0
    %4655 = vmatpush1.xpose.msra.mxu0 0.0
    %4656 = vmatprep.subr.mxu0 0.0
    %4657 = vmatpush1.xpose.msra.mxu0 0.0
    %4658 = vmatprep.mubr.f32.mxu0 0.0
    %4659 = vmatmul.mubr.f32.gmra.mrb[0].mxu0 %v2546
    %v4660 = vpop.f32.mrb[0].mxu0
    %v4661 = vadd.f32 0.0, %v4660
    %v4662 = vpop.f32.mrb[0].mxu0
    %4663 = vdwg.mxu0
    %4664 = vst.msk [vmem:[#allocation21] sm:$0xff] %vm786, %v4591
    %4665 = vst.msk [vmem:[#allocation21 + $0x8] sm:$0xff] %vm786, %v4661
    // Predicated region
    $region98: #{cat_birnn_forward.1} parent=1 // pred_check
      _
    $region99: #{cat_birnn_forward.1} parent=1 // pred_check_branch
      %4667 = sbr.rel (0) target = $region101
    $region100: #{cat_birnn_forward.1} parent=1 // pred_region
      %s4669 = ssub.s32 256, 256
      %4670 = vsyncadd [#allocation6], %s4669
      %s4671 = sshll.u32 [#allocation21], 4
      %s4672 = int_to_ptr.vmem [resolvable:$true] %s4671
      %4677 = dma.vmem_to_hbm [thread:$0]  %s4672, 256, %s14, [#allocation6], 128, 128, 8
    $region101: #{cat_birnn_forward.1} parent=1 // pred_fallthru
      _
    // Predicated region
    $region102: #{cat_birnn_forward.1} parent=1 // pred_check
      _
    $region103: #{cat_birnn_forward.1} parent=1 // pred_check_branch
      %4679 = sbr.rel (0) target = $region105
    $region104: #{cat_birnn_forward.1} parent=1 // pred_region
      %4680 = dma.done [#allocation6], 256
    $region105: #{cat_birnn_forward.1} parent=1 // pred_fallthru
      _
    %4681 = vsyncpa [#allocation5], 1
    %4682 = vsyncpa [#allocation8], 1
    %4683 = vsyncpa [#allocation11], 1
    %4684 = vsyncpa [#allocation14], 1
    %4685 = vsyncpa [#allocation17], 1
    %4686 = vsyncpa [#allocation20], 1
    %4687 = vsyncpa [#allocation6], 1

</llo_original>
